<compile_context>
chip_gen: v7x
topology: tpu7x:2x2x1
jax: 0.10.0
libtpu: 0.0.40
codegen_flags: <defaults>
</compile_context>

<pallas_src>
import functools
import math

import jax
import jax.numpy as jnp
from jax import lax
from jax.experimental import pallas as pl
from jax.experimental.pallas import tpu as pltpu


# bf16 MXU inputs with f32 accumulation (~3x MXU throughput on v6e/v7x, more
# on v5e).  Set to jnp.float32 for bit-closer agreement with the f32/torch
# reference if needed (the DFT phases are int-reduced so f32 stays accurate).
MATMUL_DTYPE = jnp.bfloat16

_CLAMP = 1e-7        # torch.clamp(..., min=1e-07)
_CHUNK_M = 128       # epilogue row-chunk: bounds live f32 temps / spills
_MAX_TILE_M = 512    # upper bound on rows per grid tile


def _round_up(v, m):
    return ((v + m - 1) // m) * m


def _vmem_capacity_bytes():
    """Generation-aware VMEM capacity (v5e/v6e: 128 MiB, v7x: 64 MiB)."""
    try:
        return int(pltpu.get_tpu_info().vmem_capacity_bytes)
    except Exception:
        return 64 * 1024 * 1024   # conservative fallback: v7x per-TC VMEM


# ----------------------------- Pallas kernel ------------------------------ #

def _stft_loss_kernel(x_ref, y_ref, cs_ref, out_ref, *, chunk_m):
    """One frame-row tile of one STFT resolution.

    x_ref  : (TILE_M, n_fft) bf16 — un-windowed x frames (window folded into
                                    the basis rows).
    y_ref  : (TILE_M, n_fft) bf16 — matching y frames.
    cs_ref : (n_fft, 2*Fpad) bf16 — fused windowed [cos | sin] real-DFT basis,
                                    resident across the whole grid.
    out_ref: (1, 3, Fpad)    f32  — per-tile, per-lane partial sums:
             [0] sum over rows of (y_mag - x_mag)^2
             [1] sum over rows of clamped y_mag^2
             [2] sum over rows of |log x_mag - log y_mag|
    """
    tile_m = x_ref.shape[0]
    fpad = out_ref.shape[2]
    num_chunks = tile_m // chunk_m

    def chunk_sums(x_blk, y_blk):
        # Two MXU matmuls against the same resident RHS, f32 accumulation.
        xres = jnp.dot(x_blk, cs_ref[...], preferred_element_type=jnp.float32)
        yres = jnp.dot(y_blk, cs_ref[...], preferred_element_type=jnp.float32)
        x_sq = jnp.maximum(xres[:, :fpad] ** 2 + xres[:, fpad:] ** 2, _CLAMP)
        y_sq = jnp.maximum(yres[:, :fpad] ** 2 + yres[:, fpad:] ** 2, _CLAMP)
        # (y_mag - x_mag)^2 == x_sq + y_sq - 2*sqrt(x_sq*y_sq): one EUP sqrt
        # instead of two; clamp tiny negative rounding residue at zero.
        diff_sq = jnp.maximum(x_sq + y_sq - 2.0 * jnp.sqrt(x_sq * y_sq), 0.0)
        # |log x_mag - log y_mag| == 0.5 * |log x_sq - log y_sq|.
        log_l1 = 0.5 * jnp.abs(jnp.log(x_sq) - jnp.log(y_sq))
        # Row (sublane) reduction only; cross-lane reduce happens in glue.
        return (jnp.sum(diff_sq, axis=0, keepdims=True),
                jnp.sum(y_sq, axis=0, keepdims=True),
                jnp.sum(log_l1, axis=0, keepdims=True))

    if num_chunks == 1:
        d_sum, e_sum, l_sum = chunk_sums(x_ref[...], y_ref[...])
    else:
        # Chunk the matmul + epilogue over rows so only CHUNK_M x Fpad f32
        # temporaries are live at a time (bounds vreg/VMEM spill traffic).
        def body(c, carry):
            start = pl.multiple_of(c * chunk_m, chunk_m)
            d, e, l = chunk_sums(x_ref[pl.ds(start, chunk_m), :],
                                 y_ref[pl.ds(start, chunk_m), :])
            return (carry[0] + d, carry[1] + e, carry[2] + l)

        zeros = jnp.zeros((1, fpad), jnp.float32)
        d_sum, e_sum, l_sum = lax.fori_loop(
            0, num_chunks, body, (zeros, zeros, zeros))

    out_ref[0, 0:1, :] = d_sum
    out_ref[0, 1:2, :] = e_sum
    out_ref[0, 2:3, :] = l_sum


def _stft_partial_sums(x_in, y_in, cs, tile_m, chunk_m, fpad, vmem_limit):
    m_pad, n_fft = x_in.shape
    num_tiles = m_pad // tile_m

    itemsize = int(x_in.dtype.itemsize)
    cost = pl.CostEstimate(
        flops=2 * 2 * m_pad * n_fft * (2 * fpad),       # x & y matmuls
        transcendentals=3 * m_pad * fpad,               # 1 sqrt + 2 logs / elem
        bytes_accessed=(x_in.size + y_in.size + cs.size) * itemsize
                       + num_tiles * 3 * fpad * 4,
    )

    kernel = functools.partial(_stft_loss_kernel, chunk_m=chunk_m)
    return pl.pallas_call(
        kernel,
        out_shape=jax.ShapeDtypeStruct((num_tiles, 3, fpad), jnp.float32),
        grid=(num_tiles,),
        in_specs=[
            # x and y frame tiles stream through the pipeline separately
            # (no interleave copy in HBM).
            pl.BlockSpec((tile_m, n_fft), lambda i: (i, 0)),
            pl.BlockSpec((tile_m, n_fft), lambda i: (i, 0)),
            # Fused basis: constant block index -> fetched once, resident.
            # TODO(synk): request pipeline_mode=pl.Buffered(1) here (halves
            # the basis VMEM on v7x) once verified on the target jax version.
            pl.BlockSpec((n_fft, 2 * fpad), lambda i: (0, 0)),
        ],
        # Lane-dense per-tile output; no revisited blocks -> axis is parallel.
        out_specs=pl.BlockSpec((1, 3, fpad), lambda i: (i, 0, 0)),
        compiler_params=pltpu.CompilerParams(
            dimension_semantics=("parallel",),
            vmem_limit_bytes=vmem_limit,
        ),
        cost_estimate=cost,
    )(x_in, y_in, cs)


# ------------------------------- JAX glue ---------------------------------- #

def _hann_window(win_length):
    # torch.hann_window default: periodic=True.
    n = jnp.arange(win_length, dtype=jnp.float32)
    return 0.5 * (1.0 - jnp.cos(2.0 * math.pi * n / win_length))


def _full_window(fft_size, win_length):
    """Hann(win_length) centered and zero-padded to fft_size (torch.stft)."""
    win = _hann_window(win_length)
    lpad = (fft_size - win_length) // 2
    return jnp.pad(win, (lpad, fft_size - win_length - lpad))


def _frame(x, fft_size, hop):
    """x: (B, T) -> UN-windowed frames (B * n_frames, fft_size), matching
    torch.stft(center=True, pad_mode='reflect', onesided=True) framing.
    The Hann window is folded into the DFT basis instead.
    """
    # TODO(synk): move framing in-kernel (hop-strided DMA windows from the
    # reflect-padded waveform held in pl.ANY + scalar-prefetched offsets) to
    # cut the n_fft/hop x HBM traffic blow-up; kept in XLA glue for now.
    B, T = x.shape
    pad = fft_size // 2
    xp = jnp.pad(x, ((0, 0), (pad, pad)), mode="reflect")
    n_frames = 1 + (xp.shape[1] - fft_size) // hop
    idx = (jnp.arange(n_frames)[:, None] * hop
           + jnp.arange(fft_size)[None, :])            # (n_frames, fft_size)
    frames = xp[:, idx]                                # (B, n_frames, fft_size)
    return frames.reshape(B * n_frames, fft_size)


def _windowed_dft_basis(fft_size, f_kernel, fpad, win_full):
    """Window-scaled [cos | sin] real-DFT basis over k in [0, f_kernel),
    frequency axis zero-padded to fpad -> (fft_size, 2*fpad)."""
    n_i = jnp.arange(fft_size, dtype=jnp.int32)[:, None]
    k_i = jnp.arange(f_kernel, dtype=jnp.int32)[None, :]
    # Exact integer phase reduction before the f32 trig keeps large-n_fft
    # phases accurate even if MATMUL_DTYPE is switched to f32.
    ang = (2.0 * math.pi / fft_size) * ((n_i * k_i) % fft_size).astype(jnp.float32)
    w = win_full[:, None]
    cos_m = jnp.pad(w * jnp.cos(ang), ((0, 0), (0, fpad - f_kernel)))
    sin_m = jnp.pad(w * jnp.sin(ang), ((0, 0), (0, fpad - f_kernel)))
    return jnp.concatenate([cos_m, sin_m], axis=1)


def _pick_tile_m(n_fft, m_rows, vmem_capacity):
    """Largest row tile within the generation-aware DMA budget, capped so
    short inputs still yield >= 2 parallel grid tiles (v7x has 2 TCs), and a
    multiple of the epilogue chunk when above it."""
    itemsize = jnp.dtype(MATMUL_DTYPE).itemsize
    tile_budget = max(1 << 20, vmem_capacity // 32)     # bytes for x+y block
    t = tile_budget // (2 * n_fft * itemsize)           # 2 signals (x & y)
    t = min(t, _MAX_TILE_M)
    t = min(t, _round_up(max(m_rows // 2, 1), 16))      # >= 2 tiles / 2 TCs
    if t >= _CHUNK_M:
        t = (t // _CHUNK_M) * _CHUNK_M
    else:
        t = max(16, (t // 16) * 16)
    return int(t)


def _single_resolution_loss(x, y, fft_size, hop, win_length, vmem_capacity):
    xf = _frame(x, fft_size, hop)                      # (B*n_frames, n_fft) f32
    yf = _frame(y, fft_size, hop)
    m_rows = xf.shape[0]
    n_freq = fft_size // 2 + 1

    # Drop the Nyquist bin in-kernel whenever n_fft/2 is already lane-dense
    # (multiple of 128): avoids padding n_fft/2+1 up by an extra 127 wasted
    # MXU columns + EUP work.  Its contribution is added back in glue below.
    drop_nyq = (fft_size % 2 == 0) and ((fft_size // 2) % 128 == 0)
    f_kernel = fft_size // 2 if drop_nyq else n_freq
    fpad = _round_up(f_kernel, 128)

    tile_m = _pick_tile_m(fft_size, m_rows, vmem_capacity)
    chunk_m = min(_CHUNK_M, tile_m)
    m_pad = _round_up(m_rows, tile_m)
    pad_rows = m_pad - m_rows

    win_full = _full_window(fft_size, win_length)
    cs = _windowed_dft_basis(fft_size, f_kernel, fpad, win_full)
    cs = cs.astype(MATMUL_DTYPE)

    x_in = jnp.pad(xf, ((0, pad_rows), (0, 0))).astype(MATMUL_DTYPE)
    y_in = jnp.pad(yf, ((0, pad_rows), (0, 0))).astype(MATMUL_DTYPE)

    vmem_limit = min(int(0.65 * vmem_capacity), 100 * 1024 * 1024)
    partials = _stft_partial_sums(x_in, y_in, cs, tile_m, chunk_m, fpad,
                                  vmem_limit)          # (num_tiles, 3, fpad)
    sums = jnp.sum(partials, axis=(0, 2))              # (3,)

    # Padded rows / padded frequency columns have exactly zero real & imag
    # parts (zero frames / zero basis columns), so every padded element adds
    # exactly the 1e-7 clamp floor to the y-energy sum and exactly zero to
    # the other two sums; subtract that here.
    pad_energy = jnp.float32((m_pad * fpad - m_rows * f_kernel) * _CLAMP)
    s_diff = sums[0]
    s_energy = sums[1] - pad_energy
    s_logl1 = sums[2]

    if drop_nyq:
        # Nyquist bin k = n_fft/2: cos term = (-1)^n, sin term = 0 -> one
        # windowed matvec per signal, computed in f32 glue.
        sign = jnp.where(jnp.arange(fft_size) % 2 == 0, 1.0, -1.0)
        nyq_vec = (win_full * sign).astype(jnp.float32)
        x_nyq_sq = jnp.maximum((xf @ nyq_vec) ** 2, _CLAMP)
        y_nyq_sq = jnp.maximum((yf @ nyq_vec) ** 2, _CLAMP)
        x_nyq = jnp.sqrt(x_nyq_sq)
        y_nyq = jnp.sqrt(y_nyq_sq)
        s_diff = s_diff + jnp.sum((y_nyq - x_nyq) ** 2)
        s_energy = s_energy + jnp.sum(y_nyq_sq)
        s_logl1 = s_logl1 + jnp.sum(jnp.abs(jnp.log(x_nyq) - jnp.log(y_nyq)))

    # SpectralConvergenceLoss = ||y - x||_F / ||y||_F
    sc_loss = jnp.sqrt(s_diff) / jnp.sqrt(s_energy)
    # LogSTFTMagnitudeLoss = mean |log x_mag - log y_mag|
    mag_loss = s_logl1 / jnp.float32(m_rows * n_freq)
    return sc_loss, mag_loss


@functools.partial(jax.jit, static_argnames=("fft_sizes", "shift_lengths",
                                             "win_lengths"))
def multi_resolution_stft_loss(x, y, fft_sizes, shift_lengths, win_lengths):
    vmem_capacity = _vmem_capacity_bytes()
    sc_total = jnp.float32(0.0)
    mag_total = jnp.float32(0.0)
    for fft_size, hop, win_length in zip(fft_sizes, shift_lengths, win_lengths):
        sc, mag = _single_resolution_loss(x, y, fft_size, hop, win_length,
                                          vmem_capacity)
        sc_total = sc_total + sc
        mag_total = mag_total + mag
    n = float(len(fft_sizes))
    return sc_total / n, mag_total / n


# --------------------------------- main ------------------------------------ #

if __name__ == "__main__":
    # Small deterministic example: batch=2 waveforms of 4096 samples (enough
    # frames to exercise multi-tile grids and the chunked epilogue path).
    key = jax.random.PRNGKey(0)
    kx, ky = jax.random.split(key)
    B, T = 2, 4096
    x = jax.random.normal(kx, (B, T), dtype=jnp.float32)
    y = jax.random.normal(ky, (B, T), dtype=jnp.float32)

    # MultiResolutionSTFTLoss __init__ config (small multi-resolution set;
    # fft_size=256 exercises the Nyquist-drop path).
    fft_sizes = (64, 128, 256)
    shift_lengths = (16, 32, 64)
    win_lengths = (32, 64, 128)

    sc_loss, mag_loss = multi_resolution_stft_loss(
        x, y, fft_sizes, shift_lengths, win_lengths)
    jax.block_until_ready((sc_loss, mag_loss))
    assert bool(jnp.isfinite(sc_loss)) and bool(jnp.isfinite(mag_loss))
    print("KERNEL_OK")
</pallas_src>

<mosaic_0001>
module attributes {stable_mosaic.version = 11 : i64} {
  func.func @_stft_loss_kernel(%arg0: i32, %arg1: memref<128x128xbf16, #tpu.memory_space<vmem>>, %arg2: memref<128x128xbf16, #tpu.memory_space<vmem>>, %arg3: memref<128x256xbf16, #tpu.memory_space<vmem>>, %arg4: memref<1x3x128xf32, #tpu.memory_space<vmem>>) attributes {dimension_semantics = [#tpu.dimension_semantics<parallel>], iteration_bounds = array<i64: 3>, scalar_prefetch = 0 : i64, scratch_operands = 0 : i64, tpu.core_type = #tpu.core_type<tc>, window_params = [{transform_indices = @transform_0, window_bounds = array<i64: 128, 128>}, {transform_indices = @transform_1, window_bounds = array<i64: 128, 128>}, {pipeline_mode = #tpu.pipeline_mode<synchronous>, transform_indices = @transform_2, window_bounds = array<i64: 128, 256>}, {transform_indices = @transform_3, window_bounds = array<i64: 1, 3, 128>}]} {
    %c0 = arith.constant 0 : index
    %c0_0 = arith.constant 0 : index
    %0 = vector.load %arg1[%c0, %c0_0] : memref<128x128xbf16, #tpu.memory_space<vmem>>, vector<128x128xbf16>
    %c0_1 = arith.constant 0 : index
    %c0_2 = arith.constant 0 : index
    %1 = vector.load %arg2[%c0_1, %c0_2] : memref<128x128xbf16, #tpu.memory_space<vmem>>, vector<128x128xbf16>
    %c0_3 = arith.constant 0 : index
    %c0_4 = arith.constant 0 : index
    %2 = vector.load %arg3[%c0_3, %c0_4] : memref<128x256xbf16, #tpu.memory_space<vmem>>, vector<128x256xbf16>
    %cst = arith.constant dense<0.000000e+00> : vector<128x256xf32>
    %3 = tpu.matmul %0, %2, %cst {dimension_numbers = #tpu.dot_dimension_numbers<[1], [0], [0], [1], [0, 0, 1, 1], [], []>} : vector<128x128xbf16>, vector<128x256xbf16>, vector<128x256xf32> -> vector<128x256xf32>
    %c0_5 = arith.constant 0 : index
    %c0_6 = arith.constant 0 : index
    %4 = vector.load %arg3[%c0_5, %c0_6] : memref<128x256xbf16, #tpu.memory_space<vmem>>, vector<128x256xbf16>
    %cst_7 = arith.constant dense<0.000000e+00> : vector<128x256xf32>
    %5 = tpu.matmul %1, %4, %cst_7 {dimension_numbers = #tpu.dot_dimension_numbers<[1], [0], [0], [1], [0, 0, 1, 1], [], []>} : vector<128x128xbf16>, vector<128x256xbf16>, vector<128x256xf32> -> vector<128x256xf32>
    %6 = vector.extract_strided_slice %3 {offsets = [0, 0], sizes = [128, 128], strides = [1, 1]} : vector<128x256xf32> to vector<128x128xf32>
    %7 = arith.mulf %6, %6 : vector<128x128xf32>
    %8 = vector.extract_strided_slice %3 {offsets = [0, 128], sizes = [128, 128], strides = [1, 1]} : vector<128x256xf32> to vector<128x128xf32>
    %9 = arith.mulf %8, %8 : vector<128x128xf32>
    %10 = arith.addf %7, %9 : vector<128x128xf32>
    %cst_8 = arith.constant 1.000000e-07 : f32
    %11 = vector.broadcast %cst_8 : f32 to vector<128x128xf32>
    %12 = arith.maximumf %10, %11 : vector<128x128xf32>
    %13 = vector.extract_strided_slice %5 {offsets = [0, 0], sizes = [128, 128], strides = [1, 1]} : vector<128x256xf32> to vector<128x128xf32>
    %14 = arith.mulf %13, %13 : vector<128x128xf32>
    %15 = vector.extract_strided_slice %5 {offsets = [0, 128], sizes = [128, 128], strides = [1, 1]} : vector<128x256xf32> to vector<128x128xf32>
    %16 = arith.mulf %15, %15 : vector<128x128xf32>
    %17 = arith.addf %14, %16 : vector<128x128xf32>
    %cst_9 = arith.constant 1.000000e-07 : f32
    %18 = vector.broadcast %cst_9 : f32 to vector<128x128xf32>
    %19 = arith.maximumf %17, %18 : vector<128x128xf32>
    %20 = arith.addf %12, %19 : vector<128x128xf32>
    %21 = arith.mulf %12, %19 : vector<128x128xf32>
    %22 = math.sqrt %21 : vector<128x128xf32>
    %cst_10 = arith.constant 2.000000e+00 : f32
    %23 = vector.broadcast %cst_10 : f32 to vector<128x128xf32>
    %24 = arith.mulf %23, %22 : vector<128x128xf32>
    %25 = arith.subf %20, %24 : vector<128x128xf32>
    %cst_11 = arith.constant 0.000000e+00 : f32
    %26 = vector.broadcast %cst_11 : f32 to vector<128x128xf32>
    %27 = arith.maximumf %25, %26 : vector<128x128xf32>
    %28 = math.log %12 : vector<128x128xf32>
    %29 = math.log %19 : vector<128x128xf32>
    %30 = arith.subf %28, %29 : vector<128x128xf32>
    %31 = math.absf %30 : vector<128x128xf32>
    %cst_12 = arith.constant 5.000000e-01 : f32
    %32 = vector.broadcast %cst_12 : f32 to vector<128x128xf32>
    %33 = arith.mulf %32, %31 : vector<128x128xf32>
    %cst_13 = arith.constant dense<0.000000e+00> : vector<128xf32>
    %34 = vector.multi_reduction <add>, %27, %cst_13 [0] : vector<128x128xf32> to vector<128xf32>
    %35 = vector.shape_cast %34 : vector<128xf32> to vector<1x128xf32>
    %cst_14 = arith.constant dense<0.000000e+00> : vector<128xf32>
    %36 = vector.multi_reduction <add>, %19, %cst_14 [0] : vector<128x128xf32> to vector<128xf32>
    %37 = vector.shape_cast %36 : vector<128xf32> to vector<1x128xf32>
    %cst_15 = arith.constant dense<0.000000e+00> : vector<128xf32>
    %38 = vector.multi_reduction <add>, %33, %cst_15 [0] : vector<128x128xf32> to vector<128xf32>
    %39 = vector.shape_cast %38 : vector<128xf32> to vector<1x128xf32>
    %c0_16 = arith.constant 0 : index
    %c0_17 = arith.constant 0 : index
    %c0_18 = arith.constant 0 : index
    %40 = vector.load %arg4[%c0_16, %c0_17, %c0_18] : memref<1x3x128xf32, #tpu.memory_space<vmem>>, vector<1x1x128xf32>
    %41 = vector.shape_cast %40 : vector<1x1x128xf32> to vector<1x128xf32>
    %42 = vector.shape_cast %35 : vector<1x128xf32> to vector<1x1x128xf32>
    tpu.vector_store %arg4[%c0_16, %c0_17, %c0_18], %42 {strides = array<i32>} : memref<1x3x128xf32, #tpu.memory_space<vmem>>, vector<1x1x128xf32>,
    %c0_19 = arith.constant 0 : index
    %c1 = arith.constant 1 : index
    %c0_20 = arith.constant 0 : index
    %43 = vector.load %arg4[%c0_19, %c1, %c0_20] : memref<1x3x128xf32, #tpu.memory_space<vmem>>, vector<1x1x128xf32>
    %44 = vector.shape_cast %43 : vector<1x1x128xf32> to vector<1x128xf32>
    %45 = vector.shape_cast %37 : vector<1x128xf32> to vector<1x1x128xf32>
    tpu.vector_store %arg4[%c0_19, %c1, %c0_20], %45 {strides = array<i32>} : memref<1x3x128xf32, #tpu.memory_space<vmem>>, vector<1x1x128xf32>,
    %c0_21 = arith.constant 0 : index
    %c2 = arith.constant 2 : index
    %c0_22 = arith.constant 0 : index
    %46 = vector.load %arg4[%c0_21, %c2, %c0_22] : memref<1x3x128xf32, #tpu.memory_space<vmem>>, vector<1x1x128xf32>
    %47 = vector.shape_cast %46 : vector<1x1x128xf32> to vector<1x128xf32>
    %48 = vector.shape_cast %39 : vector<1x128xf32> to vector<1x1x128xf32>
    tpu.vector_store %arg4[%c0_21, %c2, %c0_22], %48 {strides = array<i32>} : memref<1x3x128xf32, #tpu.memory_space<vmem>>, vector<1x1x128xf32>,
    return
  }
  func.func @transform_0(%arg0: i32) -> (i32, i32) {
    %c0_i32 = arith.constant 0 : i32
    %c0_i32_0 = arith.constant 0 : i32
    return %arg0, %c0_i32 : i32, i32
  }
  func.func @transform_1(%arg0: i32) -> (i32, i32) {
    %c0_i32 = arith.constant 0 : i32
    %c0_i32_0 = arith.constant 0 : i32
    return %arg0, %c0_i32 : i32, i32
  }
  func.func @transform_2(%arg0: i32) -> (i32, i32) {
    %c0_i32 = arith.constant 0 : i32
    %c0_i32_0 = arith.constant 0 : i32
    %c0_i32_1 = arith.constant 0 : i32
    return %c0_i32, %c0_i32_0 : i32, i32
  }
  func.func @transform_3(%arg0: i32) -> (i32, i32, i32) {
    %c0_i32 = arith.constant 0 : i32
    %c0_i32_0 = arith.constant 0 : i32
    %c0_i32_1 = arith.constant 0 : i32
    return %arg0, %c0_i32, %c0_i32_0 : i32, i32, i32
  }
}

module attributes {stable_mosaic.version = 11 : i64} {
  func.func @_stft_loss_kernel(%arg0: i32, %arg1: memref<256x64xbf16, #tpu.memory_space<vmem>>, %arg2: memref<256x64xbf16, #tpu.memory_space<vmem>>, %arg3: memref<64x256xbf16, #tpu.memory_space<vmem>>, %arg4: memref<1x3x128xf32, #tpu.memory_space<vmem>>) attributes {dimension_semantics = [#tpu.dimension_semantics<parallel>], iteration_bounds = array<i64: 3>, scalar_prefetch = 0 : i64, scratch_operands = 0 : i64, tpu.core_type = #tpu.core_type<tc>, window_params = [{transform_indices = @transform_0, window_bounds = array<i64: 256, 64>}, {transform_indices = @transform_1, window_bounds = array<i64: 256, 64>}, {pipeline_mode = #tpu.pipeline_mode<synchronous>, transform_indices = @transform_2, window_bounds = array<i64: 64, 256>}, {transform_indices = @transform_3, window_bounds = array<i64: 1, 3, 128>}]} {
    %cst = arith.constant 0.000000e+00 : f32
    %0 = vector.broadcast %cst : f32 to vector<1x128xf32>
    %c0_i32 = arith.constant 0 : i32
    %c2_i32 = arith.constant 2 : i32
    %1 = arith.addi %c0_i32, %c2_i32 : i32
    %c1_i32 = arith.constant 1 : i32
    %2:3 = scf.for %arg5 = %c0_i32 to %1 step %c1_i32 iter_args(%arg6 = %0, %arg7 = %0, %arg8 = %0) -> (vector<1x128xf32>, vector<1x128xf32>, vector<1x128xf32>)  : i32 {
      %c128_i32 = arith.constant 128 : i32
      %12 = arith.muli %arg5, %c128_i32 : i32
      %13 = tpu.assume_multiple %12, 128 : i32
      %14 = arith.index_cast %13 : i32 to index
      %c0_7 = arith.constant 0 : index
      %15 = vector.load %arg1[%14, %c0_7] : memref<256x64xbf16, #tpu.memory_space<vmem>>, vector<128x64xbf16>
      %16 = arith.index_cast %13 : i32 to index
      %c0_8 = arith.constant 0 : index
      %17 = vector.load %arg2[%16, %c0_8] : memref<256x64xbf16, #tpu.memory_space<vmem>>, vector<128x64xbf16>
      %c0_9 = arith.constant 0 : index
      %c0_10 = arith.constant 0 : index
      %18 = vector.load %arg3[%c0_9, %c0_10] : memref<64x256xbf16, #tpu.memory_space<vmem>>, vector<64x256xbf16>
      %cst_11 = arith.constant dense<0.000000e+00> : vector<128x256xf32>
      %19 = tpu.matmul %15, %18, %cst_11 {dimension_numbers = #tpu.dot_dimension_numbers<[1], [0], [0], [1], [0, 0, 1, 1], [], []>} : vector<128x64xbf16>, vector<64x256xbf16>, vector<128x256xf32> -> vector<128x256xf32>
      %c0_12 = arith.constant 0 : index
      %c0_13 = arith.constant 0 : index
      %20 = vector.load %arg3[%c0_12, %c0_13] : memref<64x256xbf16, #tpu.memory_space<vmem>>, vector<64x256xbf16>
      %cst_14 = arith.constant dense<0.000000e+00> : vector<128x256xf32>
      %21 = tpu.matmul %17, %20, %cst_14 {dimension_numbers = #tpu.dot_dimension_numbers<[1], [0], [0], [1], [0, 0, 1, 1], [], []>} : vector<128x64xbf16>, vector<64x256xbf16>, vector<128x256xf32> -> vector<128x256xf32>
      %22 = vector.extract_strided_slice %19 {offsets = [0, 0], sizes = [128, 128], strides = [1, 1]} : vector<128x256xf32> to vector<128x128xf32>
      %23 = arith.mulf %22, %22 : vector<128x128xf32>
      %24 = vector.extract_strided_slice %19 {offsets = [0, 128], sizes = [128, 128], strides = [1, 1]} : vector<128x256xf32> to vector<128x128xf32>
      %25 = arith.mulf %24, %24 : vector<128x128xf32>
      %26 = arith.addf %23, %25 : vector<128x128xf32>
      %cst_15 = arith.constant 1.000000e-07 : f32
      %27 = vector.broadcast %cst_15 : f32 to vector<128x128xf32>
      %28 = arith.maximumf %26, %27 : vector<128x128xf32>
      %29 = vector.extract_strided_slice %21 {offsets = [0, 0], sizes = [128, 128], strides = [1, 1]} : vector<128x256xf32> to vector<128x128xf32>
      %30 = arith.mulf %29, %29 : vector<128x128xf32>
      %31 = vector.extract_strided_slice %21 {offsets = [0, 128], sizes = [128, 128], strides = [1, 1]} : vector<128x256xf32> to vector<128x128xf32>
      %32 = arith.mulf %31, %31 : vector<128x128xf32>
      %33 = arith.addf %30, %32 : vector<128x128xf32>
      %cst_16 = arith.constant 1.000000e-07 : f32
      %34 = vector.broadcast %cst_16 : f32 to vector<128x128xf32>
      %35 = arith.maximumf %33, %34 : vector<128x128xf32>
      %36 = arith.addf %28, %35 : vector<128x128xf32>
      %37 = arith.mulf %28, %35 : vector<128x128xf32>
      %38 = math.sqrt %37 : vector<128x128xf32>
      %cst_17 = arith.constant 2.000000e+00 : f32
      %39 = vector.broadcast %cst_17 : f32 to vector<128x128xf32>
      %40 = arith.mulf %39, %38 : vector<128x128xf32>
      %41 = arith.subf %36, %40 : vector<128x128xf32>
      %cst_18 = arith.constant 0.000000e+00 : f32
      %42 = vector.broadcast %cst_18 : f32 to vector<128x128xf32>
      %43 = arith.maximumf %41, %42 : vector<128x128xf32>
      %44 = math.log %28 : vector<128x128xf32>
      %45 = math.log %35 : vector<128x128xf32>
      %46 = arith.subf %44, %45 : vector<128x128xf32>
      %47 = math.absf %46 : vector<128x128xf32>
      %cst_19 = arith.constant 5.000000e-01 : f32
      %48 = vector.broadcast %cst_19 : f32 to vector<128x128xf32>
      %49 = arith.mulf %48, %47 : vector<128x128xf32>
      %cst_20 = arith.constant dense<0.000000e+00> : vector<128xf32>
      %50 = vector.multi_reduction <add>, %43, %cst_20 [0] : vector<128x128xf32> to vector<128xf32>
      %51 = vector.shape_cast %50 : vector<128xf32> to vector<1x128xf32>
      %cst_21 = arith.constant dense<0.000000e+00> : vector<128xf32>
      %52 = vector.multi_reduction <add>, %35, %cst_21 [0] : vector<128x128xf32> to vector<128xf32>
      %53 = vector.shape_cast %52 : vector<128xf32> to vector<1x128xf32>
      %cst_22 = arith.constant dense<0.000000e+00> : vector<128xf32>
      %54 = vector.multi_reduction <add>, %49, %cst_22 [0] : vector<128x128xf32> to vector<128xf32>
      %55 = vector.shape_cast %54 : vector<128xf32> to vector<1x128xf32>
      %56 = arith.addf %arg6, %51 : vector<1x128xf32>
      %57 = arith.addf %arg7, %53 : vector<1x128xf32>
      %58 = arith.addf %arg8, %55 : vector<1x128xf32>
      scf.yield %56, %57, %58 : vector<1x128xf32>, vector<1x128xf32>, vector<1x128xf32>
    }
    %c2_i32_0 = arith.constant 2 : i32
    %c0 = arith.constant 0 : index
    %c0_1 = arith.constant 0 : index
    %c0_2 = arith.constant 0 : index
    %3 = vector.load %arg4[%c0, %c0_1, %c0_2] : memref<1x3x128xf32, #tpu.memory_space<vmem>>, vector<1x1x128xf32>
    %4 = vector.shape_cast %3 : vector<1x1x128xf32> to vector<1x128xf32>
    %5 = vector.shape_cast %2#0 : vector<1x128xf32> to vector<1x1x128xf32>
    tpu.vector_store %arg4[%c0, %c0_1, %c0_2], %5 {strides = array<i32>} : memref<1x3x128xf32, #tpu.memory_space<vmem>>, vector<1x1x128xf32>,
    %c0_3 = arith.constant 0 : index
    %c1 = arith.constant 1 : index
    %c0_4 = arith.constant 0 : index
    %6 = vector.load %arg4[%c0_3, %c1, %c0_4] : memref<1x3x128xf32, #tpu.memory_space<vmem>>, vector<1x1x128xf32>
    %7 = vector.shape_cast %6 : vector<1x1x128xf32> to vector<1x128xf32>
    %8 = vector.shape_cast %2#1 : vector<1x128xf32> to vector<1x1x128xf32>
    tpu.vector_store %arg4[%c0_3, %c1, %c0_4], %8 {strides = array<i32>} : memref<1x3x128xf32, #tpu.memory_space<vmem>>, vector<1x1x128xf32>,
    %c0_5 = arith.constant 0 : index
    %c2 = arith.constant 2 : index
    %c0_6 = arith.constant 0 : index
    %9 = vector.load %arg4[%c0_5, %c2, %c0_6] : memref<1x3x128xf32, #tpu.memory_space<vmem>>, vector<1x1x128xf32>
    %10 = vector.shape_cast %9 : vector<1x1x128xf32> to vector<1x128xf32>
    %11 = vector.shape_cast %2#2 : vector<1x128xf32> to vector<1x1x128xf32>
    tpu.vector_store %arg4[%c0_5, %c2, %c0_6], %11 {strides = array<i32>} : memref<1x3x128xf32, #tpu.memory_space<vmem>>, vector<1x1x128xf32>,
    return
  }
  func.func @transform_0(%arg0: i32) -> (i32, i32) {
    %c0_i32 = arith.constant 0 : i32
    %c0_i32_0 = arith.constant 0 : i32
    return %arg0, %c0_i32 : i32, i32
  }
  func.func @transform_1(%arg0: i32) -> (i32, i32) {
    %c0_i32 = arith.constant 0 : i32
    %c0_i32_0 = arith.constant 0 : i32
    return %arg0, %c0_i32 : i32, i32
  }
  func.func @transform_2(%arg0: i32) -> (i32, i32) {
    %c0_i32 = arith.constant 0 : i32
    %c0_i32_0 = arith.constant 0 : i32
    %c0_i32_1 = arith.constant 0 : i32
    return %c0_i32, %c0_i32_0 : i32, i32
  }
  func.func @transform_3(%arg0: i32) -> (i32, i32, i32) {
    %c0_i32 = arith.constant 0 : i32
    %c0_i32_0 = arith.constant 0 : i32
    %c0_i32_1 = arith.constant 0 : i32
    return %arg0, %c0_i32, %c0_i32_0 : i32, i32, i32
  }
}

module attributes {stable_mosaic.version = 11 : i64} {
  func.func @_stft_loss_kernel(%arg0: i32, %arg1: memref<80x256xbf16, #tpu.memory_space<vmem>>, %arg2: memref<80x256xbf16, #tpu.memory_space<vmem>>, %arg3: memref<256x256xbf16, #tpu.memory_space<vmem>>, %arg4: memref<1x3x128xf32, #tpu.memory_space<vmem>>) attributes {dimension_semantics = [#tpu.dimension_semantics<parallel>], iteration_bounds = array<i64: 2>, scalar_prefetch = 0 : i64, scratch_operands = 0 : i64, tpu.core_type = #tpu.core_type<tc>, window_params = [{transform_indices = @transform_0, window_bounds = array<i64: 80, 256>}, {transform_indices = @transform_1, window_bounds = array<i64: 80, 256>}, {pipeline_mode = #tpu.pipeline_mode<synchronous>, transform_indices = @transform_2, window_bounds = array<i64: 256, 256>}, {transform_indices = @transform_3, window_bounds = array<i64: 1, 3, 128>}]} {
    %c0 = arith.constant 0 : index
    %c0_0 = arith.constant 0 : index
    %0 = vector.load %arg1[%c0, %c0_0] : memref<80x256xbf16, #tpu.memory_space<vmem>>, vector<80x256xbf16>
    %c0_1 = arith.constant 0 : index
    %c0_2 = arith.constant 0 : index
    %1 = vector.load %arg2[%c0_1, %c0_2] : memref<80x256xbf16, #tpu.memory_space<vmem>>, vector<80x256xbf16>
    %c0_3 = arith.constant 0 : index
    %c0_4 = arith.constant 0 : index
    %2 = vector.load %arg3[%c0_3, %c0_4] : memref<256x256xbf16, #tpu.memory_space<vmem>>, vector<256x256xbf16>
    %cst = arith.constant dense<0.000000e+00> : vector<80x256xf32>
    %3 = tpu.matmul %0, %2, %cst {dimension_numbers = #tpu.dot_dimension_numbers<[1], [0], [0], [1], [0, 0, 1, 1], [], []>} : vector<80x256xbf16>, vector<256x256xbf16>, vector<80x256xf32> -> vector<80x256xf32>
    %c0_5 = arith.constant 0 : index
    %c0_6 = arith.constant 0 : index
    %4 = vector.load %arg3[%c0_5, %c0_6] : memref<256x256xbf16, #tpu.memory_space<vmem>>, vector<256x256xbf16>
    %cst_7 = arith.constant dense<0.000000e+00> : vector<80x256xf32>
    %5 = tpu.matmul %1, %4, %cst_7 {dimension_numbers = #tpu.dot_dimension_numbers<[1], [0], [0], [1], [0, 0, 1, 1], [], []>} : vector<80x256xbf16>, vector<256x256xbf16>, vector<80x256xf32> -> vector<80x256xf32>
    %6 = vector.extract_strided_slice %3 {offsets = [0, 0], sizes = [80, 128], strides = [1, 1]} : vector<80x256xf32> to vector<80x128xf32>
    %7 = arith.mulf %6, %6 : vector<80x128xf32>
    %8 = vector.extract_strided_slice %3 {offsets = [0, 128], sizes = [80, 128], strides = [1, 1]} : vector<80x256xf32> to vector<80x128xf32>
    %9 = arith.mulf %8, %8 : vector<80x128xf32>
    %10 = arith.addf %7, %9 : vector<80x128xf32>
    %cst_8 = arith.constant 1.000000e-07 : f32
    %11 = vector.broadcast %cst_8 : f32 to vector<80x128xf32>
    %12 = arith.maximumf %10, %11 : vector<80x128xf32>
    %13 = vector.extract_strided_slice %5 {offsets = [0, 0], sizes = [80, 128], strides = [1, 1]} : vector<80x256xf32> to vector<80x128xf32>
    %14 = arith.mulf %13, %13 : vector<80x128xf32>
    %15 = vector.extract_strided_slice %5 {offsets = [0, 128], sizes = [80, 128], strides = [1, 1]} : vector<80x256xf32> to vector<80x128xf32>
    %16 = arith.mulf %15, %15 : vector<80x128xf32>
    %17 = arith.addf %14, %16 : vector<80x128xf32>
    %cst_9 = arith.constant 1.000000e-07 : f32
    %18 = vector.broadcast %cst_9 : f32 to vector<80x128xf32>
    %19 = arith.maximumf %17, %18 : vector<80x128xf32>
    %20 = arith.addf %12, %19 : vector<80x128xf32>
    %21 = arith.mulf %12, %19 : vector<80x128xf32>
    %22 = math.sqrt %21 : vector<80x128xf32>
    %cst_10 = arith.constant 2.000000e+00 : f32
    %23 = vector.broadcast %cst_10 : f32 to vector<80x128xf32>
    %24 = arith.mulf %23, %22 : vector<80x128xf32>
    %25 = arith.subf %20, %24 : vector<80x128xf32>
    %cst_11 = arith.constant 0.000000e+00 : f32
    %26 = vector.broadcast %cst_11 : f32 to vector<80x128xf32>
    %27 = arith.maximumf %25, %26 : vector<80x128xf32>
    %28 = math.log %12 : vector<80x128xf32>
    %29 = math.log %19 : vector<80x128xf32>
    %30 = arith.subf %28, %29 : vector<80x128xf32>
    %31 = math.absf %30 : vector<80x128xf32>
    %cst_12 = arith.constant 5.000000e-01 : f32
    %32 = vector.broadcast %cst_12 : f32 to vector<80x128xf32>
    %33 = arith.mulf %32, %31 : vector<80x128xf32>
    %cst_13 = arith.constant dense<0.000000e+00> : vector<128xf32>
    %34 = vector.multi_reduction <add>, %27, %cst_13 [0] : vector<80x128xf32> to vector<128xf32>
    %35 = vector.shape_cast %34 : vector<128xf32> to vector<1x128xf32>
    %cst_14 = arith.constant dense<0.000000e+00> : vector<128xf32>
    %36 = vector.multi_reduction <add>, %19, %cst_14 [0] : vector<80x128xf32> to vector<128xf32>
    %37 = vector.shape_cast %36 : vector<128xf32> to vector<1x128xf32>
    %cst_15 = arith.constant dense<0.000000e+00> : vector<128xf32>
    %38 = vector.multi_reduction <add>, %33, %cst_15 [0] : vector<80x128xf32> to vector<128xf32>
    %39 = vector.shape_cast %38 : vector<128xf32> to vector<1x128xf32>
    %c0_16 = arith.constant 0 : index
    %c0_17 = arith.constant 0 : index
    %c0_18 = arith.constant 0 : index
    %40 = vector.load %arg4[%c0_16, %c0_17, %c0_18] : memref<1x3x128xf32, #tpu.memory_space<vmem>>, vector<1x1x128xf32>
    %41 = vector.shape_cast %40 : vector<1x1x128xf32> to vector<1x128xf32>
    %42 = vector.shape_cast %35 : vector<1x128xf32> to vector<1x1x128xf32>
    tpu.vector_store %arg4[%c0_16, %c0_17, %c0_18], %42 {strides = array<i32>} : memref<1x3x128xf32, #tpu.memory_space<vmem>>, vector<1x1x128xf32>,
    %c0_19 = arith.constant 0 : index
    %c1 = arith.constant 1 : index
    %c0_20 = arith.constant 0 : index
    %43 = vector.load %arg4[%c0_19, %c1, %c0_20] : memref<1x3x128xf32, #tpu.memory_space<vmem>>, vector<1x1x128xf32>
    %44 = vector.shape_cast %43 : vector<1x1x128xf32> to vector<1x128xf32>
    %45 = vector.shape_cast %37 : vector<1x128xf32> to vector<1x1x128xf32>
    tpu.vector_store %arg4[%c0_19, %c1, %c0_20], %45 {strides = array<i32>} : memref<1x3x128xf32, #tpu.memory_space<vmem>>, vector<1x1x128xf32>,
    %c0_21 = arith.constant 0 : index
    %c2 = arith.constant 2 : index
    %c0_22 = arith.constant 0 : index
    %46 = vector.load %arg4[%c0_21, %c2, %c0_22] : memref<1x3x128xf32, #tpu.memory_space<vmem>>, vector<1x1x128xf32>
    %47 = vector.shape_cast %46 : vector<1x1x128xf32> to vector<1x128xf32>
    %48 = vector.shape_cast %39 : vector<1x128xf32> to vector<1x1x128xf32>
    tpu.vector_store %arg4[%c0_21, %c2, %c0_22], %48 {strides = array<i32>} : memref<1x3x128xf32, #tpu.memory_space<vmem>>, vector<1x1x128xf32>,
    return
  }
  func.func @transform_0(%arg0: i32) -> (i32, i32) {
    %c0_i32 = arith.constant 0 : i32
    %c0_i32_0 = arith.constant 0 : i32
    return %arg0, %c0_i32 : i32, i32
  }
  func.func @transform_1(%arg0: i32) -> (i32, i32) {
    %c0_i32 = arith.constant 0 : i32
    %c0_i32_0 = arith.constant 0 : i32
    return %arg0, %c0_i32 : i32, i32
  }
  func.func @transform_2(%arg0: i32) -> (i32, i32) {
    %c0_i32 = arith.constant 0 : i32
    %c0_i32_0 = arith.constant 0 : i32
    %c0_i32_1 = arith.constant 0 : i32
    return %c0_i32, %c0_i32_0 : i32, i32
  }
  func.func @transform_3(%arg0: i32) -> (i32, i32, i32) {
    %c0_i32 = arith.constant 0 : i32
    %c0_i32_0 = arith.constant 0 : i32
    %c0_i32_1 = arith.constant 0 : i32
    return %arg0, %c0_i32, %c0_i32_0 : i32, i32, i32
  }
}

</mosaic_0001>

<llo_original>
// kernel: multi_resolution_stft_loss.4
$region0: #{multi_resolution_stft_loss.4}
  #allocation0 [shape = 'u32[]', space=smem, size = 0x4, offset = 0x4, fixed_abs, tag = 'smem constant byte address 0x4 - core index']
  #allocation1 [shape = 'u32[144,128]{1,0:T(1,128)}', space=vmem, size = 0x12000, scoped, tag = 'internal scratch']
  %s0 = inlined_call_operand.vmem [shape: bf16[384,128], index: 0, kind: input, shape index: {}]
  %s1 = inlined_call_operand.vmem [shape: bf16[384,128], index: 1, kind: input, shape index: {}]
  %s2 = inlined_call_operand.vmem [shape: bf16[128,256], index: 2, kind: input, shape index: {}]
  %s3 = inlined_call_operand.vmem [shape: f32[3,3,128], index: 3, kind: output, shape index: {}]
  %s4 = sld [smem:[#allocation0]]
  $region45: #{multi_resolution_stft_loss.4} parent=0
    _
  %s6 = ssub.s32 1, %s4
  %s7 = scalar_select 0, %s6, %s4
  loop: start=0, step=1, limit=5
  $region2: #{multi_resolution_stft_loss.4} parent=0 // loop_pre_header
    _
  $region3: #{multi_resolution_stft_loss.4} parent=0 // loop_header
    %s9 = sphi 0, %s13
    %p10 = scmp.ge.s32.totalorder %s9, 5
    %s19 = sphi 0, %s21
    %s22 = sphi 0, %s19
    %s23 = sphi 0, %s22
    %s39 = sphi 0, %s23
    %s45 = sphi 0, %s47
    %s48 = sphi 0, %s45
    %s49 = sphi 0, %s48
    %s65 = sphi 0, %s49
    %s69 = sphi 0, %s69
    %s71 = sphi 0, %s69
    %s72 = sphi 0, %s71
    %s86 = sphi 0, %s72
    %s92 = sphi 0, %s94
    %s95 = sphi 0, %s92
    %s96 = sphi 0, %s95
    %s112 = sphi 0, %s96
  $region4: #{multi_resolution_stft_loss.4} parent=0 // loop_header_branch
    %12 = sbr.rel (%p10) target = $region8
  $region5: #{multi_resolution_stft_loss.4} parent=0 // loop_body
    %s14 = ssub.s32 %s9, 1
    %s15 = ssub.s32 %s9, 2
    %s16 = sadd.s32 %s9, 1
    %s17 = ssub.s32 %s9, %s16
    %p18 = scmp.eq.s32.totalorder %s17, 0
    %s20 = sadd.s32 %s19, 1
    %s21 = scalar_select %p18, %s19, %s20
    %p24 = pneg %p18
    %p25 = scmp.eq.s32.totalorder %s9, 2
    %p26 = por %p24, %p25
    %p27 = scmp.ne.s32.totalorder %s19, %s22
    %p28 = scmp.eq.s32.totalorder %s9, 0
    %p29 = por %p27, %p28
    %p30 = scmp.ne.s32.totalorder %s19, %s22
    %p31 = scmp.eq.s32.totalorder %s14, 2
    %p32 = por %p30, %p31
    %p33 = scmp.ne.s32.totalorder %s22, %s23
    %p34 = scmp.eq.s32.totalorder %s14, 0
    %p35 = por %p33, %p34
    %p36 = scmp.ne.s32.totalorder %s22, %s23
    %p37 = scmp.eq.s32.totalorder %s15, 2
    %p38 = por %p36, %p37
    %p40 = scmp.ne.s32.totalorder %s23, %s39
    %p41 = scmp.eq.s32.totalorder %s15, 0
    %p42 = por %p40, %p41
    %s43 = ssub.s32 %s9, %s16
    %p44 = scmp.eq.s32.totalorder %s43, 0
    %s46 = sadd.s32 %s45, 1
    %s47 = scalar_select %p44, %s45, %s46
    %p50 = pneg %p44
    %p51 = scmp.eq.s32.totalorder %s9, 2
    %p52 = por %p50, %p51
    %p53 = scmp.ne.s32.totalorder %s45, %s48
    %p54 = scmp.eq.s32.totalorder %s9, 0
    %p55 = por %p53, %p54
    %p56 = scmp.ne.s32.totalorder %s45, %s48
    %p57 = scmp.eq.s32.totalorder %s14, 2
    %p58 = por %p56, %p57
    %p59 = scmp.ne.s32.totalorder %s48, %s49
    %p60 = scmp.eq.s32.totalorder %s14, 0
    %p61 = por %p59, %p60
    %p62 = scmp.ne.s32.totalorder %s48, %s49
    %p63 = scmp.eq.s32.totalorder %s15, 2
    %p64 = por %p62, %p63
    %p66 = scmp.ne.s32.totalorder %s49, %s65
    %p67 = scmp.eq.s32.totalorder %s15, 0
    %p68 = por %p66, %p67
    %s70 = sadd.s32 %s69, 1
    %p73 = scmp.eq.s32.totalorder %s9, 2
    %p74 = scmp.ne.s32.totalorder %s69, %s71
    %p75 = scmp.eq.s32.totalorder %s9, 0
    %p76 = por %p74, %p75
    %p77 = scmp.ne.s32.totalorder %s69, %s71
    %p78 = scmp.eq.s32.totalorder %s14, 2
    %p79 = por %p77, %p78
    %p80 = scmp.ne.s32.totalorder %s71, %s72
    %p81 = scmp.eq.s32.totalorder %s14, 0
    %p82 = por %p80, %p81
    %p83 = scmp.ne.s32.totalorder %s71, %s72
    %p84 = scmp.eq.s32.totalorder %s15, 2
    %p85 = por %p83, %p84
    %p87 = scmp.ne.s32.totalorder %s72, %s86
    %p88 = scmp.eq.s32.totalorder %s15, 0
    %p89 = por %p87, %p88
    %s90 = ssub.s32 %s9, %s16
    %p91 = scmp.eq.s32.totalorder %s90, 0
    %s93 = sadd.s32 %s92, 1
    %s94 = scalar_select %p91, %s92, %s93
    %p97 = pneg %p91
    %p98 = scmp.eq.s32.totalorder %s9, 2
    %p99 = por %p97, %p98
    %p100 = scmp.ne.s32.totalorder %s92, %s95
    %p101 = scmp.eq.s32.totalorder %s9, 0
    %p102 = por %p100, %p101
    %p103 = scmp.ne.s32.totalorder %s92, %s95
    %p104 = scmp.eq.s32.totalorder %s14, 2
    %p105 = por %p103, %p104
    %p106 = scmp.ne.s32.totalorder %s95, %s96
    %p107 = scmp.eq.s32.totalorder %s14, 0
    %p108 = por %p106, %p107
    %p109 = scmp.ne.s32.totalorder %s95, %s96
    %p110 = scmp.eq.s32.totalorder %s15, 2
    %p111 = por %p109, %p110
    %p113 = scmp.ne.s32.totalorder %s96, %s112
    %p114 = scmp.eq.s32.totalorder %s15, 0
    %p115 = por %p113, %p114
    %p116 = scmp.le.s32.totalorder 1, %s9
    %p117 = scmp.lt.s32.totalorder %s9, 4
    %p118 = pnand %p116, %p117
    %p119 = pneg %p118
    // Predicated region
    $region9: #{multi_resolution_stft_loss.4} parent=5 // pred_check
      _
    $region10: #{multi_resolution_stft_loss.4} parent=5 // pred_check_branch
      %121 = sbr.rel (%p118) target = $region12
    $region11: #{multi_resolution_stft_loss.4} parent=5 // pred_region
      %s122 = ssub.s32 %s9, 1
      // Predicated region
      $region13: #{multi_resolution_stft_loss.4} parent=11 // pred_check
        %p123 = pneg %p82
      $region14: #{multi_resolution_stft_loss.4} parent=11 // pred_check_branch
        %125 = sbr.rel (%p123) target = $region16
      $region15: #{multi_resolution_stft_loss.4} parent=11 // pred_region
        _
      $region16: #{multi_resolution_stft_loss.4} parent=11 // pred_fallthru
        _
    $region12: #{multi_resolution_stft_loss.4} parent=5 // pred_fallthru
      _
    %p126 = scmp.lt.s32.totalorder %s9, 3
    // Predicated region
    $region17: #{multi_resolution_stft_loss.4} parent=5 // pred_check
      %p127 = pneg %p126
    $region18: #{multi_resolution_stft_loss.4} parent=5 // pred_check_branch
      %129 = sbr.rel (%p127) target = $region20
    $region19: #{multi_resolution_stft_loss.4} parent=5 // pred_region
      // Predicated region
      $region21: #{multi_resolution_stft_loss.4} parent=19 // pred_check
        %p130 = pneg %p29
      $region22: #{multi_resolution_stft_loss.4} parent=19 // pred_check_branch
        %132 = sbr.rel (%p130) target = $region24
      $region23: #{multi_resolution_stft_loss.4} parent=19 // pred_region
        %s133 = smul.u32 16, %s9
        %p134 = scmp.lt.s32.totalorder %s133, 47
        %s135 = scalar_select %p134, %s133, 47
        %s136 = smul.addr %s135, 4
        %s137 = scalar_lea.vmem %s0, %s136
        %s138 = smul.u32 16, %s9
      $region24: #{multi_resolution_stft_loss.4} parent=19 // pred_fallthru
        _
      // Predicated region
      $region25: #{multi_resolution_stft_loss.4} parent=19 // pred_check
        %p139 = pneg %p55
      $region26: #{multi_resolution_stft_loss.4} parent=19 // pred_check_branch
        %141 = sbr.rel (%p139) target = $region28
      $region27: #{multi_resolution_stft_loss.4} parent=19 // pred_region
        %s142 = smul.u32 16, %s9
        %p143 = scmp.lt.s32.totalorder %s142, 47
        %s144 = scalar_select %p143, %s142, 47
        %s145 = smul.addr %s144, 4
        %s146 = scalar_lea.vmem %s1, %s145
        %s147 = smul.u32 16, %s9
      $region28: #{multi_resolution_stft_loss.4} parent=19 // pred_fallthru
        _
    $region20: #{multi_resolution_stft_loss.4} parent=5 // pred_fallthru
      _
    %p148 = scmp.le.s32.totalorder 1, %s9
    %p149 = scmp.lt.s32.totalorder %s9, 4
    %p150 = pnand %p148, %p149
    %p151 = pneg %p150
    // Predicated region
    $region29: #{multi_resolution_stft_loss.4} parent=5 // pred_check
      _
    $region30: #{multi_resolution_stft_loss.4} parent=5 // pred_check_branch
      %153 = sbr.rel (%p150) target = $region32
    $region31: #{multi_resolution_stft_loss.4} parent=5 // pred_region
      %s154 = ssub.s32 %s9, 1
      %s155 = smul.u32 16, %s14
      %p156 = scmp.lt.s32.totalorder %s155, 47
      %s157 = scalar_select %p156, %s155, 47
      %s158 = smul.addr %s157, 4
      %s159 = scalar_lea.vmem %s0, %s158
      %p160 = pneg %p35
      %p161 = pneg %p32
      %s162 = smul.u32 16, %s14
      %p163 = scmp.lt.s32.totalorder %s162, 47
      %s164 = scalar_select %p163, %s162, 47
      %s165 = smul.addr %s164, 4
      %s166 = scalar_lea.vmem %s1, %s165
      %p167 = pneg %p61
      %p168 = pneg %p58
      %p169 = pneg %p82
      %p170 = pneg %p79
      %p171 = pneg %p108
      %p172 = pneg %p105
      %p173 = scmp.lt.s32.totalorder %s14, 2
      %s174 = scalar_select %p173, %s14, 2
      %s175 = smul.addr %s174, 4
      %s176 = scalar_lea.vmem %s3, %s175
      %s177 = smul.u32 16, %s14
      %p178 = scmp.lt.s32.totalorder %s177, 47
      %s179 = scalar_select %p178, %s177, 47
      %s180 = smul.addr %s179, 4
      %s181 = scalar_lea.vmem %s0, %s180
      %s182 = smul.u32 16, %s14
      %s183 = smul.u32 16, %s14
      %p184 = scmp.lt.s32.totalorder %s183, 47
      %s185 = scalar_select %p184, %s183, 47
      %s186 = smul.addr %s185, 4
      %s187 = scalar_lea.vmem %s1, %s186
      %s188 = smul.u32 16, %s14
      %p189 = scmp.lt.s32.totalorder %s14, 2
      %s190 = scalar_select %p189, %s14, 2
      %s191 = smul.addr %s190, 4
      %s192 = scalar_lea.vmem %s3, %s191
      %v194 = vld [vmem:[%s181] sm:$0xf]
      %v195 = vld [vmem:[%s181 + $0x4] sm:$0xf]
      %v196 = vld [vmem:[%s181 + $0x8] sm:$0xf]
      %v197 = vld [vmem:[%s181 + $0xc] sm:$0xf]
      %v198 = vld [vmem:[%s181 + $0x10] sm:$0xf]
      %v199 = vld [vmem:[%s181 + $0x14] sm:$0xf]
      %v200 = vld [vmem:[%s181 + $0x18] sm:$0xf]
      %v201 = vld [vmem:[%s181 + $0x1c] sm:$0xf]
      %v202 = vld [vmem:[%s181 + $0x20] sm:$0xf]
      %v203 = vld [vmem:[%s181 + $0x24] sm:$0xf]
      %v204 = vld [vmem:[%s181 + $0x28] sm:$0xf]
      %v205 = vld [vmem:[%s181 + $0x2c] sm:$0xf]
      %v206 = vld [vmem:[%s181 + $0x30] sm:$0xf]
      %v207 = vld [vmem:[%s181 + $0x34] sm:$0xf]
      %v208 = vld [vmem:[%s181 + $0x38] sm:$0xf]
      %v209 = vld [vmem:[%s181 + $0x3c] sm:$0xf]
      %v210 = vld [vmem:[%s187] sm:$0xf]
      %v211 = vld [vmem:[%s187 + $0x4] sm:$0xf]
      %v212 = vld [vmem:[%s187 + $0x8] sm:$0xf]
      %v213 = vld [vmem:[%s187 + $0xc] sm:$0xf]
      %v214 = vld [vmem:[%s187 + $0x10] sm:$0xf]
      %v215 = vld [vmem:[%s187 + $0x14] sm:$0xf]
      %v216 = vld [vmem:[%s187 + $0x18] sm:$0xf]
      %v217 = vld [vmem:[%s187 + $0x1c] sm:$0xf]
      %v218 = vld [vmem:[%s187 + $0x20] sm:$0xf]
      %v219 = vld [vmem:[%s187 + $0x24] sm:$0xf]
      %v220 = vld [vmem:[%s187 + $0x28] sm:$0xf]
      %v221 = vld [vmem:[%s187 + $0x2c] sm:$0xf]
      %v222 = vld [vmem:[%s187 + $0x30] sm:$0xf]
      %v223 = vld [vmem:[%s187 + $0x34] sm:$0xf]
      %v224 = vld [vmem:[%s187 + $0x38] sm:$0xf]
      %v225 = vld [vmem:[%s187 + $0x3c] sm:$0xf]
      %v226 = vld [vmem:[%s2] sm:$0xff]
      %v227 = vld [vmem:[%s2 + $0x8] sm:$0xff]
      %v228 = vld [vmem:[%s2 + $0x10] sm:$0xff]
      %v229 = vld [vmem:[%s2 + $0x18] sm:$0xff]
      %v230 = vld [vmem:[%s2 + $0x20] sm:$0xff]
      %v231 = vld [vmem:[%s2 + $0x28] sm:$0xff]
      %v232 = vld [vmem:[%s2 + $0x30] sm:$0xff]
      %v233 = vld [vmem:[%s2 + $0x38] sm:$0xff]
      %v234 = vld [vmem:[%s2 + $0x40] sm:$0xff]
      %v235 = vld [vmem:[%s2 + $0x48] sm:$0xff]
      %v236 = vld [vmem:[%s2 + $0x50] sm:$0xff]
      %v237 = vld [vmem:[%s2 + $0x58] sm:$0xff]
      %v238 = vld [vmem:[%s2 + $0x60] sm:$0xff]
      %v239 = vld [vmem:[%s2 + $0x68] sm:$0xff]
      %v240 = vld [vmem:[%s2 + $0x70] sm:$0xff]
      %v241 = vld [vmem:[%s2 + $0x78] sm:$0xff]
      %v258 = vunpack.c.l.b16 %v194
      %v259 = vunpack.c.l.b16 %v195
      %v260 = vunpack.c.l.b16 %v196
      %v261 = vunpack.c.l.b16 %v197
      %v262 = vunpack.c.l.b16 %v198
      %v263 = vunpack.c.l.b16 %v199
      %v264 = vunpack.c.l.b16 %v200
      %v265 = vunpack.c.l.b16 %v201
      %v266 = vunpack.c.l.b16 %v202
      %v267 = vunpack.c.l.b16 %v203
      %v268 = vunpack.c.l.b16 %v204
      %v269 = vunpack.c.l.b16 %v205
      %v270 = vunpack.c.l.b16 %v206
      %v271 = vunpack.c.l.b16 %v207
      %v272 = vunpack.c.l.b16 %v208
      %v273 = vunpack.c.l.b16 %v209
      %v274 = vpack.c.b16 %v259, %v258
      %v275 = vpack.c.b16 %v261, %v260
      %v276 = vpack.c.b16 %v263, %v262
      %v277 = vpack.c.b16 %v265, %v264
      %v278 = vpack.c.b16 %v267, %v266
      %v279 = vpack.c.b16 %v269, %v268
      %v280 = vpack.c.b16 %v271, %v270
      %v281 = vpack.c.b16 %v273, %v272
      %v306 = vunpack.c.l.b16 %v226
      %v307 = vunpack.c.h.b16 %v226
      %v308 = vunpack.c.l.b16 %v227
      %v309 = vunpack.c.h.b16 %v227
      %v310 = vunpack.c.l.b16 %v228
      %v311 = vunpack.c.h.b16 %v228
      %v312 = vunpack.c.l.b16 %v229
      %v313 = vunpack.c.h.b16 %v229
      %v314 = vunpack.c.l.b16 %v230
      %v315 = vunpack.c.h.b16 %v230
      %v316 = vunpack.c.l.b16 %v231
      %v317 = vunpack.c.h.b16 %v231
      %v318 = vunpack.c.l.b16 %v232
      %v319 = vunpack.c.h.b16 %v232
      %v320 = vunpack.c.l.b16 %v233
      %v321 = vunpack.c.h.b16 %v233
      %v322 = vunpack.c.l.b16 %v234
      %v323 = vunpack.c.h.b16 %v234
      %v324 = vunpack.c.l.b16 %v235
      %v325 = vunpack.c.h.b16 %v235
      %v326 = vunpack.c.l.b16 %v236
      %v327 = vunpack.c.h.b16 %v236
      %v328 = vunpack.c.l.b16 %v237
      %v329 = vunpack.c.h.b16 %v237
      %v330 = vunpack.c.l.b16 %v238
      %v331 = vunpack.c.h.b16 %v238
      %v332 = vunpack.c.l.b16 %v239
      %v333 = vunpack.c.h.b16 %v239
      %v334 = vunpack.c.l.b16 %v240
      %v335 = vunpack.c.h.b16 %v240
      %v336 = vunpack.c.l.b16 %v241
      %v337 = vunpack.c.h.b16 %v241
      %v338 = vpack.c.b16 %v308, %v306
      %v339 = vpack.c.b16 %v309, %v307
      %v340 = vpack.c.b16 %v312, %v310
      %v341 = vpack.c.b16 %v313, %v311
      %v342 = vpack.c.b16 %v316, %v314
      %v343 = vpack.c.b16 %v317, %v315
      %v344 = vpack.c.b16 %v320, %v318
      %v345 = vpack.c.b16 %v321, %v319
      %v346 = vpack.c.b16 %v324, %v322
      %v347 = vpack.c.b16 %v325, %v323
      %v348 = vpack.c.b16 %v328, %v326
      %v349 = vpack.c.b16 %v329, %v327
      %v350 = vpack.c.b16 %v332, %v330
      %v351 = vpack.c.b16 %v333, %v331
      %v352 = vpack.c.b16 %v336, %v334
      %v353 = vpack.c.b16 %v337, %v335
      %370 = vmatprep.subr.bf16.mxu0 %v339
      %371 = vmatpush1.bf16.msra.mxu0 %v338
      %372 = vmatprep.subr.bf16.mxu0 %v341
      %373 = vmatpush1.bf16.msra.mxu0 %v340
      %374 = vmatprep.subr.bf16.mxu0 %v343
      %375 = vmatpush1.bf16.msra.mxu0 %v342
      %376 = vmatprep.subr.bf16.mxu0 %v345
      %377 = vmatpush1.bf16.msra.mxu0 %v344
      %378 = vmatprep.subr.bf16.mxu0 %v347
      %379 = vmatpush1.bf16.msra.mxu0 %v346
      %380 = vmatprep.subr.bf16.mxu0 %v349
      %381 = vmatpush1.bf16.msra.mxu0 %v348
      %382 = vmatprep.subr.bf16.mxu0 %v351
      %383 = vmatpush1.bf16.msra.mxu0 %v350
      %384 = vmatprep.subr.bf16.mxu0 %v353
      %385 = vmatpush1.bf16.msra.mxu0 %v352
      %386 = vmatprep.subr.bf16.mxu0 0
      %387 = vmatpush1.bf16.msra.mxu0 0
      %388 = vmatprep.subr.bf16.mxu0 0
      %389 = vmatpush1.bf16.msra.mxu0 0
      %390 = vmatprep.subr.bf16.mxu0 0
      %391 = vmatpush1.bf16.msra.mxu0 0
      %392 = vmatprep.subr.bf16.mxu0 0
      %393 = vmatpush1.bf16.msra.mxu0 0
      %394 = vmatprep.subr.bf16.mxu0 0
      %395 = vmatpush1.bf16.msra.mxu0 0
      %396 = vmatprep.subr.bf16.mxu0 0
      %397 = vmatpush1.bf16.msra.mxu0 0
      %398 = vmatprep.subr.bf16.mxu0 0
      %399 = vmatpush1.bf16.msra.mxu0 0
      %400 = vmatprep.subr.bf16.mxu0 0
      %401 = vmatpush1.bf16.msra.mxu0 0
      %402 = vmatprep.mubr.bf16.mxu0 0
      %403 = vmatmul.mubr.bf16.gmra.mrb[0].mxu0 %v274
      %v404 = vpop.f32.mrb[0].mxu0
      %v405 = vadd.f32 0.0, %v404
      %v406 = vpop.f32.mrb[0].mxu0
      %v407 = vadd.f32 0.0, %v406
      %v408 = vpop.f32.mrb[0].mxu0
      %v409 = vadd.f32 0.0, %v408
      %v410 = vpop.f32.mrb[0].mxu0
      %v411 = vadd.f32 0.0, %v410
      %412 = vmatprep.mubr.bf16.mxu0 0
      %413 = vmatmul.mubr.bf16.gmra.mrb[0].mxu0 %v275
      %v414 = vpop.f32.mrb[0].mxu0
      %v415 = vadd.f32 0.0, %v414
      %v416 = vpop.f32.mrb[0].mxu0
      %v417 = vadd.f32 0.0, %v416
      %v418 = vpop.f32.mrb[0].mxu0
      %v419 = vadd.f32 0.0, %v418
      %v420 = vpop.f32.mrb[0].mxu0
      %v421 = vadd.f32 0.0, %v420
      %422 = vmatprep.mubr.bf16.mxu0 0
      %423 = vmatmul.mubr.bf16.gmra.mrb[0].mxu0 %v276
      %v424 = vpop.f32.mrb[0].mxu0
      %v425 = vadd.f32 0.0, %v424
      %v426 = vpop.f32.mrb[0].mxu0
      %v427 = vadd.f32 0.0, %v426
      %v428 = vpop.f32.mrb[0].mxu0
      %v429 = vadd.f32 0.0, %v428
      %v430 = vpop.f32.mrb[0].mxu0
      %v431 = vadd.f32 0.0, %v430
      %432 = vmatprep.mubr.bf16.mxu0 0
      %433 = vmatmul.mubr.bf16.gmra.mrb[0].mxu0 %v277
      %v434 = vpop.f32.mrb[0].mxu0
      %v435 = vadd.f32 0.0, %v434
      %v436 = vpop.f32.mrb[0].mxu0
      %v437 = vadd.f32 0.0, %v436
      %v438 = vpop.f32.mrb[0].mxu0
      %v439 = vadd.f32 0.0, %v438
      %v440 = vpop.f32.mrb[0].mxu0
      %v441 = vadd.f32 0.0, %v440
      %442 = vmatprep.mubr.bf16.mxu0 0
      %443 = vmatmul.mubr.bf16.gmra.mrb[0].mxu0 %v278
      %v444 = vpop.f32.mrb[0].mxu0
      %v445 = vadd.f32 0.0, %v444
      %v446 = vpop.f32.mrb[0].mxu0
      %v447 = vadd.f32 0.0, %v446
      %v448 = vpop.f32.mrb[0].mxu0
      %v449 = vadd.f32 0.0, %v448
      %v450 = vpop.f32.mrb[0].mxu0
      %v451 = vadd.f32 0.0, %v450
      %452 = vmatprep.mubr.bf16.mxu0 0
      %453 = vmatmul.mubr.bf16.gmra.mrb[0].mxu0 %v279
      %v454 = vpop.f32.mrb[0].mxu0
      %v455 = vadd.f32 0.0, %v454
      %v456 = vpop.f32.mrb[0].mxu0
      %v457 = vadd.f32 0.0, %v456
      %v458 = vpop.f32.mrb[0].mxu0
      %v459 = vadd.f32 0.0, %v458
      %v460 = vpop.f32.mrb[0].mxu0
      %v461 = vadd.f32 0.0, %v460
      %462 = vmatprep.mubr.bf16.mxu0 0
      %463 = vmatmul.mubr.bf16.gmra.mrb[0].mxu0 %v280
      %v464 = vpop.f32.mrb[0].mxu0
      %v465 = vadd.f32 0.0, %v464
      %v466 = vpop.f32.mrb[0].mxu0
      %v467 = vadd.f32 0.0, %v466
      %v468 = vpop.f32.mrb[0].mxu0
      %v469 = vadd.f32 0.0, %v468
      %v470 = vpop.f32.mrb[0].mxu0
      %v471 = vadd.f32 0.0, %v470
      %472 = vmatprep.mubr.bf16.mxu0 0
      %473 = vmatmul.mubr.bf16.gmra.mrb[0].mxu0 %v281
      %v474 = vpop.f32.mrb[0].mxu0
      %v475 = vadd.f32 0.0, %v474
      %v476 = vpop.f32.mrb[0].mxu0
      %v477 = vadd.f32 0.0, %v476
      %v478 = vpop.f32.mrb[0].mxu0
      %v479 = vadd.f32 0.0, %v478
      %v480 = vpop.f32.mrb[0].mxu0
      %v481 = vadd.f32 0.0, %v480
      %482 = vdwg.mxu0
      %v499 = vunpack.c.l.b16 %v210
      %v500 = vunpack.c.l.b16 %v211
      %v501 = vunpack.c.l.b16 %v212
      %v502 = vunpack.c.l.b16 %v213
      %v503 = vunpack.c.l.b16 %v214
      %v504 = vunpack.c.l.b16 %v215
      %v505 = vunpack.c.l.b16 %v216
      %v506 = vunpack.c.l.b16 %v217
      %v507 = vunpack.c.l.b16 %v218
      %v508 = vunpack.c.l.b16 %v219
      %v509 = vunpack.c.l.b16 %v220
      %v510 = vunpack.c.l.b16 %v221
      %v511 = vunpack.c.l.b16 %v222
      %v512 = vunpack.c.l.b16 %v223
      %v513 = vunpack.c.l.b16 %v224
      %v514 = vunpack.c.l.b16 %v225
      %v515 = vpack.c.b16 %v500, %v499
      %v516 = vpack.c.b16 %v502, %v501
      %v517 = vpack.c.b16 %v504, %v503
      %v518 = vpack.c.b16 %v506, %v505
      %v519 = vpack.c.b16 %v508, %v507
      %v520 = vpack.c.b16 %v510, %v509
      %v521 = vpack.c.b16 %v512, %v511
      %v522 = vpack.c.b16 %v514, %v513
      %531 = vmatprep.subr.bf16.mxu0 %v339
      %532 = vmatpush1.bf16.msra.mxu0 %v338
      %533 = vmatprep.subr.bf16.mxu0 %v341
      %534 = vmatpush1.bf16.msra.mxu0 %v340
      %535 = vmatprep.subr.bf16.mxu0 %v343
      %536 = vmatpush1.bf16.msra.mxu0 %v342
      %537 = vmatprep.subr.bf16.mxu0 %v345
      %538 = vmatpush1.bf16.msra.mxu0 %v344
      %539 = vmatprep.subr.bf16.mxu0 %v347
      %540 = vmatpush1.bf16.msra.mxu0 %v346
      %541 = vmatprep.subr.bf16.mxu0 %v349
      %542 = vmatpush1.bf16.msra.mxu0 %v348
      %543 = vmatprep.subr.bf16.mxu0 %v351
      %544 = vmatpush1.bf16.msra.mxu0 %v350
      %545 = vmatprep.subr.bf16.mxu0 %v353
      %546 = vmatpush1.bf16.msra.mxu0 %v352
      %547 = vmatprep.subr.bf16.mxu0 0
      %548 = vmatpush1.bf16.msra.mxu0 0
      %549 = vmatprep.subr.bf16.mxu0 0
      %550 = vmatpush1.bf16.msra.mxu0 0
      %551 = vmatprep.subr.bf16.mxu0 0
      %552 = vmatpush1.bf16.msra.mxu0 0
      %553 = vmatprep.subr.bf16.mxu0 0
      %554 = vmatpush1.bf16.msra.mxu0 0
      %555 = vmatprep.subr.bf16.mxu0 0
      %556 = vmatpush1.bf16.msra.mxu0 0
      %557 = vmatprep.subr.bf16.mxu0 0
      %558 = vmatpush1.bf16.msra.mxu0 0
      %559 = vmatprep.subr.bf16.mxu0 0
      %560 = vmatpush1.bf16.msra.mxu0 0
      %561 = vmatprep.subr.bf16.mxu0 0
      %562 = vmatpush1.bf16.msra.mxu0 0
      %563 = vmatprep.mubr.bf16.mxu0 0
      %564 = vmatmul.mubr.bf16.gmra.mrb[0].mxu0 %v515
      %v565 = vpop.f32.mrb[0].mxu0
      %v566 = vadd.f32 0.0, %v565
      %v567 = vpop.f32.mrb[0].mxu0
      %v568 = vadd.f32 0.0, %v567
      %v569 = vpop.f32.mrb[0].mxu0
      %v570 = vadd.f32 0.0, %v569
      %v571 = vpop.f32.mrb[0].mxu0
      %v572 = vadd.f32 0.0, %v571
      %573 = vmatprep.mubr.bf16.mxu0 0
      %574 = vmatmul.mubr.bf16.gmra.mrb[0].mxu0 %v516
      %v575 = vpop.f32.mrb[0].mxu0
      %v576 = vadd.f32 0.0, %v575
      %v577 = vpop.f32.mrb[0].mxu0
      %v578 = vadd.f32 0.0, %v577
      %v579 = vpop.f32.mrb[0].mxu0
      %v580 = vadd.f32 0.0, %v579
      %v581 = vpop.f32.mrb[0].mxu0
      %v582 = vadd.f32 0.0, %v581
      %583 = vmatprep.mubr.bf16.mxu0 0
      %584 = vmatmul.mubr.bf16.gmra.mrb[0].mxu0 %v517
      %v585 = vpop.f32.mrb[0].mxu0
      %v586 = vadd.f32 0.0, %v585
      %v587 = vpop.f32.mrb[0].mxu0
      %v588 = vadd.f32 0.0, %v587
      %v589 = vpop.f32.mrb[0].mxu0
      %v590 = vadd.f32 0.0, %v589
      %v591 = vpop.f32.mrb[0].mxu0
      %v592 = vadd.f32 0.0, %v591
      %593 = vmatprep.mubr.bf16.mxu0 0
      %594 = vmatmul.mubr.bf16.gmra.mrb[0].mxu0 %v518
      %v595 = vpop.f32.mrb[0].mxu0
      %v596 = vadd.f32 0.0, %v595
      %v597 = vpop.f32.mrb[0].mxu0
      %v598 = vadd.f32 0.0, %v597
      %v599 = vpop.f32.mrb[0].mxu0
      %v600 = vadd.f32 0.0, %v599
      %v601 = vpop.f32.mrb[0].mxu0
      %v602 = vadd.f32 0.0, %v601
      %603 = vmatprep.mubr.bf16.mxu0 0
      %604 = vmatmul.mubr.bf16.gmra.mrb[0].mxu0 %v519
      %v605 = vpop.f32.mrb[0].mxu0
      %v606 = vadd.f32 0.0, %v605
      %v607 = vpop.f32.mrb[0].mxu0
      %v608 = vadd.f32 0.0, %v607
      %v609 = vpop.f32.mrb[0].mxu0
      %v610 = vadd.f32 0.0, %v609
      %v611 = vpop.f32.mrb[0].mxu0
      %v612 = vadd.f32 0.0, %v611
      %613 = vmatprep.mubr.bf16.mxu0 0
      %614 = vmatmul.mubr.bf16.gmra.mrb[0].mxu0 %v520
      %v615 = vpop.f32.mrb[0].mxu0
      %v616 = vadd.f32 0.0, %v615
      %v617 = vpop.f32.mrb[0].mxu0
      %v618 = vadd.f32 0.0, %v617
      %v619 = vpop.f32.mrb[0].mxu0
      %v620 = vadd.f32 0.0, %v619
      %v621 = vpop.f32.mrb[0].mxu0
      %v622 = vadd.f32 0.0, %v621
      %623 = vmatprep.mubr.bf16.mxu0 0
      %624 = vmatmul.mubr.bf16.gmra.mrb[0].mxu0 %v521
      %v625 = vpop.f32.mrb[0].mxu0
      %v626 = vadd.f32 0.0, %v625
      %v627 = vpop.f32.mrb[0].mxu0
      %v628 = vadd.f32 0.0, %v627
      %v629 = vpop.f32.mrb[0].mxu0
      %v630 = vadd.f32 0.0, %v629
      %v631 = vpop.f32.mrb[0].mxu0
      %v632 = vadd.f32 0.0, %v631
      %633 = vmatprep.mubr.bf16.mxu0 0
      %634 = vmatmul.mubr.bf16.gmra.mrb[0].mxu0 %v522
      %v635 = vpop.f32.mrb[0].mxu0
      %v636 = vadd.f32 0.0, %v635
      %v637 = vpop.f32.mrb[0].mxu0
      %v638 = vadd.f32 0.0, %v637
      %v639 = vpop.f32.mrb[0].mxu0
      %v640 = vadd.f32 0.0, %v639
      %v641 = vpop.f32.mrb[0].mxu0
      %v642 = vadd.f32 0.0, %v641
      %643 = vdwg.mxu0
      %v644 = vmul.f32 %v405, %v405
      %v645 = vmul.f32 %v409, %v409
      %v646 = vmul.f32 %v415, %v415
      %v647 = vmul.f32 %v419, %v419
      %v648 = vmul.f32 %v425, %v425
      %v649 = vmul.f32 %v429, %v429
      %v650 = vmul.f32 %v435, %v435
      %v651 = vmul.f32 %v439, %v439
      %v652 = vmul.f32 %v445, %v445
      %v653 = vmul.f32 %v449, %v449
      %v654 = vmul.f32 %v455, %v455
      %v655 = vmul.f32 %v459, %v459
      %v656 = vmul.f32 %v465, %v465
      %v657 = vmul.f32 %v469, %v469
      %v658 = vmul.f32 %v475, %v475
      %v659 = vmul.f32 %v479, %v479
      %v660 = vmul.f32 %v407, %v407
      %v661 = vmul.f32 %v411, %v411
      %v662 = vmul.f32 %v417, %v417
      %v663 = vmul.f32 %v421, %v421
      %v664 = vmul.f32 %v427, %v427
      %v665 = vmul.f32 %v431, %v431
      %v666 = vmul.f32 %v437, %v437
      %v667 = vmul.f32 %v441, %v441
      %v668 = vmul.f32 %v447, %v447
      %v669 = vmul.f32 %v451, %v451
      %v670 = vmul.f32 %v457, %v457
      %v671 = vmul.f32 %v461, %v461
      %v672 = vmul.f32 %v467, %v467
      %v673 = vmul.f32 %v471, %v471
      %v674 = vmul.f32 %v477, %v477
      %v675 = vmul.f32 %v481, %v481
      %v676 = vadd.f32 %v644, %v660
      %v677 = vadd.f32 %v645, %v661
      %v678 = vadd.f32 %v646, %v662
      %v679 = vadd.f32 %v647, %v663
      %v680 = vadd.f32 %v648, %v664
      %v681 = vadd.f32 %v649, %v665
      %v682 = vadd.f32 %v650, %v666
      %v683 = vadd.f32 %v651, %v667
      %v684 = vadd.f32 %v652, %v668
      %v685 = vadd.f32 %v653, %v669
      %v686 = vadd.f32 %v654, %v670
      %v687 = vadd.f32 %v655, %v671
      %v688 = vadd.f32 %v656, %v672
      %v689 = vadd.f32 %v657, %v673
      %v690 = vadd.f32 %v658, %v674
      %v691 = vadd.f32 %v659, %v675
      %v692 = vmax.f32 %v676, 1e-07
      %v693 = vmax.f32 %v677, 1e-07
      %v694 = vmax.f32 %v678, 1e-07
      %v695 = vmax.f32 %v679, 1e-07
      %v696 = vmax.f32 %v680, 1e-07
      %v697 = vmax.f32 %v681, 1e-07
      %v698 = vmax.f32 %v682, 1e-07
      %v699 = vmax.f32 %v683, 1e-07
      %v700 = vmax.f32 %v684, 1e-07
      %v701 = vmax.f32 %v685, 1e-07
      %v702 = vmax.f32 %v686, 1e-07
      %v703 = vmax.f32 %v687, 1e-07
      %v704 = vmax.f32 %v688, 1e-07
      %v705 = vmax.f32 %v689, 1e-07
      %v706 = vmax.f32 %v690, 1e-07
      %v707 = vmax.f32 %v691, 1e-07
      %v708 = vmul.f32 %v566, %v566
      %v709 = vmul.f32 %v570, %v570
      %v710 = vmul.f32 %v576, %v576
      %v711 = vmul.f32 %v580, %v580
      %v712 = vmul.f32 %v586, %v586
      %v713 = vmul.f32 %v590, %v590
      %v714 = vmul.f32 %v596, %v596
      %v715 = vmul.f32 %v600, %v600
      %v716 = vmul.f32 %v606, %v606
      %v717 = vmul.f32 %v610, %v610
      %v718 = vmul.f32 %v616, %v616
      %v719 = vmul.f32 %v620, %v620
      %v720 = vmul.f32 %v626, %v626
      %v721 = vmul.f32 %v630, %v630
      %v722 = vmul.f32 %v636, %v636
      %v723 = vmul.f32 %v640, %v640
      %v724 = vmul.f32 %v568, %v568
      %v725 = vmul.f32 %v572, %v572
      %v726 = vmul.f32 %v578, %v578
      %v727 = vmul.f32 %v582, %v582
      %v728 = vmul.f32 %v588, %v588
      %v729 = vmul.f32 %v592, %v592
      %v730 = vmul.f32 %v598, %v598
      %v731 = vmul.f32 %v602, %v602
      %v732 = vmul.f32 %v608, %v608
      %v733 = vmul.f32 %v612, %v612
      %v734 = vmul.f32 %v618, %v618
      %v735 = vmul.f32 %v622, %v622
      %v736 = vmul.f32 %v628, %v628
      %v737 = vmul.f32 %v632, %v632
      %v738 = vmul.f32 %v638, %v638
      %v739 = vmul.f32 %v642, %v642
      %v740 = vadd.f32 %v708, %v724
      %v741 = vadd.f32 %v709, %v725
      %v742 = vadd.f32 %v710, %v726
      %v743 = vadd.f32 %v711, %v727
      %v744 = vadd.f32 %v712, %v728
      %v745 = vadd.f32 %v713, %v729
      %v746 = vadd.f32 %v714, %v730
      %v747 = vadd.f32 %v715, %v731
      %v748 = vadd.f32 %v716, %v732
      %v749 = vadd.f32 %v717, %v733
      %v750 = vadd.f32 %v718, %v734
      %v751 = vadd.f32 %v719, %v735
      %v752 = vadd.f32 %v720, %v736
      %v753 = vadd.f32 %v721, %v737
      %v754 = vadd.f32 %v722, %v738
      %v755 = vadd.f32 %v723, %v739
      %v756 = vmax.f32 %v740, 1e-07
      %v757 = vmax.f32 %v741, 1e-07
      %v758 = vmax.f32 %v742, 1e-07
      %v759 = vmax.f32 %v743, 1e-07
      %v760 = vmax.f32 %v744, 1e-07
      %v761 = vmax.f32 %v745, 1e-07
      %v762 = vmax.f32 %v746, 1e-07
      %v763 = vmax.f32 %v747, 1e-07
      %v764 = vmax.f32 %v748, 1e-07
      %v765 = vmax.f32 %v749, 1e-07
      %v766 = vmax.f32 %v750, 1e-07
      %v767 = vmax.f32 %v751, 1e-07
      %v768 = vmax.f32 %v752, 1e-07
      %v769 = vmax.f32 %v753, 1e-07
      %v770 = vmax.f32 %v754, 1e-07
      %v771 = vmax.f32 %v755, 1e-07
      %v772 = vadd.f32 %v692, %v756
      %v773 = vadd.f32 %v693, %v757
      %v774 = vadd.f32 %v694, %v758
      %v775 = vadd.f32 %v695, %v759
      %v776 = vadd.f32 %v696, %v760
      %v777 = vadd.f32 %v697, %v761
      %v778 = vadd.f32 %v698, %v762
      %v779 = vadd.f32 %v699, %v763
      %v780 = vadd.f32 %v700, %v764
      %v781 = vadd.f32 %v701, %v765
      %v782 = vadd.f32 %v702, %v766
      %v783 = vadd.f32 %v703, %v767
      %v784 = vadd.f32 %v704, %v768
      %v785 = vadd.f32 %v705, %v769
      %v786 = vadd.f32 %v706, %v770
      %v787 = vadd.f32 %v707, %v771
      %v788 = vmul.f32 %v692, %v756
      %v789 = vmul.f32 %v693, %v757
      %v790 = vmul.f32 %v694, %v758
      %v791 = vmul.f32 %v695, %v759
      %v792 = vmul.f32 %v696, %v760
      %v793 = vmul.f32 %v697, %v761
      %v794 = vmul.f32 %v698, %v762
      %v795 = vmul.f32 %v699, %v763
      %v796 = vmul.f32 %v700, %v764
      %v797 = vmul.f32 %v701, %v765
      %v798 = vmul.f32 %v702, %v766
      %v799 = vmul.f32 %v703, %v767
      %v800 = vmul.f32 %v704, %v768
      %v801 = vmul.f32 %v705, %v769
      %v802 = vmul.f32 %v706, %v770
      %v803 = vmul.f32 %v707, %v771
      %v804 = vrsqrt.pop %v788
      %v805 = vmul.f32 %v788, %v804
      %vm806 = vcmp.eq.f32.partialorder %v788, inf
      %v807 = vsel %vm806, %v788, %v805
      %vm808 = vcmp.eq.f32.partialorder %v788, 0.0
      %v809 = vand.u32 %v788, 2147483648
      %v810 = vsel %vm808, %v809, %v807
      %v811 = vrsqrt.pop %v789
      %v812 = vmul.f32 %v789, %v811
      %vm813 = vcmp.eq.f32.partialorder %v789, inf
      %v814 = vsel %vm813, %v789, %v812
      %vm815 = vcmp.eq.f32.partialorder %v789, 0.0
      %v816 = vand.u32 %v789, 2147483648
      %v817 = vsel %vm815, %v816, %v814
      %v818 = vrsqrt.pop %v790
      %v819 = vmul.f32 %v790, %v818
      %vm820 = vcmp.eq.f32.partialorder %v790, inf
      %v821 = vsel %vm820, %v790, %v819
      %vm822 = vcmp.eq.f32.partialorder %v790, 0.0
      %v823 = vand.u32 %v790, 2147483648
      %v824 = vsel %vm822, %v823, %v821
      %v825 = vrsqrt.pop %v791
      %v826 = vmul.f32 %v791, %v825
      %vm827 = vcmp.eq.f32.partialorder %v791, inf
      %v828 = vsel %vm827, %v791, %v826
      %vm829 = vcmp.eq.f32.partialorder %v791, 0.0
      %v830 = vand.u32 %v791, 2147483648
      %v831 = vsel %vm829, %v830, %v828
      %v832 = vrsqrt.pop %v792
      %v833 = vmul.f32 %v792, %v832
      %vm834 = vcmp.eq.f32.partialorder %v792, inf
      %v835 = vsel %vm834, %v792, %v833
      %vm836 = vcmp.eq.f32.partialorder %v792, 0.0
      %v837 = vand.u32 %v792, 2147483648
      %v838 = vsel %vm836, %v837, %v835
      %v839 = vrsqrt.pop %v793
      %v840 = vmul.f32 %v793, %v839
      %vm841 = vcmp.eq.f32.partialorder %v793, inf
      %v842 = vsel %vm841, %v793, %v840
      %vm843 = vcmp.eq.f32.partialorder %v793, 0.0
      %v844 = vand.u32 %v793, 2147483648
      %v845 = vsel %vm843, %v844, %v842
      %v846 = vrsqrt.pop %v794
      %v847 = vmul.f32 %v794, %v846
      %vm848 = vcmp.eq.f32.partialorder %v794, inf
      %v849 = vsel %vm848, %v794, %v847
      %vm850 = vcmp.eq.f32.partialorder %v794, 0.0
      %v851 = vand.u32 %v794, 2147483648
      %v852 = vsel %vm850, %v851, %v849
      %v853 = vrsqrt.pop %v795
      %v854 = vmul.f32 %v795, %v853
      %vm855 = vcmp.eq.f32.partialorder %v795, inf
      %v856 = vsel %vm855, %v795, %v854
      %vm857 = vcmp.eq.f32.partialorder %v795, 0.0
      %v858 = vand.u32 %v795, 2147483648
      %v859 = vsel %vm857, %v858, %v856
      %v860 = vrsqrt.pop %v796
      %v861 = vmul.f32 %v796, %v860
      %vm862 = vcmp.eq.f32.partialorder %v796, inf
      %v863 = vsel %vm862, %v796, %v861
      %vm864 = vcmp.eq.f32.partialorder %v796, 0.0
      %v865 = vand.u32 %v796, 2147483648
      %v866 = vsel %vm864, %v865, %v863
      %v867 = vrsqrt.pop %v797
      %v868 = vmul.f32 %v797, %v867
      %vm869 = vcmp.eq.f32.partialorder %v797, inf
      %v870 = vsel %vm869, %v797, %v868
      %vm871 = vcmp.eq.f32.partialorder %v797, 0.0
      %v872 = vand.u32 %v797, 2147483648
      %v873 = vsel %vm871, %v872, %v870
      %v874 = vrsqrt.pop %v798
      %v875 = vmul.f32 %v798, %v874
      %vm876 = vcmp.eq.f32.partialorder %v798, inf
      %v877 = vsel %vm876, %v798, %v875
      %vm878 = vcmp.eq.f32.partialorder %v798, 0.0
      %v879 = vand.u32 %v798, 2147483648
      %v880 = vsel %vm878, %v879, %v877
      %v881 = vrsqrt.pop %v799
      %v882 = vmul.f32 %v799, %v881
      %vm883 = vcmp.eq.f32.partialorder %v799, inf
      %v884 = vsel %vm883, %v799, %v882
      %vm885 = vcmp.eq.f32.partialorder %v799, 0.0
      %v886 = vand.u32 %v799, 2147483648
      %v887 = vsel %vm885, %v886, %v884
      %v888 = vrsqrt.pop %v800
      %v889 = vmul.f32 %v800, %v888
      %vm890 = vcmp.eq.f32.partialorder %v800, inf
      %v891 = vsel %vm890, %v800, %v889
      %vm892 = vcmp.eq.f32.partialorder %v800, 0.0
      %v893 = vand.u32 %v800, 2147483648
      %v894 = vsel %vm892, %v893, %v891
      %v895 = vrsqrt.pop %v801
      %v896 = vmul.f32 %v801, %v895
      %vm897 = vcmp.eq.f32.partialorder %v801, inf
      %v898 = vsel %vm897, %v801, %v896
      %vm899 = vcmp.eq.f32.partialorder %v801, 0.0
      %v900 = vand.u32 %v801, 2147483648
      %v901 = vsel %vm899, %v900, %v898
      %v902 = vrsqrt.pop %v802
      %v903 = vmul.f32 %v802, %v902
      %vm904 = vcmp.eq.f32.partialorder %v802, inf
      %v905 = vsel %vm904, %v802, %v903
      %vm906 = vcmp.eq.f32.partialorder %v802, 0.0
      %v907 = vand.u32 %v802, 2147483648
      %v908 = vsel %vm906, %v907, %v905
      %v909 = vrsqrt.pop %v803
      %v910 = vmul.f32 %v803, %v909
      %vm911 = vcmp.eq.f32.partialorder %v803, inf
      %v912 = vsel %vm911, %v803, %v910
      %vm913 = vcmp.eq.f32.partialorder %v803, 0.0
      %v914 = vand.u32 %v803, 2147483648
      %v915 = vsel %vm913, %v914, %v912
      %v916 = vmul.f32 %v810, 2.0
      %v917 = vmul.f32 %v817, 2.0
      %v918 = vmul.f32 %v824, 2.0
      %v919 = vmul.f32 %v831, 2.0
      %v920 = vmul.f32 %v838, 2.0
      %v921 = vmul.f32 %v845, 2.0
      %v922 = vmul.f32 %v852, 2.0
      %v923 = vmul.f32 %v859, 2.0
      %v924 = vmul.f32 %v866, 2.0
      %v925 = vmul.f32 %v873, 2.0
      %v926 = vmul.f32 %v880, 2.0
      %v927 = vmul.f32 %v887, 2.0
      %v928 = vmul.f32 %v894, 2.0
      %v929 = vmul.f32 %v901, 2.0
      %v930 = vmul.f32 %v908, 2.0
      %v931 = vmul.f32 %v915, 2.0
      %v932 = vsub.f32 %v772, %v916
      %v933 = vsub.f32 %v773, %v917
      %v934 = vsub.f32 %v774, %v918
      %v935 = vsub.f32 %v775, %v919
      %v936 = vsub.f32 %v776, %v920
      %v937 = vsub.f32 %v777, %v921
      %v938 = vsub.f32 %v778, %v922
      %v939 = vsub.f32 %v779, %v923
      %v940 = vsub.f32 %v780, %v924
      %v941 = vsub.f32 %v781, %v925
      %v942 = vsub.f32 %v782, %v926
      %v943 = vsub.f32 %v783, %v927
      %v944 = vsub.f32 %v784, %v928
      %v945 = vsub.f32 %v785, %v929
      %v946 = vsub.f32 %v786, %v930
      %v947 = vsub.f32 %v787, %v931
      %v948 = vmax.f32 %v932, 0.0
      %v949 = vmax.f32 %v933, 0.0
      %v950 = vmax.f32 %v934, 0.0
      %v951 = vmax.f32 %v935, 0.0
      %v952 = vmax.f32 %v936, 0.0
      %v953 = vmax.f32 %v937, 0.0
      %v954 = vmax.f32 %v938, 0.0
      %v955 = vmax.f32 %v939, 0.0
      %v956 = vmax.f32 %v940, 0.0
      %v957 = vmax.f32 %v941, 0.0
      %v958 = vmax.f32 %v942, 0.0
      %v959 = vmax.f32 %v943, 0.0
      %v960 = vmax.f32 %v944, 0.0
      %v961 = vmax.f32 %v945, 0.0
      %v962 = vmax.f32 %v946, 0.0
      %v963 = vmax.f32 %v947, 0.0
      %v964 = vlog2.pop %v692
      %v965 = vmul.f32 %v964, 0.6931472
      %v966 = vlog2.pop %v693
      %v967 = vmul.f32 %v966, 0.6931472
      %v968 = vlog2.pop %v694
      %v969 = vmul.f32 %v968, 0.6931472
      %v970 = vlog2.pop %v695
      %v971 = vmul.f32 %v970, 0.6931472
      %v972 = vlog2.pop %v696
      %v973 = vmul.f32 %v972, 0.6931472
      %v974 = vlog2.pop %v697
      %v975 = vmul.f32 %v974, 0.6931472
      %v976 = vlog2.pop %v698
      %v977 = vmul.f32 %v976, 0.6931472
      %v978 = vlog2.pop %v699
      %v979 = vmul.f32 %v978, 0.6931472
      %v980 = vlog2.pop %v700
      %v981 = vmul.f32 %v980, 0.6931472
      %v982 = vlog2.pop %v701
      %v983 = vmul.f32 %v982, 0.6931472
      %v984 = vlog2.pop %v702
      %v985 = vmul.f32 %v984, 0.6931472
      %v986 = vlog2.pop %v703
      %v987 = vmul.f32 %v986, 0.6931472
      %v988 = vlog2.pop %v704
      %v989 = vmul.f32 %v988, 0.6931472
      %v990 = vlog2.pop %v705
      %v991 = vmul.f32 %v990, 0.6931472
      %v992 = vlog2.pop %v706
      %v993 = vmul.f32 %v992, 0.6931472
      %v994 = vlog2.pop %v707
      %v995 = vmul.f32 %v994, 0.6931472
      %v996 = vlog2.pop %v756
      %v997 = vmul.f32 %v996, 0.6931472
      %v998 = vlog2.pop %v757
      %v999 = vmul.f32 %v998, 0.6931472
      %v1000 = vlog2.pop %v758
      %v1001 = vmul.f32 %v1000, 0.6931472
      %v1002 = vlog2.pop %v759
      %v1003 = vmul.f32 %v1002, 0.6931472
      %v1004 = vlog2.pop %v760
      %v1005 = vmul.f32 %v1004, 0.6931472
      %v1006 = vlog2.pop %v761
      %v1007 = vmul.f32 %v1006, 0.6931472
      %v1008 = vlog2.pop %v762
      %v1009 = vmul.f32 %v1008, 0.6931472
      %v1010 = vlog2.pop %v763
      %v1011 = vmul.f32 %v1010, 0.6931472
      %v1012 = vlog2.pop %v764
      %v1013 = vmul.f32 %v1012, 0.6931472
      %v1014 = vlog2.pop %v765
      %v1015 = vmul.f32 %v1014, 0.6931472
      %v1016 = vlog2.pop %v766
      %v1017 = vmul.f32 %v1016, 0.6931472
      %v1018 = vlog2.pop %v767
      %v1019 = vmul.f32 %v1018, 0.6931472
      %v1020 = vlog2.pop %v768
      %v1021 = vmul.f32 %v1020, 0.6931472
      %v1022 = vlog2.pop %v769
      %v1023 = vmul.f32 %v1022, 0.6931472
      %v1024 = vlog2.pop %v770
      %v1025 = vmul.f32 %v1024, 0.6931472
      %v1026 = vlog2.pop %v771
      %v1027 = vmul.f32 %v1026, 0.6931472
      %v1028 = vsub.f32 %v965, %v997
      %v1029 = vsub.f32 %v967, %v999
      %v1030 = vsub.f32 %v969, %v1001
      %v1031 = vsub.f32 %v971, %v1003
      %v1032 = vsub.f32 %v973, %v1005
      %v1033 = vsub.f32 %v975, %v1007
      %v1034 = vsub.f32 %v977, %v1009
      %v1035 = vsub.f32 %v979, %v1011
      %v1036 = vsub.f32 %v981, %v1013
      %v1037 = vsub.f32 %v983, %v1015
      %v1038 = vsub.f32 %v985, %v1017
      %v1039 = vsub.f32 %v987, %v1019
      %v1040 = vsub.f32 %v989, %v1021
      %v1041 = vsub.f32 %v991, %v1023
      %v1042 = vsub.f32 %v993, %v1025
      %v1043 = vsub.f32 %v995, %v1027
      %v1044 = vand.u32 2147483647, %v1028
      %v1045 = vand.u32 2147483647, %v1029
      %v1046 = vand.u32 2147483647, %v1030
      %v1047 = vand.u32 2147483647, %v1031
      %v1048 = vand.u32 2147483647, %v1032
      %v1049 = vand.u32 2147483647, %v1033
      %v1050 = vand.u32 2147483647, %v1034
      %v1051 = vand.u32 2147483647, %v1035
      %v1052 = vand.u32 2147483647, %v1036
      %v1053 = vand.u32 2147483647, %v1037
      %v1054 = vand.u32 2147483647, %v1038
      %v1055 = vand.u32 2147483647, %v1039
      %v1056 = vand.u32 2147483647, %v1040
      %v1057 = vand.u32 2147483647, %v1041
      %v1058 = vand.u32 2147483647, %v1042
      %v1059 = vand.u32 2147483647, %v1043
      %v1060 = vmul.f32 %v1044, 0.5
      %v1061 = vmul.f32 %v1045, 0.5
      %v1062 = vmul.f32 %v1046, 0.5
      %v1063 = vmul.f32 %v1047, 0.5
      %v1064 = vmul.f32 %v1048, 0.5
      %v1065 = vmul.f32 %v1049, 0.5
      %v1066 = vmul.f32 %v1050, 0.5
      %v1067 = vmul.f32 %v1051, 0.5
      %v1068 = vmul.f32 %v1052, 0.5
      %v1069 = vmul.f32 %v1053, 0.5
      %v1070 = vmul.f32 %v1054, 0.5
      %v1071 = vmul.f32 %v1055, 0.5
      %v1072 = vmul.f32 %v1056, 0.5
      %v1073 = vmul.f32 %v1057, 0.5
      %v1074 = vmul.f32 %v1058, 0.5
      %v1075 = vmul.f32 %v1059, 0.5
      %v1076 = vadd.f32 %v948, %v949
      %v1077 = vadd.f32 %v1076, %v950
      %v1078 = vadd.f32 %v1077, %v951
      %v1079 = vadd.f32 %v1078, %v952
      %v1080 = vadd.f32 %v1079, %v953
      %v1081 = vadd.f32 %v1080, %v954
      %v1082 = vadd.f32 %v1081, %v955
      %v1083 = vadd.f32 %v1082, %v956
      %v1084 = vadd.f32 %v1083, %v957
      %v1085 = vadd.f32 %v1084, %v958
      %v1086 = vadd.f32 %v1085, %v959
      %v1087 = vadd.f32 %v1086, %v960
      %v1088 = vadd.f32 %v1087, %v961
      %v1089 = vadd.f32 %v1088, %v962
      %v1090 = vadd.f32 %v1089, %v963
      %v1091 = vrot.slane %v1090, 4
      %v1092 = vadd.f32 %v1090, %v1091
      %v1093 = vrot.slane %v1092, 2
      %v1094 = vadd.f32 %v1092, %v1093
      %v1095 = vrot.slane %v1094, 1
      %v1096 = vadd.f32 %v1094, %v1095
      %v1097 = vadd.f32 %v756, %v757
      %v1098 = vadd.f32 %v1097, %v758
      %v1099 = vadd.f32 %v1098, %v759
      %v1100 = vadd.f32 %v1099, %v760
      %v1101 = vadd.f32 %v1100, %v761
      %v1102 = vadd.f32 %v1101, %v762
      %v1103 = vadd.f32 %v1102, %v763
      %v1104 = vadd.f32 %v1103, %v764
      %v1105 = vadd.f32 %v1104, %v765
      %v1106 = vadd.f32 %v1105, %v766
      %v1107 = vadd.f32 %v1106, %v767
      %v1108 = vadd.f32 %v1107, %v768
      %v1109 = vadd.f32 %v1108, %v769
      %v1110 = vadd.f32 %v1109, %v770
      %v1111 = vadd.f32 %v1110, %v771
      %v1112 = vrot.slane %v1111, 4
      %v1113 = vadd.f32 %v1111, %v1112
      %v1114 = vrot.slane %v1113, 2
      %v1115 = vadd.f32 %v1113, %v1114
      %v1116 = vrot.slane %v1115, 1
      %v1117 = vadd.f32 %v1115, %v1116
      %v1118 = vadd.f32 %v1060, %v1061
      %v1119 = vadd.f32 %v1118, %v1062
      %v1120 = vadd.f32 %v1119, %v1063
      %v1121 = vadd.f32 %v1120, %v1064
      %v1122 = vadd.f32 %v1121, %v1065
      %v1123 = vadd.f32 %v1122, %v1066
      %v1124 = vadd.f32 %v1123, %v1067
      %v1125 = vadd.f32 %v1124, %v1068
      %v1126 = vadd.f32 %v1125, %v1069
      %v1127 = vadd.f32 %v1126, %v1070
      %v1128 = vadd.f32 %v1127, %v1071
      %v1129 = vadd.f32 %v1128, %v1072
      %v1130 = vadd.f32 %v1129, %v1073
      %v1131 = vadd.f32 %v1130, %v1074
      %v1132 = vadd.f32 %v1131, %v1075
      %v1133 = vrot.slane %v1132, 4
      %v1134 = vadd.f32 %v1132, %v1133
      %v1135 = vrot.slane %v1134, 2
      %v1136 = vadd.f32 %v1134, %v1135
      %v1137 = vrot.slane %v1136, 1
      %v1138 = vadd.f32 %v1136, %v1137
      %1139 = vst [vmem:[%s192] sm:$0x1] %v1096
      %1140 = vst [vmem:[%s192 + $0x1] sm:$0x1] %v1117
      %1141 = vst [vmem:[%s192 + $0x2] sm:$0x1] %v1138
      %p1142 = scmp.lt.s32.totalorder %s14, 2
      %s1143 = scalar_select %p1142, %s14, 2
      %s1144 = smul.addr %s1143, 4
      %s1145 = scalar_lea.vmem %s3, %s1144
      // Predicated region
      $region33: #{multi_resolution_stft_loss.4} parent=31 // pred_check
        %p1146 = pneg %p105
      $region34: #{multi_resolution_stft_loss.4} parent=31 // pred_check_branch
        %1148 = sbr.rel (%p1146) target = $region36
      $region35: #{multi_resolution_stft_loss.4} parent=31 // pred_region
        _
      $region36: #{multi_resolution_stft_loss.4} parent=31 // pred_fallthru
        _
    $region32: #{multi_resolution_stft_loss.4} parent=5 // pred_fallthru
      _
    %p1149 = scmp.le.s32.totalorder 2, %s9
    // Predicated region
    $region37: #{multi_resolution_stft_loss.4} parent=5 // pred_check
      %p1150 = pneg %p1149
    $region38: #{multi_resolution_stft_loss.4} parent=5 // pred_check_branch
      %1152 = sbr.rel (%p1150) target = $region40
    $region39: #{multi_resolution_stft_loss.4} parent=5 // pred_region
      %s1153 = ssub.s32 %s9, 2
      // Predicated region
      $region41: #{multi_resolution_stft_loss.4} parent=39 // pred_check
        %p1154 = pneg %p111
      $region42: #{multi_resolution_stft_loss.4} parent=39 // pred_check_branch
        %1156 = sbr.rel (%p1154) target = $region44
      $region43: #{multi_resolution_stft_loss.4} parent=39 // pred_region
        %p1157 = scmp.lt.s32.totalorder %s15, 2
        %s1158 = scalar_select %p1157, %s15, 2
        %s1159 = smul.addr %s1158, 4
        %s1160 = scalar_lea.vmem %s3, %s1159
      $region44: #{multi_resolution_stft_loss.4} parent=39 // pred_fallthru
        _
    $region40: #{multi_resolution_stft_loss.4} parent=5 // pred_fallthru
      _
  $region6: #{multi_resolution_stft_loss.4} parent=0 // loop_footer
    %s13 = sadd.s32 1, %s9
  $region7: #{multi_resolution_stft_loss.4} parent=0 // loop_footer_branch
    %8 = sbr.rel target = $region3
  $region8: #{multi_resolution_stft_loss.4} parent=0 // loop_exit
    _

// kernel: multi_resolution_stft_loss.3
$region0: #{multi_resolution_stft_loss.3}
  #allocation0 [shape = 'u32[]', space=smem, size = 0x4, offset = 0x4, fixed_abs, tag = 'smem constant byte address 0x4 - core index']
  #allocation1 [shape = 'u32[144,128]{1,0:T(1,128)}', space=vmem, size = 0x12000, scoped, tag = 'internal scratch']
  %s0 = inlined_call_operand.vmem [shape: bf16[768,64], index: 0, kind: input, shape index: {}]
  %s1 = inlined_call_operand.vmem [shape: bf16[768,64], index: 1, kind: input, shape index: {}]
  %s2 = inlined_call_operand.vmem [shape: bf16[64,256], index: 2, kind: input, shape index: {}]
  %s3 = inlined_call_operand.vmem [shape: f32[3,3,128], index: 3, kind: output, shape index: {}]
  %s4 = sld [smem:[#allocation0]]
  $region52: #{multi_resolution_stft_loss.3} parent=0
    _
  %s6 = ssub.s32 1, %s4
  %s7 = scalar_select 0, %s6, %s4
  loop: start=0, step=1, limit=5
  $region2: #{multi_resolution_stft_loss.3} parent=0 // loop_pre_header
    _
  $region3: #{multi_resolution_stft_loss.3} parent=0 // loop_header
    %s9 = sphi 0, %s13
    %p10 = scmp.ge.s32.totalorder %s9, 5
    %s19 = sphi 0, %s21
    %s22 = sphi 0, %s19
    %s23 = sphi 0, %s22
    %s39 = sphi 0, %s23
    %s45 = sphi 0, %s47
    %s48 = sphi 0, %s45
    %s49 = sphi 0, %s48
    %s65 = sphi 0, %s49
    %s69 = sphi 0, %s69
    %s71 = sphi 0, %s69
    %s72 = sphi 0, %s71
    %s86 = sphi 0, %s72
    %s92 = sphi 0, %s94
    %s95 = sphi 0, %s92
    %s96 = sphi 0, %s95
    %s112 = sphi 0, %s96
  $region4: #{multi_resolution_stft_loss.3} parent=0 // loop_header_branch
    %12 = sbr.rel (%p10) target = $region8
  $region5: #{multi_resolution_stft_loss.3} parent=0 // loop_body
    %s14 = ssub.s32 %s9, 1
    %s15 = ssub.s32 %s9, 2
    %s16 = sadd.s32 %s9, 1
    %s17 = ssub.s32 %s9, %s16
    %p18 = scmp.eq.s32.totalorder %s17, 0
    %s20 = sadd.s32 %s19, 1
    %s21 = scalar_select %p18, %s19, %s20
    %p24 = pneg %p18
    %p25 = scmp.eq.s32.totalorder %s9, 2
    %p26 = por %p24, %p25
    %p27 = scmp.ne.s32.totalorder %s19, %s22
    %p28 = scmp.eq.s32.totalorder %s9, 0
    %p29 = por %p27, %p28
    %p30 = scmp.ne.s32.totalorder %s19, %s22
    %p31 = scmp.eq.s32.totalorder %s14, 2
    %p32 = por %p30, %p31
    %p33 = scmp.ne.s32.totalorder %s22, %s23
    %p34 = scmp.eq.s32.totalorder %s14, 0
    %p35 = por %p33, %p34
    %p36 = scmp.ne.s32.totalorder %s22, %s23
    %p37 = scmp.eq.s32.totalorder %s15, 2
    %p38 = por %p36, %p37
    %p40 = scmp.ne.s32.totalorder %s23, %s39
    %p41 = scmp.eq.s32.totalorder %s15, 0
    %p42 = por %p40, %p41
    %s43 = ssub.s32 %s9, %s16
    %p44 = scmp.eq.s32.totalorder %s43, 0
    %s46 = sadd.s32 %s45, 1
    %s47 = scalar_select %p44, %s45, %s46
    %p50 = pneg %p44
    %p51 = scmp.eq.s32.totalorder %s9, 2
    %p52 = por %p50, %p51
    %p53 = scmp.ne.s32.totalorder %s45, %s48
    %p54 = scmp.eq.s32.totalorder %s9, 0
    %p55 = por %p53, %p54
    %p56 = scmp.ne.s32.totalorder %s45, %s48
    %p57 = scmp.eq.s32.totalorder %s14, 2
    %p58 = por %p56, %p57
    %p59 = scmp.ne.s32.totalorder %s48, %s49
    %p60 = scmp.eq.s32.totalorder %s14, 0
    %p61 = por %p59, %p60
    %p62 = scmp.ne.s32.totalorder %s48, %s49
    %p63 = scmp.eq.s32.totalorder %s15, 2
    %p64 = por %p62, %p63
    %p66 = scmp.ne.s32.totalorder %s49, %s65
    %p67 = scmp.eq.s32.totalorder %s15, 0
    %p68 = por %p66, %p67
    %s70 = sadd.s32 %s69, 1
    %p73 = scmp.eq.s32.totalorder %s9, 2
    %p74 = scmp.ne.s32.totalorder %s69, %s71
    %p75 = scmp.eq.s32.totalorder %s9, 0
    %p76 = por %p74, %p75
    %p77 = scmp.ne.s32.totalorder %s69, %s71
    %p78 = scmp.eq.s32.totalorder %s14, 2
    %p79 = por %p77, %p78
    %p80 = scmp.ne.s32.totalorder %s71, %s72
    %p81 = scmp.eq.s32.totalorder %s14, 0
    %p82 = por %p80, %p81
    %p83 = scmp.ne.s32.totalorder %s71, %s72
    %p84 = scmp.eq.s32.totalorder %s15, 2
    %p85 = por %p83, %p84
    %p87 = scmp.ne.s32.totalorder %s72, %s86
    %p88 = scmp.eq.s32.totalorder %s15, 0
    %p89 = por %p87, %p88
    %s90 = ssub.s32 %s9, %s16
    %p91 = scmp.eq.s32.totalorder %s90, 0
    %s93 = sadd.s32 %s92, 1
    %s94 = scalar_select %p91, %s92, %s93
    %p97 = pneg %p91
    %p98 = scmp.eq.s32.totalorder %s9, 2
    %p99 = por %p97, %p98
    %p100 = scmp.ne.s32.totalorder %s92, %s95
    %p101 = scmp.eq.s32.totalorder %s9, 0
    %p102 = por %p100, %p101
    %p103 = scmp.ne.s32.totalorder %s92, %s95
    %p104 = scmp.eq.s32.totalorder %s14, 2
    %p105 = por %p103, %p104
    %p106 = scmp.ne.s32.totalorder %s95, %s96
    %p107 = scmp.eq.s32.totalorder %s14, 0
    %p108 = por %p106, %p107
    %p109 = scmp.ne.s32.totalorder %s95, %s96
    %p110 = scmp.eq.s32.totalorder %s15, 2
    %p111 = por %p109, %p110
    %p113 = scmp.ne.s32.totalorder %s96, %s112
    %p114 = scmp.eq.s32.totalorder %s15, 0
    %p115 = por %p113, %p114
    %p116 = scmp.le.s32.totalorder 1, %s9
    %p117 = scmp.lt.s32.totalorder %s9, 4
    %p118 = pnand %p116, %p117
    %p119 = pneg %p118
    // Predicated region
    $region9: #{multi_resolution_stft_loss.3} parent=5 // pred_check
      _
    $region10: #{multi_resolution_stft_loss.3} parent=5 // pred_check_branch
      %121 = sbr.rel (%p118) target = $region12
    $region11: #{multi_resolution_stft_loss.3} parent=5 // pred_region
      %s122 = ssub.s32 %s9, 1
      // Predicated region
      $region13: #{multi_resolution_stft_loss.3} parent=11 // pred_check
        %p123 = pneg %p82
      $region14: #{multi_resolution_stft_loss.3} parent=11 // pred_check_branch
        %125 = sbr.rel (%p123) target = $region16
      $region15: #{multi_resolution_stft_loss.3} parent=11 // pred_region
        _
      $region16: #{multi_resolution_stft_loss.3} parent=11 // pred_fallthru
        _
    $region12: #{multi_resolution_stft_loss.3} parent=5 // pred_fallthru
      _
    %p126 = scmp.lt.s32.totalorder %s9, 3
    // Predicated region
    $region17: #{multi_resolution_stft_loss.3} parent=5 // pred_check
      %p127 = pneg %p126
    $region18: #{multi_resolution_stft_loss.3} parent=5 // pred_check_branch
      %129 = sbr.rel (%p127) target = $region20
    $region19: #{multi_resolution_stft_loss.3} parent=5 // pred_region
      // Predicated region
      $region21: #{multi_resolution_stft_loss.3} parent=19 // pred_check
        %p130 = pneg %p29
      $region22: #{multi_resolution_stft_loss.3} parent=19 // pred_check_branch
        %132 = sbr.rel (%p130) target = $region24
      $region23: #{multi_resolution_stft_loss.3} parent=19 // pred_region
        %s133 = smul.u32 32, %s9
        %p134 = scmp.lt.s32.totalorder %s133, 95
        %s135 = scalar_select %p134, %s133, 95
        %s136 = smul.addr %s135, 4
        %s137 = scalar_lea.vmem %s0, %s136
        %s138 = smul.u32 32, %s9
      $region24: #{multi_resolution_stft_loss.3} parent=19 // pred_fallthru
        _
      // Predicated region
      $region25: #{multi_resolution_stft_loss.3} parent=19 // pred_check
        %p139 = pneg %p55
      $region26: #{multi_resolution_stft_loss.3} parent=19 // pred_check_branch
        %141 = sbr.rel (%p139) target = $region28
      $region27: #{multi_resolution_stft_loss.3} parent=19 // pred_region
        %s142 = smul.u32 32, %s9
        %p143 = scmp.lt.s32.totalorder %s142, 95
        %s144 = scalar_select %p143, %s142, 95
        %s145 = smul.addr %s144, 4
        %s146 = scalar_lea.vmem %s1, %s145
        %s147 = smul.u32 32, %s9
      $region28: #{multi_resolution_stft_loss.3} parent=19 // pred_fallthru
        _
    $region20: #{multi_resolution_stft_loss.3} parent=5 // pred_fallthru
      _
    %p148 = scmp.le.s32.totalorder 1, %s9
    %p149 = scmp.lt.s32.totalorder %s9, 4
    %p150 = pnand %p148, %p149
    %p151 = pneg %p150
    // Predicated region
    $region29: #{multi_resolution_stft_loss.3} parent=5 // pred_check
      _
    $region30: #{multi_resolution_stft_loss.3} parent=5 // pred_check_branch
      %153 = sbr.rel (%p150) target = $region32
    $region31: #{multi_resolution_stft_loss.3} parent=5 // pred_region
      %s154 = ssub.s32 %s9, 1
      %s155 = smul.u32 32, %s14
      %p156 = scmp.lt.s32.totalorder %s155, 95
      %s157 = scalar_select %p156, %s155, 95
      %s158 = smul.addr %s157, 4
      %s159 = scalar_lea.vmem %s0, %s158
      %p160 = pneg %p35
      %p161 = pneg %p32
      %s162 = smul.u32 32, %s14
      %p163 = scmp.lt.s32.totalorder %s162, 95
      %s164 = scalar_select %p163, %s162, 95
      %s165 = smul.addr %s164, 4
      %s166 = scalar_lea.vmem %s1, %s165
      %p167 = pneg %p61
      %p168 = pneg %p58
      %p169 = pneg %p82
      %p170 = pneg %p79
      %p171 = pneg %p108
      %p172 = pneg %p105
      %p173 = scmp.lt.s32.totalorder %s14, 2
      %s174 = scalar_select %p173, %s14, 2
      %s175 = smul.addr %s174, 4
      %s176 = scalar_lea.vmem %s3, %s175
      %s177 = smul.u32 32, %s14
      %p178 = scmp.lt.s32.totalorder %s177, 95
      %s179 = scalar_select %p178, %s177, 95
      %s180 = smul.addr %s179, 4
      %s181 = scalar_lea.vmem %s0, %s180
      %s182 = smul.u32 32, %s14
      %s183 = smul.u32 32, %s14
      %p184 = scmp.lt.s32.totalorder %s183, 95
      %s185 = scalar_select %p184, %s183, 95
      %s186 = smul.addr %s185, 4
      %s187 = scalar_lea.vmem %s1, %s186
      %s188 = smul.u32 32, %s14
      %p189 = scmp.lt.s32.totalorder %s14, 2
      %s190 = scalar_select %p189, %s14, 2
      %s191 = smul.addr %s190, 4
      %s192 = scalar_lea.vmem %s3, %s191
      loop: start=0, step=1, limit=2
      $region33: #{multi_resolution_stft_loss.3} parent=31 // loop_pre_header
        _
      $region34: #{multi_resolution_stft_loss.3} parent=31 // loop_header
        %s195 = sphi 0, %s199
        %p196 = scmp.ge.s32.totalorder %s195, 2
        %v200 = vphi 0.0, %v1140
        %v201 = vphi 0.0, %v1141
        %v202 = vphi 0.0, %v1142
      $region35: #{multi_resolution_stft_loss.3} parent=31 // loop_header_branch
        %198 = sbr.rel (%p196) target = $region39
      $region36: #{multi_resolution_stft_loss.3} parent=31 // loop_body
        %s203 = smul.u32 %s195, 128
        %s204 = sshra.s32 %s203, 3
        %s205 = sand.u32 %s203, 7
        %s206 = smul.addr %s204, 4
        %s207 = scalar_lea.vmem %s181, %s206
        %v208 = vld [vmem:[%s207] sm:$0xf]
        %v209 = vld [vmem:[%s207 + $0x4] sm:$0xf]
        %v210 = vld [vmem:[%s207 + $0x8] sm:$0xf]
        %v211 = vld [vmem:[%s207 + $0xc] sm:$0xf]
        %v212 = vld [vmem:[%s207 + $0x10] sm:$0xf]
        %v213 = vld [vmem:[%s207 + $0x14] sm:$0xf]
        %v214 = vld [vmem:[%s207 + $0x18] sm:$0xf]
        %v215 = vld [vmem:[%s207 + $0x1c] sm:$0xf]
        %v216 = vld [vmem:[%s207 + $0x20] sm:$0xf]
        %v217 = vld [vmem:[%s207 + $0x24] sm:$0xf]
        %v218 = vld [vmem:[%s207 + $0x28] sm:$0xf]
        %v219 = vld [vmem:[%s207 + $0x2c] sm:$0xf]
        %v220 = vld [vmem:[%s207 + $0x30] sm:$0xf]
        %v221 = vld [vmem:[%s207 + $0x34] sm:$0xf]
        %v222 = vld [vmem:[%s207 + $0x38] sm:$0xf]
        %v223 = vld [vmem:[%s207 + $0x3c] sm:$0xf]
        %s224 = smul.addr %s204, 4
        %s225 = scalar_lea.vmem %s187, %s224
        %v226 = vld [vmem:[%s225] sm:$0xf]
        %v227 = vld [vmem:[%s225 + $0x4] sm:$0xf]
        %v228 = vld [vmem:[%s225 + $0x8] sm:$0xf]
        %v229 = vld [vmem:[%s225 + $0xc] sm:$0xf]
        %v230 = vld [vmem:[%s225 + $0x10] sm:$0xf]
        %v231 = vld [vmem:[%s225 + $0x14] sm:$0xf]
        %v232 = vld [vmem:[%s225 + $0x18] sm:$0xf]
        %v233 = vld [vmem:[%s225 + $0x1c] sm:$0xf]
        %v234 = vld [vmem:[%s225 + $0x20] sm:$0xf]
        %v235 = vld [vmem:[%s225 + $0x24] sm:$0xf]
        %v236 = vld [vmem:[%s225 + $0x28] sm:$0xf]
        %v237 = vld [vmem:[%s225 + $0x2c] sm:$0xf]
        %v238 = vld [vmem:[%s225 + $0x30] sm:$0xf]
        %v239 = vld [vmem:[%s225 + $0x34] sm:$0xf]
        %v240 = vld [vmem:[%s225 + $0x38] sm:$0xf]
        %v241 = vld [vmem:[%s225 + $0x3c] sm:$0xf]
        %v242 = vld [vmem:[%s2] sm:$0xff]
        %v243 = vld [vmem:[%s2 + $0x8] sm:$0xff]
        %v244 = vld [vmem:[%s2 + $0x10] sm:$0xff]
        %v245 = vld [vmem:[%s2 + $0x18] sm:$0xff]
        %v246 = vld [vmem:[%s2 + $0x20] sm:$0xff]
        %v247 = vld [vmem:[%s2 + $0x28] sm:$0xff]
        %v248 = vld [vmem:[%s2 + $0x30] sm:$0xff]
        %v249 = vld [vmem:[%s2 + $0x38] sm:$0xff]
        %v266 = vunpack.c.l.b16 %v208
        %v267 = vunpack.c.l.b16 %v209
        %v268 = vunpack.c.l.b16 %v210
        %v269 = vunpack.c.l.b16 %v211
        %v270 = vunpack.c.l.b16 %v212
        %v271 = vunpack.c.l.b16 %v213
        %v272 = vunpack.c.l.b16 %v214
        %v273 = vunpack.c.l.b16 %v215
        %v274 = vunpack.c.l.b16 %v216
        %v275 = vunpack.c.l.b16 %v217
        %v276 = vunpack.c.l.b16 %v218
        %v277 = vunpack.c.l.b16 %v219
        %v278 = vunpack.c.l.b16 %v220
        %v279 = vunpack.c.l.b16 %v221
        %v280 = vunpack.c.l.b16 %v222
        %v281 = vunpack.c.l.b16 %v223
        %v282 = vpack.c.b16 %v267, %v266
        %v283 = vpack.c.b16 %v269, %v268
        %v284 = vpack.c.b16 %v271, %v270
        %v285 = vpack.c.b16 %v273, %v272
        %v286 = vpack.c.b16 %v275, %v274
        %v287 = vpack.c.b16 %v277, %v276
        %v288 = vpack.c.b16 %v279, %v278
        %v289 = vpack.c.b16 %v281, %v280
        %v298 = vunpack.c.l.b16 %v242
        %v299 = vunpack.c.h.b16 %v242
        %v300 = vunpack.c.l.b16 %v243
        %v301 = vunpack.c.h.b16 %v243
        %v302 = vunpack.c.l.b16 %v244
        %v303 = vunpack.c.h.b16 %v244
        %v304 = vunpack.c.l.b16 %v245
        %v305 = vunpack.c.h.b16 %v245
        %v306 = vunpack.c.l.b16 %v246
        %v307 = vunpack.c.h.b16 %v246
        %v308 = vunpack.c.l.b16 %v247
        %v309 = vunpack.c.h.b16 %v247
        %v310 = vunpack.c.l.b16 %v248
        %v311 = vunpack.c.h.b16 %v248
        %v312 = vunpack.c.l.b16 %v249
        %v313 = vunpack.c.h.b16 %v249
        %v314 = vpack.c.b16 %v300, %v298
        %v315 = vpack.c.b16 %v301, %v299
        %v316 = vpack.c.b16 %v304, %v302
        %v317 = vpack.c.b16 %v305, %v303
        %v318 = vpack.c.b16 %v308, %v306
        %v319 = vpack.c.b16 %v309, %v307
        %v320 = vpack.c.b16 %v312, %v310
        %v321 = vpack.c.b16 %v313, %v311
        %vm330 = vcmask 523264
        %v332 = vsel %vm330, %v282, 0
        %v335 = vsel %vm330, %v283, 0
        %v338 = vsel %vm330, %v284, 0
        %v341 = vsel %vm330, %v285, 0
        %v344 = vsel %vm330, %v286, 0
        %v347 = vsel %vm330, %v287, 0
        %v350 = vsel %vm330, %v288, 0
        %v353 = vsel %vm330, %v289, 0
        %355 = vmatprep.subr.bf16.mxu0 %v315
        %356 = vmatpush1.bf16.msra.mxu0 %v314
        %357 = vmatprep.subr.bf16.mxu0 %v317
        %358 = vmatpush1.bf16.msra.mxu0 %v316
        %359 = vmatprep.subr.bf16.mxu0 %v319
        %360 = vmatpush1.bf16.msra.mxu0 %v318
        %361 = vmatprep.subr.bf16.mxu0 %v321
        %362 = vmatpush1.bf16.msra.mxu0 %v320
        %363 = vmatprep.subr.bf16.mxu0 0
        %364 = vmatpush1.bf16.msra.mxu0 0
        %365 = vmatprep.subr.bf16.mxu0 0
        %366 = vmatpush1.bf16.msra.mxu0 0
        %367 = vmatprep.subr.bf16.mxu0 0
        %368 = vmatpush1.bf16.msra.mxu0 0
        %369 = vmatprep.subr.bf16.mxu0 0
        %370 = vmatpush1.bf16.msra.mxu0 0
        %371 = vmatprep.subr.bf16.mxu0 0
        %372 = vmatpush1.bf16.msra.mxu0 0
        %373 = vmatprep.subr.bf16.mxu0 0
        %374 = vmatpush1.bf16.msra.mxu0 0
        %375 = vmatprep.subr.bf16.mxu0 0
        %376 = vmatpush1.bf16.msra.mxu0 0
        %377 = vmatprep.subr.bf16.mxu0 0
        %378 = vmatpush1.bf16.msra.mxu0 0
        %379 = vmatprep.subr.bf16.mxu0 0
        %380 = vmatpush1.bf16.msra.mxu0 0
        %381 = vmatprep.subr.bf16.mxu0 0
        %382 = vmatpush1.bf16.msra.mxu0 0
        %383 = vmatprep.subr.bf16.mxu0 0
        %384 = vmatpush1.bf16.msra.mxu0 0
        %385 = vmatprep.subr.bf16.mxu0 0
        %386 = vmatpush1.bf16.msra.mxu0 0
        %387 = vmatprep.mubr.bf16.mxu0 0
        %388 = vmatmul.mubr.bf16.gmra.mrb[0].mxu0 %v332
        %v389 = vpop.f32.mrb[0].mxu0
        %v390 = vadd.f32 0.0, %v389
        %v391 = vpop.f32.mrb[0].mxu0
        %v392 = vadd.f32 0.0, %v391
        %v393 = vpop.f32.mrb[0].mxu0
        %v394 = vadd.f32 0.0, %v393
        %v395 = vpop.f32.mrb[0].mxu0
        %v396 = vadd.f32 0.0, %v395
        %397 = vmatprep.mubr.bf16.mxu0 0
        %398 = vmatmul.mubr.bf16.gmra.mrb[0].mxu0 %v335
        %v399 = vpop.f32.mrb[0].mxu0
        %v400 = vadd.f32 0.0, %v399
        %v401 = vpop.f32.mrb[0].mxu0
        %v402 = vadd.f32 0.0, %v401
        %v403 = vpop.f32.mrb[0].mxu0
        %v404 = vadd.f32 0.0, %v403
        %v405 = vpop.f32.mrb[0].mxu0
        %v406 = vadd.f32 0.0, %v405
        %407 = vmatprep.mubr.bf16.mxu0 0
        %408 = vmatmul.mubr.bf16.gmra.mrb[0].mxu0 %v338
        %v409 = vpop.f32.mrb[0].mxu0
        %v410 = vadd.f32 0.0, %v409
        %v411 = vpop.f32.mrb[0].mxu0
        %v412 = vadd.f32 0.0, %v411
        %v413 = vpop.f32.mrb[0].mxu0
        %v414 = vadd.f32 0.0, %v413
        %v415 = vpop.f32.mrb[0].mxu0
        %v416 = vadd.f32 0.0, %v415
        %417 = vmatprep.mubr.bf16.mxu0 0
        %418 = vmatmul.mubr.bf16.gmra.mrb[0].mxu0 %v341
        %v419 = vpop.f32.mrb[0].mxu0
        %v420 = vadd.f32 0.0, %v419
        %v421 = vpop.f32.mrb[0].mxu0
        %v422 = vadd.f32 0.0, %v421
        %v423 = vpop.f32.mrb[0].mxu0
        %v424 = vadd.f32 0.0, %v423
        %v425 = vpop.f32.mrb[0].mxu0
        %v426 = vadd.f32 0.0, %v425
        %427 = vmatprep.mubr.bf16.mxu0 0
        %428 = vmatmul.mubr.bf16.gmra.mrb[0].mxu0 %v344
        %v429 = vpop.f32.mrb[0].mxu0
        %v430 = vadd.f32 0.0, %v429
        %v431 = vpop.f32.mrb[0].mxu0
        %v432 = vadd.f32 0.0, %v431
        %v433 = vpop.f32.mrb[0].mxu0
        %v434 = vadd.f32 0.0, %v433
        %v435 = vpop.f32.mrb[0].mxu0
        %v436 = vadd.f32 0.0, %v435
        %437 = vmatprep.mubr.bf16.mxu0 0
        %438 = vmatmul.mubr.bf16.gmra.mrb[0].mxu0 %v347
        %v439 = vpop.f32.mrb[0].mxu0
        %v440 = vadd.f32 0.0, %v439
        %v441 = vpop.f32.mrb[0].mxu0
        %v442 = vadd.f32 0.0, %v441
        %v443 = vpop.f32.mrb[0].mxu0
        %v444 = vadd.f32 0.0, %v443
        %v445 = vpop.f32.mrb[0].mxu0
        %v446 = vadd.f32 0.0, %v445
        %447 = vmatprep.mubr.bf16.mxu0 0
        %448 = vmatmul.mubr.bf16.gmra.mrb[0].mxu0 %v350
        %v449 = vpop.f32.mrb[0].mxu0
        %v450 = vadd.f32 0.0, %v449
        %v451 = vpop.f32.mrb[0].mxu0
        %v452 = vadd.f32 0.0, %v451
        %v453 = vpop.f32.mrb[0].mxu0
        %v454 = vadd.f32 0.0, %v453
        %v455 = vpop.f32.mrb[0].mxu0
        %v456 = vadd.f32 0.0, %v455
        %457 = vmatprep.mubr.bf16.mxu0 0
        %458 = vmatmul.mubr.bf16.gmra.mrb[0].mxu0 %v353
        %v459 = vpop.f32.mrb[0].mxu0
        %v460 = vadd.f32 0.0, %v459
        %v461 = vpop.f32.mrb[0].mxu0
        %v462 = vadd.f32 0.0, %v461
        %v463 = vpop.f32.mrb[0].mxu0
        %v464 = vadd.f32 0.0, %v463
        %v465 = vpop.f32.mrb[0].mxu0
        %v466 = vadd.f32 0.0, %v465
        %467 = vdwg.mxu0
        %v484 = vunpack.c.l.b16 %v226
        %v485 = vunpack.c.l.b16 %v227
        %v486 = vunpack.c.l.b16 %v228
        %v487 = vunpack.c.l.b16 %v229
        %v488 = vunpack.c.l.b16 %v230
        %v489 = vunpack.c.l.b16 %v231
        %v490 = vunpack.c.l.b16 %v232
        %v491 = vunpack.c.l.b16 %v233
        %v492 = vunpack.c.l.b16 %v234
        %v493 = vunpack.c.l.b16 %v235
        %v494 = vunpack.c.l.b16 %v236
        %v495 = vunpack.c.l.b16 %v237
        %v496 = vunpack.c.l.b16 %v238
        %v497 = vunpack.c.l.b16 %v239
        %v498 = vunpack.c.l.b16 %v240
        %v499 = vunpack.c.l.b16 %v241
        %v500 = vpack.c.b16 %v485, %v484
        %v501 = vpack.c.b16 %v487, %v486
        %v502 = vpack.c.b16 %v489, %v488
        %v503 = vpack.c.b16 %v491, %v490
        %v504 = vpack.c.b16 %v493, %v492
        %v505 = vpack.c.b16 %v495, %v494
        %v506 = vpack.c.b16 %v497, %v496
        %v507 = vpack.c.b16 %v499, %v498
        %v509 = vsel %vm330, %v500, 0
        %v512 = vsel %vm330, %v501, 0
        %v515 = vsel %vm330, %v502, 0
        %v518 = vsel %vm330, %v503, 0
        %v521 = vsel %vm330, %v504, 0
        %v524 = vsel %vm330, %v505, 0
        %v527 = vsel %vm330, %v506, 0
        %v530 = vsel %vm330, %v507, 0
        %532 = vmatprep.subr.bf16.mxu0 %v315
        %533 = vmatpush1.bf16.msra.mxu0 %v314
        %534 = vmatprep.subr.bf16.mxu0 %v317
        %535 = vmatpush1.bf16.msra.mxu0 %v316
        %536 = vmatprep.subr.bf16.mxu0 %v319
        %537 = vmatpush1.bf16.msra.mxu0 %v318
        %538 = vmatprep.subr.bf16.mxu0 %v321
        %539 = vmatpush1.bf16.msra.mxu0 %v320
        %540 = vmatprep.subr.bf16.mxu0 0
        %541 = vmatpush1.bf16.msra.mxu0 0
        %542 = vmatprep.subr.bf16.mxu0 0
        %543 = vmatpush1.bf16.msra.mxu0 0
        %544 = vmatprep.subr.bf16.mxu0 0
        %545 = vmatpush1.bf16.msra.mxu0 0
        %546 = vmatprep.subr.bf16.mxu0 0
        %547 = vmatpush1.bf16.msra.mxu0 0
        %548 = vmatprep.subr.bf16.mxu0 0
        %549 = vmatpush1.bf16.msra.mxu0 0
        %550 = vmatprep.subr.bf16.mxu0 0
        %551 = vmatpush1.bf16.msra.mxu0 0
        %552 = vmatprep.subr.bf16.mxu0 0
        %553 = vmatpush1.bf16.msra.mxu0 0
        %554 = vmatprep.subr.bf16.mxu0 0
        %555 = vmatpush1.bf16.msra.mxu0 0
        %556 = vmatprep.subr.bf16.mxu0 0
        %557 = vmatpush1.bf16.msra.mxu0 0
        %558 = vmatprep.subr.bf16.mxu0 0
        %559 = vmatpush1.bf16.msra.mxu0 0
        %560 = vmatprep.subr.bf16.mxu0 0
        %561 = vmatpush1.bf16.msra.mxu0 0
        %562 = vmatprep.subr.bf16.mxu0 0
        %563 = vmatpush1.bf16.msra.mxu0 0
        %564 = vmatprep.mubr.bf16.mxu0 0
        %565 = vmatmul.mubr.bf16.gmra.mrb[0].mxu0 %v509
        %v566 = vpop.f32.mrb[0].mxu0
        %v567 = vadd.f32 0.0, %v566
        %v568 = vpop.f32.mrb[0].mxu0
        %v569 = vadd.f32 0.0, %v568
        %v570 = vpop.f32.mrb[0].mxu0
        %v571 = vadd.f32 0.0, %v570
        %v572 = vpop.f32.mrb[0].mxu0
        %v573 = vadd.f32 0.0, %v572
        %574 = vmatprep.mubr.bf16.mxu0 0
        %575 = vmatmul.mubr.bf16.gmra.mrb[0].mxu0 %v512
        %v576 = vpop.f32.mrb[0].mxu0
        %v577 = vadd.f32 0.0, %v576
        %v578 = vpop.f32.mrb[0].mxu0
        %v579 = vadd.f32 0.0, %v578
        %v580 = vpop.f32.mrb[0].mxu0
        %v581 = vadd.f32 0.0, %v580
        %v582 = vpop.f32.mrb[0].mxu0
        %v583 = vadd.f32 0.0, %v582
        %584 = vmatprep.mubr.bf16.mxu0 0
        %585 = vmatmul.mubr.bf16.gmra.mrb[0].mxu0 %v515
        %v586 = vpop.f32.mrb[0].mxu0
        %v587 = vadd.f32 0.0, %v586
        %v588 = vpop.f32.mrb[0].mxu0
        %v589 = vadd.f32 0.0, %v588
        %v590 = vpop.f32.mrb[0].mxu0
        %v591 = vadd.f32 0.0, %v590
        %v592 = vpop.f32.mrb[0].mxu0
        %v593 = vadd.f32 0.0, %v592
        %594 = vmatprep.mubr.bf16.mxu0 0
        %595 = vmatmul.mubr.bf16.gmra.mrb[0].mxu0 %v518
        %v596 = vpop.f32.mrb[0].mxu0
        %v597 = vadd.f32 0.0, %v596
        %v598 = vpop.f32.mrb[0].mxu0
        %v599 = vadd.f32 0.0, %v598
        %v600 = vpop.f32.mrb[0].mxu0
        %v601 = vadd.f32 0.0, %v600
        %v602 = vpop.f32.mrb[0].mxu0
        %v603 = vadd.f32 0.0, %v602
        %604 = vmatprep.mubr.bf16.mxu0 0
        %605 = vmatmul.mubr.bf16.gmra.mrb[0].mxu0 %v521
        %v606 = vpop.f32.mrb[0].mxu0
        %v607 = vadd.f32 0.0, %v606
        %v608 = vpop.f32.mrb[0].mxu0
        %v609 = vadd.f32 0.0, %v608
        %v610 = vpop.f32.mrb[0].mxu0
        %v611 = vadd.f32 0.0, %v610
        %v612 = vpop.f32.mrb[0].mxu0
        %v613 = vadd.f32 0.0, %v612
        %614 = vmatprep.mubr.bf16.mxu0 0
        %615 = vmatmul.mubr.bf16.gmra.mrb[0].mxu0 %v524
        %v616 = vpop.f32.mrb[0].mxu0
        %v617 = vadd.f32 0.0, %v616
        %v618 = vpop.f32.mrb[0].mxu0
        %v619 = vadd.f32 0.0, %v618
        %v620 = vpop.f32.mrb[0].mxu0
        %v621 = vadd.f32 0.0, %v620
        %v622 = vpop.f32.mrb[0].mxu0
        %v623 = vadd.f32 0.0, %v622
        %624 = vmatprep.mubr.bf16.mxu0 0
        %625 = vmatmul.mubr.bf16.gmra.mrb[0].mxu0 %v527
        %v626 = vpop.f32.mrb[0].mxu0
        %v627 = vadd.f32 0.0, %v626
        %v628 = vpop.f32.mrb[0].mxu0
        %v629 = vadd.f32 0.0, %v628
        %v630 = vpop.f32.mrb[0].mxu0
        %v631 = vadd.f32 0.0, %v630
        %v632 = vpop.f32.mrb[0].mxu0
        %v633 = vadd.f32 0.0, %v632
        %634 = vmatprep.mubr.bf16.mxu0 0
        %635 = vmatmul.mubr.bf16.gmra.mrb[0].mxu0 %v530
        %v636 = vpop.f32.mrb[0].mxu0
        %v637 = vadd.f32 0.0, %v636
        %v638 = vpop.f32.mrb[0].mxu0
        %v639 = vadd.f32 0.0, %v638
        %v640 = vpop.f32.mrb[0].mxu0
        %v641 = vadd.f32 0.0, %v640
        %v642 = vpop.f32.mrb[0].mxu0
        %v643 = vadd.f32 0.0, %v642
        %644 = vdwg.mxu0
        %v645 = vmul.f32 %v390, %v390
        %v646 = vmul.f32 %v394, %v394
        %v647 = vmul.f32 %v400, %v400
        %v648 = vmul.f32 %v404, %v404
        %v649 = vmul.f32 %v410, %v410
        %v650 = vmul.f32 %v414, %v414
        %v651 = vmul.f32 %v420, %v420
        %v652 = vmul.f32 %v424, %v424
        %v653 = vmul.f32 %v430, %v430
        %v654 = vmul.f32 %v434, %v434
        %v655 = vmul.f32 %v440, %v440
        %v656 = vmul.f32 %v444, %v444
        %v657 = vmul.f32 %v450, %v450
        %v658 = vmul.f32 %v454, %v454
        %v659 = vmul.f32 %v460, %v460
        %v660 = vmul.f32 %v464, %v464
        %v661 = vmul.f32 %v392, %v392
        %v662 = vmul.f32 %v396, %v396
        %v663 = vmul.f32 %v402, %v402
        %v664 = vmul.f32 %v406, %v406
        %v665 = vmul.f32 %v412, %v412
        %v666 = vmul.f32 %v416, %v416
        %v667 = vmul.f32 %v422, %v422
        %v668 = vmul.f32 %v426, %v426
        %v669 = vmul.f32 %v432, %v432
        %v670 = vmul.f32 %v436, %v436
        %v671 = vmul.f32 %v442, %v442
        %v672 = vmul.f32 %v446, %v446
        %v673 = vmul.f32 %v452, %v452
        %v674 = vmul.f32 %v456, %v456
        %v675 = vmul.f32 %v462, %v462
        %v676 = vmul.f32 %v466, %v466
        %v677 = vadd.f32 %v645, %v661
        %v678 = vadd.f32 %v646, %v662
        %v679 = vadd.f32 %v647, %v663
        %v680 = vadd.f32 %v648, %v664
        %v681 = vadd.f32 %v649, %v665
        %v682 = vadd.f32 %v650, %v666
        %v683 = vadd.f32 %v651, %v667
        %v684 = vadd.f32 %v652, %v668
        %v685 = vadd.f32 %v653, %v669
        %v686 = vadd.f32 %v654, %v670
        %v687 = vadd.f32 %v655, %v671
        %v688 = vadd.f32 %v656, %v672
        %v689 = vadd.f32 %v657, %v673
        %v690 = vadd.f32 %v658, %v674
        %v691 = vadd.f32 %v659, %v675
        %v692 = vadd.f32 %v660, %v676
        %v693 = vmax.f32 %v677, 1e-07
        %v694 = vmax.f32 %v678, 1e-07
        %v695 = vmax.f32 %v679, 1e-07
        %v696 = vmax.f32 %v680, 1e-07
        %v697 = vmax.f32 %v681, 1e-07
        %v698 = vmax.f32 %v682, 1e-07
        %v699 = vmax.f32 %v683, 1e-07
        %v700 = vmax.f32 %v684, 1e-07
        %v701 = vmax.f32 %v685, 1e-07
        %v702 = vmax.f32 %v686, 1e-07
        %v703 = vmax.f32 %v687, 1e-07
        %v704 = vmax.f32 %v688, 1e-07
        %v705 = vmax.f32 %v689, 1e-07
        %v706 = vmax.f32 %v690, 1e-07
        %v707 = vmax.f32 %v691, 1e-07
        %v708 = vmax.f32 %v692, 1e-07
        %v709 = vmul.f32 %v567, %v567
        %v710 = vmul.f32 %v571, %v571
        %v711 = vmul.f32 %v577, %v577
        %v712 = vmul.f32 %v581, %v581
        %v713 = vmul.f32 %v587, %v587
        %v714 = vmul.f32 %v591, %v591
        %v715 = vmul.f32 %v597, %v597
        %v716 = vmul.f32 %v601, %v601
        %v717 = vmul.f32 %v607, %v607
        %v718 = vmul.f32 %v611, %v611
        %v719 = vmul.f32 %v617, %v617
        %v720 = vmul.f32 %v621, %v621
        %v721 = vmul.f32 %v627, %v627
        %v722 = vmul.f32 %v631, %v631
        %v723 = vmul.f32 %v637, %v637
        %v724 = vmul.f32 %v641, %v641
        %v725 = vmul.f32 %v569, %v569
        %v726 = vmul.f32 %v573, %v573
        %v727 = vmul.f32 %v579, %v579
        %v728 = vmul.f32 %v583, %v583
        %v729 = vmul.f32 %v589, %v589
        %v730 = vmul.f32 %v593, %v593
        %v731 = vmul.f32 %v599, %v599
        %v732 = vmul.f32 %v603, %v603
        %v733 = vmul.f32 %v609, %v609
        %v734 = vmul.f32 %v613, %v613
        %v735 = vmul.f32 %v619, %v619
        %v736 = vmul.f32 %v623, %v623
        %v737 = vmul.f32 %v629, %v629
        %v738 = vmul.f32 %v633, %v633
        %v739 = vmul.f32 %v639, %v639
        %v740 = vmul.f32 %v643, %v643
        %v741 = vadd.f32 %v709, %v725
        %v742 = vadd.f32 %v710, %v726
        %v743 = vadd.f32 %v711, %v727
        %v744 = vadd.f32 %v712, %v728
        %v745 = vadd.f32 %v713, %v729
        %v746 = vadd.f32 %v714, %v730
        %v747 = vadd.f32 %v715, %v731
        %v748 = vadd.f32 %v716, %v732
        %v749 = vadd.f32 %v717, %v733
        %v750 = vadd.f32 %v718, %v734
        %v751 = vadd.f32 %v719, %v735
        %v752 = vadd.f32 %v720, %v736
        %v753 = vadd.f32 %v721, %v737
        %v754 = vadd.f32 %v722, %v738
        %v755 = vadd.f32 %v723, %v739
        %v756 = vadd.f32 %v724, %v740
        %v757 = vmax.f32 %v741, 1e-07
        %v758 = vmax.f32 %v742, 1e-07
        %v759 = vmax.f32 %v743, 1e-07
        %v760 = vmax.f32 %v744, 1e-07
        %v761 = vmax.f32 %v745, 1e-07
        %v762 = vmax.f32 %v746, 1e-07
        %v763 = vmax.f32 %v747, 1e-07
        %v764 = vmax.f32 %v748, 1e-07
        %v765 = vmax.f32 %v749, 1e-07
        %v766 = vmax.f32 %v750, 1e-07
        %v767 = vmax.f32 %v751, 1e-07
        %v768 = vmax.f32 %v752, 1e-07
        %v769 = vmax.f32 %v753, 1e-07
        %v770 = vmax.f32 %v754, 1e-07
        %v771 = vmax.f32 %v755, 1e-07
        %v772 = vmax.f32 %v756, 1e-07
        %v773 = vadd.f32 %v693, %v757
        %v774 = vadd.f32 %v694, %v758
        %v775 = vadd.f32 %v695, %v759
        %v776 = vadd.f32 %v696, %v760
        %v777 = vadd.f32 %v697, %v761
        %v778 = vadd.f32 %v698, %v762
        %v779 = vadd.f32 %v699, %v763
        %v780 = vadd.f32 %v700, %v764
        %v781 = vadd.f32 %v701, %v765
        %v782 = vadd.f32 %v702, %v766
        %v783 = vadd.f32 %v703, %v767
        %v784 = vadd.f32 %v704, %v768
        %v785 = vadd.f32 %v705, %v769
        %v786 = vadd.f32 %v706, %v770
        %v787 = vadd.f32 %v707, %v771
        %v788 = vadd.f32 %v708, %v772
        %v789 = vmul.f32 %v693, %v757
        %v790 = vmul.f32 %v694, %v758
        %v791 = vmul.f32 %v695, %v759
        %v792 = vmul.f32 %v696, %v760
        %v793 = vmul.f32 %v697, %v761
        %v794 = vmul.f32 %v698, %v762
        %v795 = vmul.f32 %v699, %v763
        %v796 = vmul.f32 %v700, %v764
        %v797 = vmul.f32 %v701, %v765
        %v798 = vmul.f32 %v702, %v766
        %v799 = vmul.f32 %v703, %v767
        %v800 = vmul.f32 %v704, %v768
        %v801 = vmul.f32 %v705, %v769
        %v802 = vmul.f32 %v706, %v770
        %v803 = vmul.f32 %v707, %v771
        %v804 = vmul.f32 %v708, %v772
        %v805 = vrsqrt.pop %v789
        %v806 = vmul.f32 %v789, %v805
        %vm807 = vcmp.eq.f32.partialorder %v789, inf
        %v808 = vsel %vm807, %v789, %v806
        %vm809 = vcmp.eq.f32.partialorder %v789, 0.0
        %v810 = vand.u32 %v789, 2147483648
        %v811 = vsel %vm809, %v810, %v808
        %v812 = vrsqrt.pop %v790
        %v813 = vmul.f32 %v790, %v812
        %vm814 = vcmp.eq.f32.partialorder %v790, inf
        %v815 = vsel %vm814, %v790, %v813
        %vm816 = vcmp.eq.f32.partialorder %v790, 0.0
        %v817 = vand.u32 %v790, 2147483648
        %v818 = vsel %vm816, %v817, %v815
        %v819 = vrsqrt.pop %v791
        %v820 = vmul.f32 %v791, %v819
        %vm821 = vcmp.eq.f32.partialorder %v791, inf
        %v822 = vsel %vm821, %v791, %v820
        %vm823 = vcmp.eq.f32.partialorder %v791, 0.0
        %v824 = vand.u32 %v791, 2147483648
        %v825 = vsel %vm823, %v824, %v822
        %v826 = vrsqrt.pop %v792
        %v827 = vmul.f32 %v792, %v826
        %vm828 = vcmp.eq.f32.partialorder %v792, inf
        %v829 = vsel %vm828, %v792, %v827
        %vm830 = vcmp.eq.f32.partialorder %v792, 0.0
        %v831 = vand.u32 %v792, 2147483648
        %v832 = vsel %vm830, %v831, %v829
        %v833 = vrsqrt.pop %v793
        %v834 = vmul.f32 %v793, %v833
        %vm835 = vcmp.eq.f32.partialorder %v793, inf
        %v836 = vsel %vm835, %v793, %v834
        %vm837 = vcmp.eq.f32.partialorder %v793, 0.0
        %v838 = vand.u32 %v793, 2147483648
        %v839 = vsel %vm837, %v838, %v836
        %v840 = vrsqrt.pop %v794
        %v841 = vmul.f32 %v794, %v840
        %vm842 = vcmp.eq.f32.partialorder %v794, inf
        %v843 = vsel %vm842, %v794, %v841
        %vm844 = vcmp.eq.f32.partialorder %v794, 0.0
        %v845 = vand.u32 %v794, 2147483648
        %v846 = vsel %vm844, %v845, %v843
        %v847 = vrsqrt.pop %v795
        %v848 = vmul.f32 %v795, %v847
        %vm849 = vcmp.eq.f32.partialorder %v795, inf
        %v850 = vsel %vm849, %v795, %v848
        %vm851 = vcmp.eq.f32.partialorder %v795, 0.0
        %v852 = vand.u32 %v795, 2147483648
        %v853 = vsel %vm851, %v852, %v850
        %v854 = vrsqrt.pop %v796
        %v855 = vmul.f32 %v796, %v854
        %vm856 = vcmp.eq.f32.partialorder %v796, inf
        %v857 = vsel %vm856, %v796, %v855
        %vm858 = vcmp.eq.f32.partialorder %v796, 0.0
        %v859 = vand.u32 %v796, 2147483648
        %v860 = vsel %vm858, %v859, %v857
        %v861 = vrsqrt.pop %v797
        %v862 = vmul.f32 %v797, %v861
        %vm863 = vcmp.eq.f32.partialorder %v797, inf
        %v864 = vsel %vm863, %v797, %v862
        %vm865 = vcmp.eq.f32.partialorder %v797, 0.0
        %v866 = vand.u32 %v797, 2147483648
        %v867 = vsel %vm865, %v866, %v864
        %v868 = vrsqrt.pop %v798
        %v869 = vmul.f32 %v798, %v868
        %vm870 = vcmp.eq.f32.partialorder %v798, inf
        %v871 = vsel %vm870, %v798, %v869
        %vm872 = vcmp.eq.f32.partialorder %v798, 0.0
        %v873 = vand.u32 %v798, 2147483648
        %v874 = vsel %vm872, %v873, %v871
        %v875 = vrsqrt.pop %v799
        %v876 = vmul.f32 %v799, %v875
        %vm877 = vcmp.eq.f32.partialorder %v799, inf
        %v878 = vsel %vm877, %v799, %v876
        %vm879 = vcmp.eq.f32.partialorder %v799, 0.0
        %v880 = vand.u32 %v799, 2147483648
        %v881 = vsel %vm879, %v880, %v878
        %v882 = vrsqrt.pop %v800
        %v883 = vmul.f32 %v800, %v882
        %vm884 = vcmp.eq.f32.partialorder %v800, inf
        %v885 = vsel %vm884, %v800, %v883
        %vm886 = vcmp.eq.f32.partialorder %v800, 0.0
        %v887 = vand.u32 %v800, 2147483648
        %v888 = vsel %vm886, %v887, %v885
        %v889 = vrsqrt.pop %v801
        %v890 = vmul.f32 %v801, %v889
        %vm891 = vcmp.eq.f32.partialorder %v801, inf
        %v892 = vsel %vm891, %v801, %v890
        %vm893 = vcmp.eq.f32.partialorder %v801, 0.0
        %v894 = vand.u32 %v801, 2147483648
        %v895 = vsel %vm893, %v894, %v892
        %v896 = vrsqrt.pop %v802
        %v897 = vmul.f32 %v802, %v896
        %vm898 = vcmp.eq.f32.partialorder %v802, inf
        %v899 = vsel %vm898, %v802, %v897
        %vm900 = vcmp.eq.f32.partialorder %v802, 0.0
        %v901 = vand.u32 %v802, 2147483648
        %v902 = vsel %vm900, %v901, %v899
        %v903 = vrsqrt.pop %v803
        %v904 = vmul.f32 %v803, %v903
        %vm905 = vcmp.eq.f32.partialorder %v803, inf
        %v906 = vsel %vm905, %v803, %v904
        %vm907 = vcmp.eq.f32.partialorder %v803, 0.0
        %v908 = vand.u32 %v803, 2147483648
        %v909 = vsel %vm907, %v908, %v906
        %v910 = vrsqrt.pop %v804
        %v911 = vmul.f32 %v804, %v910
        %vm912 = vcmp.eq.f32.partialorder %v804, inf
        %v913 = vsel %vm912, %v804, %v911
        %vm914 = vcmp.eq.f32.partialorder %v804, 0.0
        %v915 = vand.u32 %v804, 2147483648
        %v916 = vsel %vm914, %v915, %v913
        %v917 = vmul.f32 %v811, 2.0
        %v918 = vmul.f32 %v818, 2.0
        %v919 = vmul.f32 %v825, 2.0
        %v920 = vmul.f32 %v832, 2.0
        %v921 = vmul.f32 %v839, 2.0
        %v922 = vmul.f32 %v846, 2.0
        %v923 = vmul.f32 %v853, 2.0
        %v924 = vmul.f32 %v860, 2.0
        %v925 = vmul.f32 %v867, 2.0
        %v926 = vmul.f32 %v874, 2.0
        %v927 = vmul.f32 %v881, 2.0
        %v928 = vmul.f32 %v888, 2.0
        %v929 = vmul.f32 %v895, 2.0
        %v930 = vmul.f32 %v902, 2.0
        %v931 = vmul.f32 %v909, 2.0
        %v932 = vmul.f32 %v916, 2.0
        %v933 = vsub.f32 %v773, %v917
        %v934 = vsub.f32 %v774, %v918
        %v935 = vsub.f32 %v775, %v919
        %v936 = vsub.f32 %v776, %v920
        %v937 = vsub.f32 %v777, %v921
        %v938 = vsub.f32 %v778, %v922
        %v939 = vsub.f32 %v779, %v923
        %v940 = vsub.f32 %v780, %v924
        %v941 = vsub.f32 %v781, %v925
        %v942 = vsub.f32 %v782, %v926
        %v943 = vsub.f32 %v783, %v927
        %v944 = vsub.f32 %v784, %v928
        %v945 = vsub.f32 %v785, %v929
        %v946 = vsub.f32 %v786, %v930
        %v947 = vsub.f32 %v787, %v931
        %v948 = vsub.f32 %v788, %v932
        %v949 = vmax.f32 %v933, 0.0
        %v950 = vmax.f32 %v934, 0.0
        %v951 = vmax.f32 %v935, 0.0
        %v952 = vmax.f32 %v936, 0.0
        %v953 = vmax.f32 %v937, 0.0
        %v954 = vmax.f32 %v938, 0.0
        %v955 = vmax.f32 %v939, 0.0
        %v956 = vmax.f32 %v940, 0.0
        %v957 = vmax.f32 %v941, 0.0
        %v958 = vmax.f32 %v942, 0.0
        %v959 = vmax.f32 %v943, 0.0
        %v960 = vmax.f32 %v944, 0.0
        %v961 = vmax.f32 %v945, 0.0
        %v962 = vmax.f32 %v946, 0.0
        %v963 = vmax.f32 %v947, 0.0
        %v964 = vmax.f32 %v948, 0.0
        %v965 = vlog2.pop %v693
        %v966 = vmul.f32 %v965, 0.6931472
        %v967 = vlog2.pop %v694
        %v968 = vmul.f32 %v967, 0.6931472
        %v969 = vlog2.pop %v695
        %v970 = vmul.f32 %v969, 0.6931472
        %v971 = vlog2.pop %v696
        %v972 = vmul.f32 %v971, 0.6931472
        %v973 = vlog2.pop %v697
        %v974 = vmul.f32 %v973, 0.6931472
        %v975 = vlog2.pop %v698
        %v976 = vmul.f32 %v975, 0.6931472
        %v977 = vlog2.pop %v699
        %v978 = vmul.f32 %v977, 0.6931472
        %v979 = vlog2.pop %v700
        %v980 = vmul.f32 %v979, 0.6931472
        %v981 = vlog2.pop %v701
        %v982 = vmul.f32 %v981, 0.6931472
        %v983 = vlog2.pop %v702
        %v984 = vmul.f32 %v983, 0.6931472
        %v985 = vlog2.pop %v703
        %v986 = vmul.f32 %v985, 0.6931472
        %v987 = vlog2.pop %v704
        %v988 = vmul.f32 %v987, 0.6931472
        %v989 = vlog2.pop %v705
        %v990 = vmul.f32 %v989, 0.6931472
        %v991 = vlog2.pop %v706
        %v992 = vmul.f32 %v991, 0.6931472
        %v993 = vlog2.pop %v707
        %v994 = vmul.f32 %v993, 0.6931472
        %v995 = vlog2.pop %v708
        %v996 = vmul.f32 %v995, 0.6931472
        %v997 = vlog2.pop %v757
        %v998 = vmul.f32 %v997, 0.6931472
        %v999 = vlog2.pop %v758
        %v1000 = vmul.f32 %v999, 0.6931472
        %v1001 = vlog2.pop %v759
        %v1002 = vmul.f32 %v1001, 0.6931472
        %v1003 = vlog2.pop %v760
        %v1004 = vmul.f32 %v1003, 0.6931472
        %v1005 = vlog2.pop %v761
        %v1006 = vmul.f32 %v1005, 0.6931472
        %v1007 = vlog2.pop %v762
        %v1008 = vmul.f32 %v1007, 0.6931472
        %v1009 = vlog2.pop %v763
        %v1010 = vmul.f32 %v1009, 0.6931472
        %v1011 = vlog2.pop %v764
        %v1012 = vmul.f32 %v1011, 0.6931472
        %v1013 = vlog2.pop %v765
        %v1014 = vmul.f32 %v1013, 0.6931472
        %v1015 = vlog2.pop %v766
        %v1016 = vmul.f32 %v1015, 0.6931472
        %v1017 = vlog2.pop %v767
        %v1018 = vmul.f32 %v1017, 0.6931472
        %v1019 = vlog2.pop %v768
        %v1020 = vmul.f32 %v1019, 0.6931472
        %v1021 = vlog2.pop %v769
        %v1022 = vmul.f32 %v1021, 0.6931472
        %v1023 = vlog2.pop %v770
        %v1024 = vmul.f32 %v1023, 0.6931472
        %v1025 = vlog2.pop %v771
        %v1026 = vmul.f32 %v1025, 0.6931472
        %v1027 = vlog2.pop %v772
        %v1028 = vmul.f32 %v1027, 0.6931472
        %v1029 = vsub.f32 %v966, %v998
        %v1030 = vsub.f32 %v968, %v1000
        %v1031 = vsub.f32 %v970, %v1002
        %v1032 = vsub.f32 %v972, %v1004
        %v1033 = vsub.f32 %v974, %v1006
        %v1034 = vsub.f32 %v976, %v1008
        %v1035 = vsub.f32 %v978, %v1010
        %v1036 = vsub.f32 %v980, %v1012
        %v1037 = vsub.f32 %v982, %v1014
        %v1038 = vsub.f32 %v984, %v1016
        %v1039 = vsub.f32 %v986, %v1018
        %v1040 = vsub.f32 %v988, %v1020
        %v1041 = vsub.f32 %v990, %v1022
        %v1042 = vsub.f32 %v992, %v1024
        %v1043 = vsub.f32 %v994, %v1026
        %v1044 = vsub.f32 %v996, %v1028
        %v1045 = vand.u32 2147483647, %v1029
        %v1046 = vand.u32 2147483647, %v1030
        %v1047 = vand.u32 2147483647, %v1031
        %v1048 = vand.u32 2147483647, %v1032
        %v1049 = vand.u32 2147483647, %v1033
        %v1050 = vand.u32 2147483647, %v1034
        %v1051 = vand.u32 2147483647, %v1035
        %v1052 = vand.u32 2147483647, %v1036
        %v1053 = vand.u32 2147483647, %v1037
        %v1054 = vand.u32 2147483647, %v1038
        %v1055 = vand.u32 2147483647, %v1039
        %v1056 = vand.u32 2147483647, %v1040
        %v1057 = vand.u32 2147483647, %v1041
        %v1058 = vand.u32 2147483647, %v1042
        %v1059 = vand.u32 2147483647, %v1043
        %v1060 = vand.u32 2147483647, %v1044
        %v1061 = vmul.f32 %v1045, 0.5
        %v1062 = vmul.f32 %v1046, 0.5
        %v1063 = vmul.f32 %v1047, 0.5
        %v1064 = vmul.f32 %v1048, 0.5
        %v1065 = vmul.f32 %v1049, 0.5
        %v1066 = vmul.f32 %v1050, 0.5
        %v1067 = vmul.f32 %v1051, 0.5
        %v1068 = vmul.f32 %v1052, 0.5
        %v1069 = vmul.f32 %v1053, 0.5
        %v1070 = vmul.f32 %v1054, 0.5
        %v1071 = vmul.f32 %v1055, 0.5
        %v1072 = vmul.f32 %v1056, 0.5
        %v1073 = vmul.f32 %v1057, 0.5
        %v1074 = vmul.f32 %v1058, 0.5
        %v1075 = vmul.f32 %v1059, 0.5
        %v1076 = vmul.f32 %v1060, 0.5
        %v1077 = vadd.f32 %v949, %v950
        %v1078 = vadd.f32 %v1077, %v951
        %v1079 = vadd.f32 %v1078, %v952
        %v1080 = vadd.f32 %v1079, %v953
        %v1081 = vadd.f32 %v1080, %v954
        %v1082 = vadd.f32 %v1081, %v955
        %v1083 = vadd.f32 %v1082, %v956
        %v1084 = vadd.f32 %v1083, %v957
        %v1085 = vadd.f32 %v1084, %v958
        %v1086 = vadd.f32 %v1085, %v959
        %v1087 = vadd.f32 %v1086, %v960
        %v1088 = vadd.f32 %v1087, %v961
        %v1089 = vadd.f32 %v1088, %v962
        %v1090 = vadd.f32 %v1089, %v963
        %v1091 = vadd.f32 %v1090, %v964
        %v1092 = vrot.slane %v1091, 4
        %v1093 = vadd.f32 %v1091, %v1092
        %v1094 = vrot.slane %v1093, 2
        %v1095 = vadd.f32 %v1093, %v1094
        %v1096 = vrot.slane %v1095, 1
        %v1097 = vadd.f32 %v1095, %v1096
        %v1098 = vadd.f32 %v757, %v758
        %v1099 = vadd.f32 %v1098, %v759
        %v1100 = vadd.f32 %v1099, %v760
        %v1101 = vadd.f32 %v1100, %v761
        %v1102 = vadd.f32 %v1101, %v762
        %v1103 = vadd.f32 %v1102, %v763
        %v1104 = vadd.f32 %v1103, %v764
        %v1105 = vadd.f32 %v1104, %v765
        %v1106 = vadd.f32 %v1105, %v766
        %v1107 = vadd.f32 %v1106, %v767
        %v1108 = vadd.f32 %v1107, %v768
        %v1109 = vadd.f32 %v1108, %v769
        %v1110 = vadd.f32 %v1109, %v770
        %v1111 = vadd.f32 %v1110, %v771
        %v1112 = vadd.f32 %v1111, %v772
        %v1113 = vrot.slane %v1112, 4
        %v1114 = vadd.f32 %v1112, %v1113
        %v1115 = vrot.slane %v1114, 2
        %v1116 = vadd.f32 %v1114, %v1115
        %v1117 = vrot.slane %v1116, 1
        %v1118 = vadd.f32 %v1116, %v1117
        %v1119 = vadd.f32 %v1061, %v1062
        %v1120 = vadd.f32 %v1119, %v1063
        %v1121 = vadd.f32 %v1120, %v1064
        %v1122 = vadd.f32 %v1121, %v1065
        %v1123 = vadd.f32 %v1122, %v1066
        %v1124 = vadd.f32 %v1123, %v1067
        %v1125 = vadd.f32 %v1124, %v1068
        %v1126 = vadd.f32 %v1125, %v1069
        %v1127 = vadd.f32 %v1126, %v1070
        %v1128 = vadd.f32 %v1127, %v1071
        %v1129 = vadd.f32 %v1128, %v1072
        %v1130 = vadd.f32 %v1129, %v1073
        %v1131 = vadd.f32 %v1130, %v1074
        %v1132 = vadd.f32 %v1131, %v1075
        %v1133 = vadd.f32 %v1132, %v1076
        %v1134 = vrot.slane %v1133, 4
        %v1135 = vadd.f32 %v1133, %v1134
        %v1136 = vrot.slane %v1135, 2
        %v1137 = vadd.f32 %v1135, %v1136
        %v1138 = vrot.slane %v1137, 1
        %v1139 = vadd.f32 %v1137, %v1138
        %v1140 = vadd.f32 %v200, %v1097
        %v1141 = vadd.f32 %v201, %v1118
        %v1142 = vadd.f32 %v202, %v1139
      $region37: #{multi_resolution_stft_loss.3} parent=31 // loop_footer
        %s199 = sadd.s32 1, %s195
      $region38: #{multi_resolution_stft_loss.3} parent=31 // loop_footer_branch
        %194 = sbr.rel target = $region34
      $region39: #{multi_resolution_stft_loss.3} parent=31 // loop_exit
        _
      %1143 = vst [vmem:[%s192] sm:$0x1] %v200
      %1144 = vst [vmem:[%s192 + $0x1] sm:$0x1] %v201
      %1145 = vst [vmem:[%s192 + $0x2] sm:$0x1] %v202
      %p1146 = scmp.lt.s32.totalorder %s14, 2
      %s1147 = scalar_select %p1146, %s14, 2
      %s1148 = smul.addr %s1147, 4
      %s1149 = scalar_lea.vmem %s3, %s1148
      // Predicated region
      $region40: #{multi_resolution_stft_loss.3} parent=31 // pred_check
        %p1150 = pneg %p105
      $region41: #{multi_resolution_stft_loss.3} parent=31 // pred_check_branch
        %1152 = sbr.rel (%p1150) target = $region43
      $region42: #{multi_resolution_stft_loss.3} parent=31 // pred_region
        _
      $region43: #{multi_resolution_stft_loss.3} parent=31 // pred_fallthru
        _
    $region32: #{multi_resolution_stft_loss.3} parent=5 // pred_fallthru
      _
    %p1153 = scmp.le.s32.totalorder 2, %s9
    // Predicated region
    $region44: #{multi_resolution_stft_loss.3} parent=5 // pred_check
      %p1154 = pneg %p1153
    $region45: #{multi_resolution_stft_loss.3} parent=5 // pred_check_branch
      %1156 = sbr.rel (%p1154) target = $region47
    $region46: #{multi_resolution_stft_loss.3} parent=5 // pred_region
      %s1157 = ssub.s32 %s9, 2
      // Predicated region
      $region48: #{multi_resolution_stft_loss.3} parent=46 // pred_check
        %p1158 = pneg %p111
      $region49: #{multi_resolution_stft_loss.3} parent=46 // pred_check_branch
        %1160 = sbr.rel (%p1158) target = $region51
      $region50: #{multi_resolution_stft_loss.3} parent=46 // pred_region
        %p1161 = scmp.lt.s32.totalorder %s15, 2
        %s1162 = scalar_select %p1161, %s15, 2
        %s1163 = smul.addr %s1162, 4
        %s1164 = scalar_lea.vmem %s3, %s1163
      $region51: #{multi_resolution_stft_loss.3} parent=46 // pred_fallthru
        _
    $region47: #{multi_resolution_stft_loss.3} parent=5 // pred_fallthru
      _
  $region6: #{multi_resolution_stft_loss.3} parent=0 // loop_footer
    %s13 = sadd.s32 1, %s9
  $region7: #{multi_resolution_stft_loss.3} parent=0 // loop_footer_branch
    %8 = sbr.rel target = $region3
  $region8: #{multi_resolution_stft_loss.3} parent=0 // loop_exit
    _

// kernel: multi_resolution_stft_loss.5
$region0: #{multi_resolution_stft_loss.5}
  #allocation0 [shape = 'u32[]', space=smem, size = 0x4, offset = 0x4, fixed_abs, tag = 'smem constant byte address 0x4 - core index']
  #allocation1 [shape = 'u32[144,128]{1,0:T(1,128)}', space=vmem, size = 0x12000, scoped, tag = 'internal scratch']
  %s0 = inlined_call_operand.vmem [shape: bf16[160,256], index: 0, kind: input, shape index: {}]
  %s1 = inlined_call_operand.vmem [shape: bf16[160,256], index: 1, kind: input, shape index: {}]
  %s2 = inlined_call_operand.vmem [shape: bf16[256,256], index: 2, kind: input, shape index: {}]
  %s3 = inlined_call_operand.vmem [shape: f32[2,3,128], index: 3, kind: output, shape index: {}]
  %s4 = sld [smem:[#allocation0]]
  $region45: #{multi_resolution_stft_loss.5} parent=0
    _
  %s6 = ssub.s32 1, %s4
  %s7 = scalar_select 0, %s6, %s4
  loop: start=0, step=1, limit=4
  $region2: #{multi_resolution_stft_loss.5} parent=0 // loop_pre_header
    _
  $region3: #{multi_resolution_stft_loss.5} parent=0 // loop_header
    %s9 = sphi 0, %s13
    %p10 = scmp.ge.s32.totalorder %s9, 4
    %s19 = sphi 0, %s21
    %s22 = sphi 0, %s19
    %s23 = sphi 0, %s22
    %s39 = sphi 0, %s23
    %s45 = sphi 0, %s47
    %s48 = sphi 0, %s45
    %s49 = sphi 0, %s48
    %s65 = sphi 0, %s49
    %s69 = sphi 0, %s69
    %s71 = sphi 0, %s69
    %s72 = sphi 0, %s71
    %s86 = sphi 0, %s72
    %s92 = sphi 0, %s94
    %s95 = sphi 0, %s92
    %s96 = sphi 0, %s95
    %s112 = sphi 0, %s96
  $region4: #{multi_resolution_stft_loss.5} parent=0 // loop_header_branch
    %12 = sbr.rel (%p10) target = $region8
  $region5: #{multi_resolution_stft_loss.5} parent=0 // loop_body
    %s14 = ssub.s32 %s9, 1
    %s15 = ssub.s32 %s9, 2
    %s16 = sadd.s32 %s9, 1
    %s17 = ssub.s32 %s9, %s16
    %p18 = scmp.eq.s32.totalorder %s17, 0
    %s20 = sadd.s32 %s19, 1
    %s21 = scalar_select %p18, %s19, %s20
    %p24 = pneg %p18
    %p25 = scmp.eq.s32.totalorder %s9, 1
    %p26 = por %p24, %p25
    %p27 = scmp.ne.s32.totalorder %s19, %s22
    %p28 = scmp.eq.s32.totalorder %s9, 0
    %p29 = por %p27, %p28
    %p30 = scmp.ne.s32.totalorder %s19, %s22
    %p31 = scmp.eq.s32.totalorder %s14, 1
    %p32 = por %p30, %p31
    %p33 = scmp.ne.s32.totalorder %s22, %s23
    %p34 = scmp.eq.s32.totalorder %s14, 0
    %p35 = por %p33, %p34
    %p36 = scmp.ne.s32.totalorder %s22, %s23
    %p37 = scmp.eq.s32.totalorder %s15, 1
    %p38 = por %p36, %p37
    %p40 = scmp.ne.s32.totalorder %s23, %s39
    %p41 = scmp.eq.s32.totalorder %s15, 0
    %p42 = por %p40, %p41
    %s43 = ssub.s32 %s9, %s16
    %p44 = scmp.eq.s32.totalorder %s43, 0
    %s46 = sadd.s32 %s45, 1
    %s47 = scalar_select %p44, %s45, %s46
    %p50 = pneg %p44
    %p51 = scmp.eq.s32.totalorder %s9, 1
    %p52 = por %p50, %p51
    %p53 = scmp.ne.s32.totalorder %s45, %s48
    %p54 = scmp.eq.s32.totalorder %s9, 0
    %p55 = por %p53, %p54
    %p56 = scmp.ne.s32.totalorder %s45, %s48
    %p57 = scmp.eq.s32.totalorder %s14, 1
    %p58 = por %p56, %p57
    %p59 = scmp.ne.s32.totalorder %s48, %s49
    %p60 = scmp.eq.s32.totalorder %s14, 0
    %p61 = por %p59, %p60
    %p62 = scmp.ne.s32.totalorder %s48, %s49
    %p63 = scmp.eq.s32.totalorder %s15, 1
    %p64 = por %p62, %p63
    %p66 = scmp.ne.s32.totalorder %s49, %s65
    %p67 = scmp.eq.s32.totalorder %s15, 0
    %p68 = por %p66, %p67
    %s70 = sadd.s32 %s69, 1
    %p73 = scmp.eq.s32.totalorder %s9, 1
    %p74 = scmp.ne.s32.totalorder %s69, %s71
    %p75 = scmp.eq.s32.totalorder %s9, 0
    %p76 = por %p74, %p75
    %p77 = scmp.ne.s32.totalorder %s69, %s71
    %p78 = scmp.eq.s32.totalorder %s14, 1
    %p79 = por %p77, %p78
    %p80 = scmp.ne.s32.totalorder %s71, %s72
    %p81 = scmp.eq.s32.totalorder %s14, 0
    %p82 = por %p80, %p81
    %p83 = scmp.ne.s32.totalorder %s71, %s72
    %p84 = scmp.eq.s32.totalorder %s15, 1
    %p85 = por %p83, %p84
    %p87 = scmp.ne.s32.totalorder %s72, %s86
    %p88 = scmp.eq.s32.totalorder %s15, 0
    %p89 = por %p87, %p88
    %s90 = ssub.s32 %s9, %s16
    %p91 = scmp.eq.s32.totalorder %s90, 0
    %s93 = sadd.s32 %s92, 1
    %s94 = scalar_select %p91, %s92, %s93
    %p97 = pneg %p91
    %p98 = scmp.eq.s32.totalorder %s9, 1
    %p99 = por %p97, %p98
    %p100 = scmp.ne.s32.totalorder %s92, %s95
    %p101 = scmp.eq.s32.totalorder %s9, 0
    %p102 = por %p100, %p101
    %p103 = scmp.ne.s32.totalorder %s92, %s95
    %p104 = scmp.eq.s32.totalorder %s14, 1
    %p105 = por %p103, %p104
    %p106 = scmp.ne.s32.totalorder %s95, %s96
    %p107 = scmp.eq.s32.totalorder %s14, 0
    %p108 = por %p106, %p107
    %p109 = scmp.ne.s32.totalorder %s95, %s96
    %p110 = scmp.eq.s32.totalorder %s15, 1
    %p111 = por %p109, %p110
    %p113 = scmp.ne.s32.totalorder %s96, %s112
    %p114 = scmp.eq.s32.totalorder %s15, 0
    %p115 = por %p113, %p114
    %p116 = scmp.le.s32.totalorder 1, %s9
    %p117 = scmp.lt.s32.totalorder %s9, 3
    %p118 = pnand %p116, %p117
    %p119 = pneg %p118
    // Predicated region
    $region9: #{multi_resolution_stft_loss.5} parent=5 // pred_check
      _
    $region10: #{multi_resolution_stft_loss.5} parent=5 // pred_check_branch
      %121 = sbr.rel (%p118) target = $region12
    $region11: #{multi_resolution_stft_loss.5} parent=5 // pred_region
      %s122 = ssub.s32 %s9, 1
      // Predicated region
      $region13: #{multi_resolution_stft_loss.5} parent=11 // pred_check
        %p123 = pneg %p82
      $region14: #{multi_resolution_stft_loss.5} parent=11 // pred_check_branch
        %125 = sbr.rel (%p123) target = $region16
      $region15: #{multi_resolution_stft_loss.5} parent=11 // pred_region
        _
      $region16: #{multi_resolution_stft_loss.5} parent=11 // pred_fallthru
        _
    $region12: #{multi_resolution_stft_loss.5} parent=5 // pred_fallthru
      _
    %p126 = scmp.lt.s32.totalorder %s9, 2
    // Predicated region
    $region17: #{multi_resolution_stft_loss.5} parent=5 // pred_check
      %p127 = pneg %p126
    $region18: #{multi_resolution_stft_loss.5} parent=5 // pred_check_branch
      %129 = sbr.rel (%p127) target = $region20
    $region19: #{multi_resolution_stft_loss.5} parent=5 // pred_region
      // Predicated region
      $region21: #{multi_resolution_stft_loss.5} parent=19 // pred_check
        %p130 = pneg %p29
      $region22: #{multi_resolution_stft_loss.5} parent=19 // pred_check_branch
        %132 = sbr.rel (%p130) target = $region24
      $region23: #{multi_resolution_stft_loss.5} parent=19 // pred_region
        %s133 = smul.u32 10, %s9
        %p134 = scmp.lt.s32.totalorder %s133, 19
        %s135 = scalar_select %p134, %s133, 19
        %s136 = smul.addr %s135, 2
        %s137 = smul.addr %s136, 4
        %s138 = scalar_lea.vmem %s0, %s137
        %s139 = smul.u32 10, %s9
      $region24: #{multi_resolution_stft_loss.5} parent=19 // pred_fallthru
        _
      // Predicated region
      $region25: #{multi_resolution_stft_loss.5} parent=19 // pred_check
        %p140 = pneg %p55
      $region26: #{multi_resolution_stft_loss.5} parent=19 // pred_check_branch
        %142 = sbr.rel (%p140) target = $region28
      $region27: #{multi_resolution_stft_loss.5} parent=19 // pred_region
        %s143 = smul.u32 10, %s9
        %p144 = scmp.lt.s32.totalorder %s143, 19
        %s145 = scalar_select %p144, %s143, 19
        %s146 = smul.addr %s145, 2
        %s147 = smul.addr %s146, 4
        %s148 = scalar_lea.vmem %s1, %s147
        %s149 = smul.u32 10, %s9
      $region28: #{multi_resolution_stft_loss.5} parent=19 // pred_fallthru
        _
    $region20: #{multi_resolution_stft_loss.5} parent=5 // pred_fallthru
      _
    %p150 = scmp.le.s32.totalorder 1, %s9
    %p151 = scmp.lt.s32.totalorder %s9, 3
    %p152 = pnand %p150, %p151
    %p153 = pneg %p152
    // Predicated region
    $region29: #{multi_resolution_stft_loss.5} parent=5 // pred_check
      _
    $region30: #{multi_resolution_stft_loss.5} parent=5 // pred_check_branch
      %155 = sbr.rel (%p152) target = $region32
    $region31: #{multi_resolution_stft_loss.5} parent=5 // pred_region
      %s156 = ssub.s32 %s9, 1
      %s157 = smul.u32 10, %s14
      %p158 = scmp.lt.s32.totalorder %s157, 19
      %s159 = scalar_select %p158, %s157, 19
      %s160 = smul.addr %s159, 2
      %s161 = smul.addr %s160, 4
      %s162 = scalar_lea.vmem %s0, %s161
      %p163 = pneg %p35
      %p164 = pneg %p32
      %s165 = smul.u32 10, %s14
      %p166 = scmp.lt.s32.totalorder %s165, 19
      %s167 = scalar_select %p166, %s165, 19
      %s168 = smul.addr %s167, 2
      %s169 = smul.addr %s168, 4
      %s170 = scalar_lea.vmem %s1, %s169
      %p171 = pneg %p61
      %p172 = pneg %p58
      %p173 = pneg %p82
      %p174 = pneg %p79
      %p175 = pneg %p108
      %p176 = pneg %p105
      %p177 = scmp.lt.s32.totalorder %s14, 1
      %s178 = scalar_select %p177, %s14, 1
      %s179 = smul.addr %s178, 4
      %s180 = scalar_lea.vmem %s3, %s179
      %s181 = smul.u32 10, %s14
      %p182 = scmp.lt.s32.totalorder %s181, 19
      %s183 = scalar_select %p182, %s181, 19
      %s184 = smul.addr %s183, 2
      %s185 = smul.addr %s184, 4
      %s186 = scalar_lea.vmem %s0, %s185
      %s187 = smul.u32 10, %s14
      %s188 = smul.u32 10, %s14
      %p189 = scmp.lt.s32.totalorder %s188, 19
      %s190 = scalar_select %p189, %s188, 19
      %s191 = smul.addr %s190, 2
      %s192 = smul.addr %s191, 4
      %s193 = scalar_lea.vmem %s1, %s192
      %s194 = smul.u32 10, %s14
      %p195 = scmp.lt.s32.totalorder %s14, 1
      %s196 = scalar_select %p195, %s14, 1
      %s197 = smul.addr %s196, 4
      %s198 = scalar_lea.vmem %s3, %s197
      %v199 = vld [vmem:[%s186] sm:$0xff]
      %v200 = vld [vmem:[%s186 + $0x8] sm:$0xff]
      %v201 = vld [vmem:[%s186 + $0x10] sm:$0xff]
      %v202 = vld [vmem:[%s186 + $0x18] sm:$0xff]
      %v203 = vld [vmem:[%s186 + $0x20] sm:$0xff]
      %v204 = vld [vmem:[%s186 + $0x28] sm:$0xff]
      %v205 = vld [vmem:[%s186 + $0x30] sm:$0xff]
      %v206 = vld [vmem:[%s186 + $0x38] sm:$0xff]
      %v207 = vld [vmem:[%s186 + $0x40] sm:$0xff]
      %v208 = vld [vmem:[%s186 + $0x48] sm:$0xff]
      %v209 = vld [vmem:[%s193] sm:$0xff]
      %v210 = vld [vmem:[%s193 + $0x8] sm:$0xff]
      %v211 = vld [vmem:[%s193 + $0x10] sm:$0xff]
      %v212 = vld [vmem:[%s193 + $0x18] sm:$0xff]
      %v213 = vld [vmem:[%s193 + $0x20] sm:$0xff]
      %v214 = vld [vmem:[%s193 + $0x28] sm:$0xff]
      %v215 = vld [vmem:[%s193 + $0x30] sm:$0xff]
      %v216 = vld [vmem:[%s193 + $0x38] sm:$0xff]
      %v217 = vld [vmem:[%s193 + $0x40] sm:$0xff]
      %v218 = vld [vmem:[%s193 + $0x48] sm:$0xff]
      %v219 = vld [vmem:[%s2] sm:$0xff]
      %v220 = vld [vmem:[%s2 + $0x8] sm:$0xff]
      %v221 = vld [vmem:[%s2 + $0x10] sm:$0xff]
      %v222 = vld [vmem:[%s2 + $0x18] sm:$0xff]
      %v223 = vld [vmem:[%s2 + $0x20] sm:$0xff]
      %v224 = vld [vmem:[%s2 + $0x28] sm:$0xff]
      %v225 = vld [vmem:[%s2 + $0x30] sm:$0xff]
      %v226 = vld [vmem:[%s2 + $0x38] sm:$0xff]
      %v227 = vld [vmem:[%s2 + $0x40] sm:$0xff]
      %v228 = vld [vmem:[%s2 + $0x48] sm:$0xff]
      %v229 = vld [vmem:[%s2 + $0x50] sm:$0xff]
      %v230 = vld [vmem:[%s2 + $0x58] sm:$0xff]
      %v231 = vld [vmem:[%s2 + $0x60] sm:$0xff]
      %v232 = vld [vmem:[%s2 + $0x68] sm:$0xff]
      %v233 = vld [vmem:[%s2 + $0x70] sm:$0xff]
      %v234 = vld [vmem:[%s2 + $0x78] sm:$0xff]
      %v235 = vld [vmem:[%s2 + $0x80] sm:$0xff]
      %v236 = vld [vmem:[%s2 + $0x88] sm:$0xff]
      %v237 = vld [vmem:[%s2 + $0x90] sm:$0xff]
      %v238 = vld [vmem:[%s2 + $0x98] sm:$0xff]
      %v239 = vld [vmem:[%s2 + $0xa0] sm:$0xff]
      %v240 = vld [vmem:[%s2 + $0xa8] sm:$0xff]
      %v241 = vld [vmem:[%s2 + $0xb0] sm:$0xff]
      %v242 = vld [vmem:[%s2 + $0xb8] sm:$0xff]
      %v243 = vld [vmem:[%s2 + $0xc0] sm:$0xff]
      %v244 = vld [vmem:[%s2 + $0xc8] sm:$0xff]
      %v245 = vld [vmem:[%s2 + $0xd0] sm:$0xff]
      %v246 = vld [vmem:[%s2 + $0xd8] sm:$0xff]
      %v247 = vld [vmem:[%s2 + $0xe0] sm:$0xff]
      %v248 = vld [vmem:[%s2 + $0xe8] sm:$0xff]
      %v249 = vld [vmem:[%s2 + $0xf0] sm:$0xff]
      %v250 = vld [vmem:[%s2 + $0xf8] sm:$0xff]
      %v261 = vunpack.c.l.b16 %v199
      %v262 = vunpack.c.h.b16 %v199
      %v263 = vunpack.c.l.b16 %v200
      %v264 = vunpack.c.h.b16 %v200
      %v265 = vunpack.c.l.b16 %v201
      %v266 = vunpack.c.h.b16 %v201
      %v267 = vunpack.c.l.b16 %v202
      %v268 = vunpack.c.h.b16 %v202
      %v269 = vunpack.c.l.b16 %v203
      %v270 = vunpack.c.h.b16 %v203
      %v271 = vunpack.c.l.b16 %v204
      %v272 = vunpack.c.h.b16 %v204
      %v273 = vunpack.c.l.b16 %v205
      %v274 = vunpack.c.h.b16 %v205
      %v275 = vunpack.c.l.b16 %v206
      %v276 = vunpack.c.h.b16 %v206
      %v277 = vunpack.c.l.b16 %v207
      %v278 = vunpack.c.h.b16 %v207
      %v279 = vunpack.c.l.b16 %v208
      %v280 = vunpack.c.h.b16 %v208
      %v281 = vpack.c.b16 %v263, %v261
      %v282 = vpack.c.b16 %v264, %v262
      %v283 = vpack.c.b16 %v267, %v265
      %v284 = vpack.c.b16 %v268, %v266
      %v285 = vpack.c.b16 %v271, %v269
      %v286 = vpack.c.b16 %v272, %v270
      %v287 = vpack.c.b16 %v275, %v273
      %v288 = vpack.c.b16 %v276, %v274
      %v289 = vpack.c.b16 %v279, %v277
      %v290 = vpack.c.b16 %v280, %v278
      %v333 = vunpack.c.l.b16 %v219
      %v334 = vunpack.c.h.b16 %v219
      %v335 = vunpack.c.l.b16 %v220
      %v336 = vunpack.c.h.b16 %v220
      %v337 = vunpack.c.l.b16 %v221
      %v338 = vunpack.c.h.b16 %v221
      %v339 = vunpack.c.l.b16 %v222
      %v340 = vunpack.c.h.b16 %v222
      %v341 = vunpack.c.l.b16 %v223
      %v342 = vunpack.c.h.b16 %v223
      %v343 = vunpack.c.l.b16 %v224
      %v344 = vunpack.c.h.b16 %v224
      %v345 = vunpack.c.l.b16 %v225
      %v346 = vunpack.c.h.b16 %v225
      %v347 = vunpack.c.l.b16 %v226
      %v348 = vunpack.c.h.b16 %v226
      %v349 = vunpack.c.l.b16 %v227
      %v350 = vunpack.c.h.b16 %v227
      %v351 = vunpack.c.l.b16 %v228
      %v352 = vunpack.c.h.b16 %v228
      %v353 = vunpack.c.l.b16 %v229
      %v354 = vunpack.c.h.b16 %v229
      %v355 = vunpack.c.l.b16 %v230
      %v356 = vunpack.c.h.b16 %v230
      %v357 = vunpack.c.l.b16 %v231
      %v358 = vunpack.c.h.b16 %v231
      %v359 = vunpack.c.l.b16 %v232
      %v360 = vunpack.c.h.b16 %v232
      %v361 = vunpack.c.l.b16 %v233
      %v362 = vunpack.c.h.b16 %v233
      %v363 = vunpack.c.l.b16 %v234
      %v364 = vunpack.c.h.b16 %v234
      %v365 = vunpack.c.l.b16 %v235
      %v366 = vunpack.c.h.b16 %v235
      %v367 = vunpack.c.l.b16 %v236
      %v368 = vunpack.c.h.b16 %v236
      %v369 = vunpack.c.l.b16 %v237
      %v370 = vunpack.c.h.b16 %v237
      %v371 = vunpack.c.l.b16 %v238
      %v372 = vunpack.c.h.b16 %v238
      %v373 = vunpack.c.l.b16 %v239
      %v374 = vunpack.c.h.b16 %v239
      %v375 = vunpack.c.l.b16 %v240
      %v376 = vunpack.c.h.b16 %v240
      %v377 = vunpack.c.l.b16 %v241
      %v378 = vunpack.c.h.b16 %v241
      %v379 = vunpack.c.l.b16 %v242
      %v380 = vunpack.c.h.b16 %v242
      %v381 = vunpack.c.l.b16 %v243
      %v382 = vunpack.c.h.b16 %v243
      %v383 = vunpack.c.l.b16 %v244
      %v384 = vunpack.c.h.b16 %v244
      %v385 = vunpack.c.l.b16 %v245
      %v386 = vunpack.c.h.b16 %v245
      %v387 = vunpack.c.l.b16 %v246
      %v388 = vunpack.c.h.b16 %v246
      %v389 = vunpack.c.l.b16 %v247
      %v390 = vunpack.c.h.b16 %v247
      %v391 = vunpack.c.l.b16 %v248
      %v392 = vunpack.c.h.b16 %v248
      %v393 = vunpack.c.l.b16 %v249
      %v394 = vunpack.c.h.b16 %v249
      %v395 = vunpack.c.l.b16 %v250
      %v396 = vunpack.c.h.b16 %v250
      %v397 = vpack.c.b16 %v335, %v333
      %v398 = vpack.c.b16 %v336, %v334
      %v399 = vpack.c.b16 %v339, %v337
      %v400 = vpack.c.b16 %v340, %v338
      %v401 = vpack.c.b16 %v343, %v341
      %v402 = vpack.c.b16 %v344, %v342
      %v403 = vpack.c.b16 %v347, %v345
      %v404 = vpack.c.b16 %v348, %v346
      %v405 = vpack.c.b16 %v351, %v349
      %v406 = vpack.c.b16 %v352, %v350
      %v407 = vpack.c.b16 %v355, %v353
      %v408 = vpack.c.b16 %v356, %v354
      %v409 = vpack.c.b16 %v359, %v357
      %v410 = vpack.c.b16 %v360, %v358
      %v411 = vpack.c.b16 %v363, %v361
      %v412 = vpack.c.b16 %v364, %v362
      %v413 = vpack.c.b16 %v367, %v365
      %v414 = vpack.c.b16 %v368, %v366
      %v415 = vpack.c.b16 %v371, %v369
      %v416 = vpack.c.b16 %v372, %v370
      %v417 = vpack.c.b16 %v375, %v373
      %v418 = vpack.c.b16 %v376, %v374
      %v419 = vpack.c.b16 %v379, %v377
      %v420 = vpack.c.b16 %v380, %v378
      %v421 = vpack.c.b16 %v383, %v381
      %v422 = vpack.c.b16 %v384, %v382
      %v423 = vpack.c.b16 %v387, %v385
      %v424 = vpack.c.b16 %v388, %v386
      %v425 = vpack.c.b16 %v391, %v389
      %v426 = vpack.c.b16 %v392, %v390
      %v427 = vpack.c.b16 %v395, %v393
      %v428 = vpack.c.b16 %v396, %v394
      %461 = vmatprep.subr.bf16.mxu0 %v398
      %462 = vmatpush1.bf16.msra.mxu0 %v397
      %463 = vmatprep.subr.bf16.mxu0 %v400
      %464 = vmatpush1.bf16.msra.mxu0 %v399
      %465 = vmatprep.subr.bf16.mxu0 %v402
      %466 = vmatpush1.bf16.msra.mxu0 %v401
      %467 = vmatprep.subr.bf16.mxu0 %v404
      %468 = vmatpush1.bf16.msra.mxu0 %v403
      %469 = vmatprep.subr.bf16.mxu0 %v406
      %470 = vmatpush1.bf16.msra.mxu0 %v405
      %471 = vmatprep.subr.bf16.mxu0 %v408
      %472 = vmatpush1.bf16.msra.mxu0 %v407
      %473 = vmatprep.subr.bf16.mxu0 %v410
      %474 = vmatpush1.bf16.msra.mxu0 %v409
      %475 = vmatprep.subr.bf16.mxu0 %v412
      %476 = vmatpush1.bf16.msra.mxu0 %v411
      %477 = vmatprep.subr.bf16.mxu0 %v414
      %478 = vmatpush1.bf16.msra.mxu0 %v413
      %479 = vmatprep.subr.bf16.mxu0 %v416
      %480 = vmatpush1.bf16.msra.mxu0 %v415
      %481 = vmatprep.subr.bf16.mxu0 %v418
      %482 = vmatpush1.bf16.msra.mxu0 %v417
      %483 = vmatprep.subr.bf16.mxu0 %v420
      %484 = vmatpush1.bf16.msra.mxu0 %v419
      %485 = vmatprep.subr.bf16.mxu0 %v422
      %486 = vmatpush1.bf16.msra.mxu0 %v421
      %487 = vmatprep.subr.bf16.mxu0 %v424
      %488 = vmatpush1.bf16.msra.mxu0 %v423
      %489 = vmatprep.subr.bf16.mxu0 %v426
      %490 = vmatpush1.bf16.msra.mxu0 %v425
      %491 = vmatprep.subr.bf16.mxu0 %v428
      %492 = vmatpush1.bf16.msra.mxu0 %v427
      %493 = vmatprep.mubr.bf16.mxu0 %v282
      %494 = vmatmul.mubr.bf16.gmra.mrb[0].mxu0 %v281
      %v495 = vpop.f32.mrb[0].mxu0
      %v496 = vadd.f32 0.0, %v495
      %v497 = vpop.f32.mrb[0].mxu0
      %v498 = vadd.f32 0.0, %v497
      %v499 = vpop.f32.mrb[0].mxu0
      %v500 = vadd.f32 0.0, %v499
      %v501 = vpop.f32.mrb[0].mxu0
      %v502 = vadd.f32 0.0, %v501
      %503 = vmatprep.mubr.bf16.mxu0 %v284
      %504 = vmatmul.mubr.bf16.gmra.mrb[0].mxu0 %v283
      %v505 = vpop.f32.mrb[0].mxu0
      %v506 = vadd.f32 0.0, %v505
      %v507 = vpop.f32.mrb[0].mxu0
      %v508 = vadd.f32 0.0, %v507
      %v509 = vpop.f32.mrb[0].mxu0
      %v510 = vadd.f32 0.0, %v509
      %v511 = vpop.f32.mrb[0].mxu0
      %v512 = vadd.f32 0.0, %v511
      %513 = vmatprep.mubr.bf16.mxu0 %v286
      %514 = vmatmul.mubr.bf16.gmra.mrb[0].mxu0 %v285
      %v515 = vpop.f32.mrb[0].mxu0
      %v516 = vadd.f32 0.0, %v515
      %v517 = vpop.f32.mrb[0].mxu0
      %v518 = vadd.f32 0.0, %v517
      %v519 = vpop.f32.mrb[0].mxu0
      %v520 = vadd.f32 0.0, %v519
      %v521 = vpop.f32.mrb[0].mxu0
      %v522 = vadd.f32 0.0, %v521
      %523 = vmatprep.mubr.bf16.mxu0 %v288
      %524 = vmatmul.mubr.bf16.gmra.mrb[0].mxu0 %v287
      %v525 = vpop.f32.mrb[0].mxu0
      %v526 = vadd.f32 0.0, %v525
      %v527 = vpop.f32.mrb[0].mxu0
      %v528 = vadd.f32 0.0, %v527
      %v529 = vpop.f32.mrb[0].mxu0
      %v530 = vadd.f32 0.0, %v529
      %v531 = vpop.f32.mrb[0].mxu0
      %v532 = vadd.f32 0.0, %v531
      %533 = vmatprep.mubr.bf16.mxu0 %v290
      %534 = vmatmul.mubr.bf16.gmra.mrb[0].mxu0 %v289
      %v535 = vpop.f32.mrb[0].mxu0
      %v536 = vadd.f32 0.0, %v535
      %v537 = vpop.f32.mrb[0].mxu0
      %v538 = vadd.f32 0.0, %v537
      %v539 = vpop.f32.mrb[0].mxu0
      %v540 = vadd.f32 0.0, %v539
      %v541 = vpop.f32.mrb[0].mxu0
      %v542 = vadd.f32 0.0, %v541
      %543 = vdwg.mxu0
      %v554 = vunpack.c.l.b16 %v209
      %v555 = vunpack.c.h.b16 %v209
      %v556 = vunpack.c.l.b16 %v210
      %v557 = vunpack.c.h.b16 %v210
      %v558 = vunpack.c.l.b16 %v211
      %v559 = vunpack.c.h.b16 %v211
      %v560 = vunpack.c.l.b16 %v212
      %v561 = vunpack.c.h.b16 %v212
      %v562 = vunpack.c.l.b16 %v213
      %v563 = vunpack.c.h.b16 %v213
      %v564 = vunpack.c.l.b16 %v214
      %v565 = vunpack.c.h.b16 %v214
      %v566 = vunpack.c.l.b16 %v215
      %v567 = vunpack.c.h.b16 %v215
      %v568 = vunpack.c.l.b16 %v216
      %v569 = vunpack.c.h.b16 %v216
      %v570 = vunpack.c.l.b16 %v217
      %v571 = vunpack.c.h.b16 %v217
      %v572 = vunpack.c.l.b16 %v218
      %v573 = vunpack.c.h.b16 %v218
      %v574 = vpack.c.b16 %v556, %v554
      %v575 = vpack.c.b16 %v557, %v555
      %v576 = vpack.c.b16 %v560, %v558
      %v577 = vpack.c.b16 %v561, %v559
      %v578 = vpack.c.b16 %v564, %v562
      %v579 = vpack.c.b16 %v565, %v563
      %v580 = vpack.c.b16 %v568, %v566
      %v581 = vpack.c.b16 %v569, %v567
      %v582 = vpack.c.b16 %v572, %v570
      %v583 = vpack.c.b16 %v573, %v571
      %594 = vmatprep.subr.bf16.mxu0 %v398
      %595 = vmatpush1.bf16.msra.mxu0 %v397
      %596 = vmatprep.subr.bf16.mxu0 %v400
      %597 = vmatpush1.bf16.msra.mxu0 %v399
      %598 = vmatprep.subr.bf16.mxu0 %v402
      %599 = vmatpush1.bf16.msra.mxu0 %v401
      %600 = vmatprep.subr.bf16.mxu0 %v404
      %601 = vmatpush1.bf16.msra.mxu0 %v403
      %602 = vmatprep.subr.bf16.mxu0 %v406
      %603 = vmatpush1.bf16.msra.mxu0 %v405
      %604 = vmatprep.subr.bf16.mxu0 %v408
      %605 = vmatpush1.bf16.msra.mxu0 %v407
      %606 = vmatprep.subr.bf16.mxu0 %v410
      %607 = vmatpush1.bf16.msra.mxu0 %v409
      %608 = vmatprep.subr.bf16.mxu0 %v412
      %609 = vmatpush1.bf16.msra.mxu0 %v411
      %610 = vmatprep.subr.bf16.mxu0 %v414
      %611 = vmatpush1.bf16.msra.mxu0 %v413
      %612 = vmatprep.subr.bf16.mxu0 %v416
      %613 = vmatpush1.bf16.msra.mxu0 %v415
      %614 = vmatprep.subr.bf16.mxu0 %v418
      %615 = vmatpush1.bf16.msra.mxu0 %v417
      %616 = vmatprep.subr.bf16.mxu0 %v420
      %617 = vmatpush1.bf16.msra.mxu0 %v419
      %618 = vmatprep.subr.bf16.mxu0 %v422
      %619 = vmatpush1.bf16.msra.mxu0 %v421
      %620 = vmatprep.subr.bf16.mxu0 %v424
      %621 = vmatpush1.bf16.msra.mxu0 %v423
      %622 = vmatprep.subr.bf16.mxu0 %v426
      %623 = vmatpush1.bf16.msra.mxu0 %v425
      %624 = vmatprep.subr.bf16.mxu0 %v428
      %625 = vmatpush1.bf16.msra.mxu0 %v427
      %626 = vmatprep.mubr.bf16.mxu0 %v575
      %627 = vmatmul.mubr.bf16.gmra.mrb[0].mxu0 %v574
      %v628 = vpop.f32.mrb[0].mxu0
      %v629 = vadd.f32 0.0, %v628
      %v630 = vpop.f32.mrb[0].mxu0
      %v631 = vadd.f32 0.0, %v630
      %v632 = vpop.f32.mrb[0].mxu0
      %v633 = vadd.f32 0.0, %v632
      %v634 = vpop.f32.mrb[0].mxu0
      %v635 = vadd.f32 0.0, %v634
      %636 = vmatprep.mubr.bf16.mxu0 %v577
      %637 = vmatmul.mubr.bf16.gmra.mrb[0].mxu0 %v576
      %v638 = vpop.f32.mrb[0].mxu0
      %v639 = vadd.f32 0.0, %v638
      %v640 = vpop.f32.mrb[0].mxu0
      %v641 = vadd.f32 0.0, %v640
      %v642 = vpop.f32.mrb[0].mxu0
      %v643 = vadd.f32 0.0, %v642
      %v644 = vpop.f32.mrb[0].mxu0
      %v645 = vadd.f32 0.0, %v644
      %646 = vmatprep.mubr.bf16.mxu0 %v579
      %647 = vmatmul.mubr.bf16.gmra.mrb[0].mxu0 %v578
      %v648 = vpop.f32.mrb[0].mxu0
      %v649 = vadd.f32 0.0, %v648
      %v650 = vpop.f32.mrb[0].mxu0
      %v651 = vadd.f32 0.0, %v650
      %v652 = vpop.f32.mrb[0].mxu0
      %v653 = vadd.f32 0.0, %v652
      %v654 = vpop.f32.mrb[0].mxu0
      %v655 = vadd.f32 0.0, %v654
      %656 = vmatprep.mubr.bf16.mxu0 %v581
      %657 = vmatmul.mubr.bf16.gmra.mrb[0].mxu0 %v580
      %v658 = vpop.f32.mrb[0].mxu0
      %v659 = vadd.f32 0.0, %v658
      %v660 = vpop.f32.mrb[0].mxu0
      %v661 = vadd.f32 0.0, %v660
      %v662 = vpop.f32.mrb[0].mxu0
      %v663 = vadd.f32 0.0, %v662
      %v664 = vpop.f32.mrb[0].mxu0
      %v665 = vadd.f32 0.0, %v664
      %666 = vmatprep.mubr.bf16.mxu0 %v583
      %667 = vmatmul.mubr.bf16.gmra.mrb[0].mxu0 %v582
      %v668 = vpop.f32.mrb[0].mxu0
      %v669 = vadd.f32 0.0, %v668
      %v670 = vpop.f32.mrb[0].mxu0
      %v671 = vadd.f32 0.0, %v670
      %v672 = vpop.f32.mrb[0].mxu0
      %v673 = vadd.f32 0.0, %v672
      %v674 = vpop.f32.mrb[0].mxu0
      %v675 = vadd.f32 0.0, %v674
      %676 = vdwg.mxu0
      %v677 = vmul.f32 %v496, %v496
      %v678 = vmul.f32 %v500, %v500
      %v679 = vmul.f32 %v506, %v506
      %v680 = vmul.f32 %v510, %v510
      %v681 = vmul.f32 %v516, %v516
      %v682 = vmul.f32 %v520, %v520
      %v683 = vmul.f32 %v526, %v526
      %v684 = vmul.f32 %v530, %v530
      %v685 = vmul.f32 %v536, %v536
      %v686 = vmul.f32 %v540, %v540
      %v687 = vmul.f32 %v498, %v498
      %v688 = vmul.f32 %v502, %v502
      %v689 = vmul.f32 %v508, %v508
      %v690 = vmul.f32 %v512, %v512
      %v691 = vmul.f32 %v518, %v518
      %v692 = vmul.f32 %v522, %v522
      %v693 = vmul.f32 %v528, %v528
      %v694 = vmul.f32 %v532, %v532
      %v695 = vmul.f32 %v538, %v538
      %v696 = vmul.f32 %v542, %v542
      %v697 = vadd.f32 %v677, %v687
      %v698 = vadd.f32 %v678, %v688
      %v699 = vadd.f32 %v679, %v689
      %v700 = vadd.f32 %v680, %v690
      %v701 = vadd.f32 %v681, %v691
      %v702 = vadd.f32 %v682, %v692
      %v703 = vadd.f32 %v683, %v693
      %v704 = vadd.f32 %v684, %v694
      %v705 = vadd.f32 %v685, %v695
      %v706 = vadd.f32 %v686, %v696
      %v707 = vmax.f32 %v697, 1e-07
      %v708 = vmax.f32 %v698, 1e-07
      %v709 = vmax.f32 %v699, 1e-07
      %v710 = vmax.f32 %v700, 1e-07
      %v711 = vmax.f32 %v701, 1e-07
      %v712 = vmax.f32 %v702, 1e-07
      %v713 = vmax.f32 %v703, 1e-07
      %v714 = vmax.f32 %v704, 1e-07
      %v715 = vmax.f32 %v705, 1e-07
      %v716 = vmax.f32 %v706, 1e-07
      %v717 = vmul.f32 %v629, %v629
      %v718 = vmul.f32 %v633, %v633
      %v719 = vmul.f32 %v639, %v639
      %v720 = vmul.f32 %v643, %v643
      %v721 = vmul.f32 %v649, %v649
      %v722 = vmul.f32 %v653, %v653
      %v723 = vmul.f32 %v659, %v659
      %v724 = vmul.f32 %v663, %v663
      %v725 = vmul.f32 %v669, %v669
      %v726 = vmul.f32 %v673, %v673
      %v727 = vmul.f32 %v631, %v631
      %v728 = vmul.f32 %v635, %v635
      %v729 = vmul.f32 %v641, %v641
      %v730 = vmul.f32 %v645, %v645
      %v731 = vmul.f32 %v651, %v651
      %v732 = vmul.f32 %v655, %v655
      %v733 = vmul.f32 %v661, %v661
      %v734 = vmul.f32 %v665, %v665
      %v735 = vmul.f32 %v671, %v671
      %v736 = vmul.f32 %v675, %v675
      %v737 = vadd.f32 %v717, %v727
      %v738 = vadd.f32 %v718, %v728
      %v739 = vadd.f32 %v719, %v729
      %v740 = vadd.f32 %v720, %v730
      %v741 = vadd.f32 %v721, %v731
      %v742 = vadd.f32 %v722, %v732
      %v743 = vadd.f32 %v723, %v733
      %v744 = vadd.f32 %v724, %v734
      %v745 = vadd.f32 %v725, %v735
      %v746 = vadd.f32 %v726, %v736
      %v747 = vmax.f32 %v737, 1e-07
      %v748 = vmax.f32 %v738, 1e-07
      %v749 = vmax.f32 %v739, 1e-07
      %v750 = vmax.f32 %v740, 1e-07
      %v751 = vmax.f32 %v741, 1e-07
      %v752 = vmax.f32 %v742, 1e-07
      %v753 = vmax.f32 %v743, 1e-07
      %v754 = vmax.f32 %v744, 1e-07
      %v755 = vmax.f32 %v745, 1e-07
      %v756 = vmax.f32 %v746, 1e-07
      %v757 = vadd.f32 %v707, %v747
      %v758 = vadd.f32 %v708, %v748
      %v759 = vadd.f32 %v709, %v749
      %v760 = vadd.f32 %v710, %v750
      %v761 = vadd.f32 %v711, %v751
      %v762 = vadd.f32 %v712, %v752
      %v763 = vadd.f32 %v713, %v753
      %v764 = vadd.f32 %v714, %v754
      %v765 = vadd.f32 %v715, %v755
      %v766 = vadd.f32 %v716, %v756
      %v767 = vmul.f32 %v707, %v747
      %v768 = vmul.f32 %v708, %v748
      %v769 = vmul.f32 %v709, %v749
      %v770 = vmul.f32 %v710, %v750
      %v771 = vmul.f32 %v711, %v751
      %v772 = vmul.f32 %v712, %v752
      %v773 = vmul.f32 %v713, %v753
      %v774 = vmul.f32 %v714, %v754
      %v775 = vmul.f32 %v715, %v755
      %v776 = vmul.f32 %v716, %v756
      %v777 = vrsqrt.pop %v767
      %v778 = vmul.f32 %v767, %v777
      %vm779 = vcmp.eq.f32.partialorder %v767, inf
      %v780 = vsel %vm779, %v767, %v778
      %vm781 = vcmp.eq.f32.partialorder %v767, 0.0
      %v782 = vand.u32 %v767, 2147483648
      %v783 = vsel %vm781, %v782, %v780
      %v784 = vrsqrt.pop %v768
      %v785 = vmul.f32 %v768, %v784
      %vm786 = vcmp.eq.f32.partialorder %v768, inf
      %v787 = vsel %vm786, %v768, %v785
      %vm788 = vcmp.eq.f32.partialorder %v768, 0.0
      %v789 = vand.u32 %v768, 2147483648
      %v790 = vsel %vm788, %v789, %v787
      %v791 = vrsqrt.pop %v769
      %v792 = vmul.f32 %v769, %v791
      %vm793 = vcmp.eq.f32.partialorder %v769, inf
      %v794 = vsel %vm793, %v769, %v792
      %vm795 = vcmp.eq.f32.partialorder %v769, 0.0
      %v796 = vand.u32 %v769, 2147483648
      %v797 = vsel %vm795, %v796, %v794
      %v798 = vrsqrt.pop %v770
      %v799 = vmul.f32 %v770, %v798
      %vm800 = vcmp.eq.f32.partialorder %v770, inf
      %v801 = vsel %vm800, %v770, %v799
      %vm802 = vcmp.eq.f32.partialorder %v770, 0.0
      %v803 = vand.u32 %v770, 2147483648
      %v804 = vsel %vm802, %v803, %v801
      %v805 = vrsqrt.pop %v771
      %v806 = vmul.f32 %v771, %v805
      %vm807 = vcmp.eq.f32.partialorder %v771, inf
      %v808 = vsel %vm807, %v771, %v806
      %vm809 = vcmp.eq.f32.partialorder %v771, 0.0
      %v810 = vand.u32 %v771, 2147483648
      %v811 = vsel %vm809, %v810, %v808
      %v812 = vrsqrt.pop %v772
      %v813 = vmul.f32 %v772, %v812
      %vm814 = vcmp.eq.f32.partialorder %v772, inf
      %v815 = vsel %vm814, %v772, %v813
      %vm816 = vcmp.eq.f32.partialorder %v772, 0.0
      %v817 = vand.u32 %v772, 2147483648
      %v818 = vsel %vm816, %v817, %v815
      %v819 = vrsqrt.pop %v773
      %v820 = vmul.f32 %v773, %v819
      %vm821 = vcmp.eq.f32.partialorder %v773, inf
      %v822 = vsel %vm821, %v773, %v820
      %vm823 = vcmp.eq.f32.partialorder %v773, 0.0
      %v824 = vand.u32 %v773, 2147483648
      %v825 = vsel %vm823, %v824, %v822
      %v826 = vrsqrt.pop %v774
      %v827 = vmul.f32 %v774, %v826
      %vm828 = vcmp.eq.f32.partialorder %v774, inf
      %v829 = vsel %vm828, %v774, %v827
      %vm830 = vcmp.eq.f32.partialorder %v774, 0.0
      %v831 = vand.u32 %v774, 2147483648
      %v832 = vsel %vm830, %v831, %v829
      %v833 = vrsqrt.pop %v775
      %v834 = vmul.f32 %v775, %v833
      %vm835 = vcmp.eq.f32.partialorder %v775, inf
      %v836 = vsel %vm835, %v775, %v834
      %vm837 = vcmp.eq.f32.partialorder %v775, 0.0
      %v838 = vand.u32 %v775, 2147483648
      %v839 = vsel %vm837, %v838, %v836
      %v840 = vrsqrt.pop %v776
      %v841 = vmul.f32 %v776, %v840
      %vm842 = vcmp.eq.f32.partialorder %v776, inf
      %v843 = vsel %vm842, %v776, %v841
      %vm844 = vcmp.eq.f32.partialorder %v776, 0.0
      %v845 = vand.u32 %v776, 2147483648
      %v846 = vsel %vm844, %v845, %v843
      %v847 = vmul.f32 %v783, 2.0
      %v848 = vmul.f32 %v790, 2.0
      %v849 = vmul.f32 %v797, 2.0
      %v850 = vmul.f32 %v804, 2.0
      %v851 = vmul.f32 %v811, 2.0
      %v852 = vmul.f32 %v818, 2.0
      %v853 = vmul.f32 %v825, 2.0
      %v854 = vmul.f32 %v832, 2.0
      %v855 = vmul.f32 %v839, 2.0
      %v856 = vmul.f32 %v846, 2.0
      %v857 = vsub.f32 %v757, %v847
      %v858 = vsub.f32 %v758, %v848
      %v859 = vsub.f32 %v759, %v849
      %v860 = vsub.f32 %v760, %v850
      %v861 = vsub.f32 %v761, %v851
      %v862 = vsub.f32 %v762, %v852
      %v863 = vsub.f32 %v763, %v853
      %v864 = vsub.f32 %v764, %v854
      %v865 = vsub.f32 %v765, %v855
      %v866 = vsub.f32 %v766, %v856
      %v867 = vmax.f32 %v857, 0.0
      %v868 = vmax.f32 %v858, 0.0
      %v869 = vmax.f32 %v859, 0.0
      %v870 = vmax.f32 %v860, 0.0
      %v871 = vmax.f32 %v861, 0.0
      %v872 = vmax.f32 %v862, 0.0
      %v873 = vmax.f32 %v863, 0.0
      %v874 = vmax.f32 %v864, 0.0
      %v875 = vmax.f32 %v865, 0.0
      %v876 = vmax.f32 %v866, 0.0
      %v877 = vlog2.pop %v707
      %v878 = vmul.f32 %v877, 0.6931472
      %v879 = vlog2.pop %v708
      %v880 = vmul.f32 %v879, 0.6931472
      %v881 = vlog2.pop %v709
      %v882 = vmul.f32 %v881, 0.6931472
      %v883 = vlog2.pop %v710
      %v884 = vmul.f32 %v883, 0.6931472
      %v885 = vlog2.pop %v711
      %v886 = vmul.f32 %v885, 0.6931472
      %v887 = vlog2.pop %v712
      %v888 = vmul.f32 %v887, 0.6931472
      %v889 = vlog2.pop %v713
      %v890 = vmul.f32 %v889, 0.6931472
      %v891 = vlog2.pop %v714
      %v892 = vmul.f32 %v891, 0.6931472
      %v893 = vlog2.pop %v715
      %v894 = vmul.f32 %v893, 0.6931472
      %v895 = vlog2.pop %v716
      %v896 = vmul.f32 %v895, 0.6931472
      %v897 = vlog2.pop %v747
      %v898 = vmul.f32 %v897, 0.6931472
      %v899 = vlog2.pop %v748
      %v900 = vmul.f32 %v899, 0.6931472
      %v901 = vlog2.pop %v749
      %v902 = vmul.f32 %v901, 0.6931472
      %v903 = vlog2.pop %v750
      %v904 = vmul.f32 %v903, 0.6931472
      %v905 = vlog2.pop %v751
      %v906 = vmul.f32 %v905, 0.6931472
      %v907 = vlog2.pop %v752
      %v908 = vmul.f32 %v907, 0.6931472
      %v909 = vlog2.pop %v753
      %v910 = vmul.f32 %v909, 0.6931472
      %v911 = vlog2.pop %v754
      %v912 = vmul.f32 %v911, 0.6931472
      %v913 = vlog2.pop %v755
      %v914 = vmul.f32 %v913, 0.6931472
      %v915 = vlog2.pop %v756
      %v916 = vmul.f32 %v915, 0.6931472
      %v917 = vsub.f32 %v878, %v898
      %v918 = vsub.f32 %v880, %v900
      %v919 = vsub.f32 %v882, %v902
      %v920 = vsub.f32 %v884, %v904
      %v921 = vsub.f32 %v886, %v906
      %v922 = vsub.f32 %v888, %v908
      %v923 = vsub.f32 %v890, %v910
      %v924 = vsub.f32 %v892, %v912
      %v925 = vsub.f32 %v894, %v914
      %v926 = vsub.f32 %v896, %v916
      %v927 = vand.u32 2147483647, %v917
      %v928 = vand.u32 2147483647, %v918
      %v929 = vand.u32 2147483647, %v919
      %v930 = vand.u32 2147483647, %v920
      %v931 = vand.u32 2147483647, %v921
      %v932 = vand.u32 2147483647, %v922
      %v933 = vand.u32 2147483647, %v923
      %v934 = vand.u32 2147483647, %v924
      %v935 = vand.u32 2147483647, %v925
      %v936 = vand.u32 2147483647, %v926
      %v937 = vmul.f32 %v927, 0.5
      %v938 = vmul.f32 %v928, 0.5
      %v939 = vmul.f32 %v929, 0.5
      %v940 = vmul.f32 %v930, 0.5
      %v941 = vmul.f32 %v931, 0.5
      %v942 = vmul.f32 %v932, 0.5
      %v943 = vmul.f32 %v933, 0.5
      %v944 = vmul.f32 %v934, 0.5
      %v945 = vmul.f32 %v935, 0.5
      %v946 = vmul.f32 %v936, 0.5
      %v947 = vadd.f32 %v867, %v868
      %v948 = vadd.f32 %v947, %v869
      %v949 = vadd.f32 %v948, %v870
      %v950 = vadd.f32 %v949, %v871
      %v951 = vadd.f32 %v950, %v872
      %v952 = vadd.f32 %v951, %v873
      %v953 = vadd.f32 %v952, %v874
      %v954 = vadd.f32 %v953, %v875
      %v955 = vadd.f32 %v954, %v876
      %v956 = vrot.slane %v955, 4
      %v957 = vadd.f32 %v955, %v956
      %v958 = vrot.slane %v957, 2
      %v959 = vadd.f32 %v957, %v958
      %v960 = vrot.slane %v959, 1
      %v961 = vadd.f32 %v959, %v960
      %v962 = vadd.f32 %v747, %v748
      %v963 = vadd.f32 %v962, %v749
      %v964 = vadd.f32 %v963, %v750
      %v965 = vadd.f32 %v964, %v751
      %v966 = vadd.f32 %v965, %v752
      %v967 = vadd.f32 %v966, %v753
      %v968 = vadd.f32 %v967, %v754
      %v969 = vadd.f32 %v968, %v755
      %v970 = vadd.f32 %v969, %v756
      %v971 = vrot.slane %v970, 4
      %v972 = vadd.f32 %v970, %v971
      %v973 = vrot.slane %v972, 2
      %v974 = vadd.f32 %v972, %v973
      %v975 = vrot.slane %v974, 1
      %v976 = vadd.f32 %v974, %v975
      %v977 = vadd.f32 %v937, %v938
      %v978 = vadd.f32 %v977, %v939
      %v979 = vadd.f32 %v978, %v940
      %v980 = vadd.f32 %v979, %v941
      %v981 = vadd.f32 %v980, %v942
      %v982 = vadd.f32 %v981, %v943
      %v983 = vadd.f32 %v982, %v944
      %v984 = vadd.f32 %v983, %v945
      %v985 = vadd.f32 %v984, %v946
      %v986 = vrot.slane %v985, 4
      %v987 = vadd.f32 %v985, %v986
      %v988 = vrot.slane %v987, 2
      %v989 = vadd.f32 %v987, %v988
      %v990 = vrot.slane %v989, 1
      %v991 = vadd.f32 %v989, %v990
      %992 = vst [vmem:[%s198] sm:$0x1] %v961
      %993 = vst [vmem:[%s198 + $0x1] sm:$0x1] %v976
      %994 = vst [vmem:[%s198 + $0x2] sm:$0x1] %v991
      %p995 = scmp.lt.s32.totalorder %s14, 1
      %s996 = scalar_select %p995, %s14, 1
      %s997 = smul.addr %s996, 4
      %s998 = scalar_lea.vmem %s3, %s997
      // Predicated region
      $region33: #{multi_resolution_stft_loss.5} parent=31 // pred_check
        %p999 = pneg %p105
      $region34: #{multi_resolution_stft_loss.5} parent=31 // pred_check_branch
        %1001 = sbr.rel (%p999) target = $region36
      $region35: #{multi_resolution_stft_loss.5} parent=31 // pred_region
        _
      $region36: #{multi_resolution_stft_loss.5} parent=31 // pred_fallthru
        _
    $region32: #{multi_resolution_stft_loss.5} parent=5 // pred_fallthru
      _
    %p1002 = scmp.le.s32.totalorder 2, %s9
    // Predicated region
    $region37: #{multi_resolution_stft_loss.5} parent=5 // pred_check
      %p1003 = pneg %p1002
    $region38: #{multi_resolution_stft_loss.5} parent=5 // pred_check_branch
      %1005 = sbr.rel (%p1003) target = $region40
    $region39: #{multi_resolution_stft_loss.5} parent=5 // pred_region
      %s1006 = ssub.s32 %s9, 2
      // Predicated region
      $region41: #{multi_resolution_stft_loss.5} parent=39 // pred_check
        %p1007 = pneg %p111
      $region42: #{multi_resolution_stft_loss.5} parent=39 // pred_check_branch
        %1009 = sbr.rel (%p1007) target = $region44
      $region43: #{multi_resolution_stft_loss.5} parent=39 // pred_region
        %p1010 = scmp.lt.s32.totalorder %s15, 1
        %s1011 = scalar_select %p1010, %s15, 1
        %s1012 = smul.addr %s1011, 4
        %s1013 = scalar_lea.vmem %s3, %s1012
      $region44: #{multi_resolution_stft_loss.5} parent=39 // pred_fallthru
        _
    $region40: #{multi_resolution_stft_loss.5} parent=5 // pred_fallthru
      _
  $region6: #{multi_resolution_stft_loss.5} parent=0 // loop_footer
    %s13 = sadd.s32 1, %s9
  $region7: #{multi_resolution_stft_loss.5} parent=0 // loop_footer_branch
    %8 = sbr.rel target = $region3
  $region8: #{multi_resolution_stft_loss.5} parent=0 // loop_exit
    _

</llo_original>
